<compile_context>
chip_gen: v7x
topology: tpu7x:2x2x1
jax: 0.10.0
libtpu: 0.0.40
codegen_flags: <defaults>
</compile_context>

<pallas_src>
import jax
import jax.numpy as jnp
from jax.experimental import pallas as pl
from jax.experimental.pallas import tpu as pltpu


def _round_up(x, m):
    return ((x + m - 1) // m) * m


# ----------------------------------------------------------------------------
# Pallas kernels
# ----------------------------------------------------------------------------
def _conv_pool_kernel(x0_ref, x1_ref, x2_ref, x3_ref, w_ref, b_ref, o_ref):
    """Fused conv(+BN) bias + 2x2 max-pool + ReLU.

    x{0..3} are the im2col slabs of the four 2x2-pool window positions for the
    same block of pooled output rows.  W already has the BatchNorm scale folded
    in (conv3) and b = b*scale + shift, so applying the affine per branch is
    exact even for negative gamma; max then relu reproduce pool(relu(bn(conv))).
    """
    w = w_ref[...]
    y0 = jnp.dot(x0_ref[...], w, preferred_element_type=jnp.float32)
    y1 = jnp.dot(x1_ref[...], w, preferred_element_type=jnp.float32)
    y2 = jnp.dot(x2_ref[...], w, preferred_element_type=jnp.float32)
    y3 = jnp.dot(x3_ref[...], w, preferred_element_type=jnp.float32)
    y = jnp.maximum(jnp.maximum(y0, y1), jnp.maximum(y2, y3)) + b_ref[...]
    o_ref[...] = jnp.maximum(y, 0.0).astype(o_ref.dtype)


def _mlp_kernel(x_ref, w1_ref, b1_ref, w2_ref, b2_ref, w3_ref, b3_ref, o_ref):
    """fc1 -> relu -> fc2 -> relu -> fc3 fused into one kernel.

    All weights are zero-padded to multiples of 128, so every intermediate is
    lane-dense and stays VMEM/vreg resident; no HBM round-trips between FCs.
    """
    h = jnp.dot(x_ref[...], w1_ref[...], preferred_element_type=jnp.float32)
    h = jnp.maximum(h + b1_ref[...], 0.0)
    # TODO(synk): nn.Dropout(0.5) treated as inference-mode identity.
    h = jnp.dot(h.astype(w2_ref.dtype), w2_ref[...],
                preferred_element_type=jnp.float32)
    h = jnp.maximum(h + b2_ref[...], 0.0)
    h = jnp.dot(h.astype(w3_ref.dtype), w3_ref[...],
                preferred_element_type=jnp.float32)
    o_ref[...] = (h + b3_ref[...]).astype(o_ref.dtype)


# ----------------------------------------------------------------------------
# Wrappers
# ----------------------------------------------------------------------------
def conv_pool_layer(x, w_mat, b_row, *, kh, kw, stride, pad, tm_cap=1024):
    """relu(max_pool2d(conv(x), 2)) with x in NHWC.

    Returns NHWC with the channel dim zero-padded to w_mat.shape[1] (a
    multiple of 128); padded channels are exactly zero.
    """
    N, H, W, C = x.shape
    xp = jnp.pad(x, ((0, 0), (pad, pad), (pad, pad), (0, 0)))
    OH = (H + 2 * pad - kh) // stride + 1
    OW = (W + 2 * pad - kw) // stride + 1
    OHo, OWo = OH // 2, OW // 2          # floor-mode 2x2/stride-2 pool
    s2 = 2 * stride
    K = kh * kw * C
    Kp, Ncp = w_mat.shape
    assert K <= Kp and Kp % 128 == 0 and Ncp % 128 == 0
    P = N * OHo * OWo
    tm = min(tm_cap, _round_up(P, 8))
    Mp = _round_up(P, tm)

    def slab(di, dj):
        # im2col restricted to the conv-output pixels (2*oho+di, 2*owo+dj):
        # patch row index in xp is (i + stride*di) + (2*stride)*oho.
        cols = []
        for i in range(kh):
            for j in range(kw):
                r0 = i + stride * di
                c0 = j + stride * dj
                cols.append(xp[:, r0:r0 + s2 * OHo:s2,
                               c0:c0 + s2 * OWo:s2, :])
        s = jnp.stack(cols, axis=3).reshape(P, K)     # feature order (i, j, cin)
        s = jnp.pad(s, ((0, Mp - P), (0, Kp - K)))    # row / lane padding
        return s.astype(jnp.bfloat16)

    slabs = [slab(di, dj) for di in (0, 1) for dj in (0, 1)]

    out = pl.pallas_call(
        _conv_pool_kernel,
        out_shape=jax.ShapeDtypeStruct((Mp, Ncp), jnp.bfloat16),
        grid=(Mp // tm,),
        in_specs=[pl.BlockSpec((tm, Kp), lambda i: (i, 0)) for _ in range(4)]
                + [pl.BlockSpec((Kp, Ncp), lambda i: (0, 0)),
                   pl.BlockSpec((1, Ncp), lambda i: (0, 0))],
        out_specs=pl.BlockSpec((tm, Ncp), lambda i: (i, 0)),
        compiler_params=pltpu.CompilerParams(
            dimension_semantics=("parallel",)),
    )(*slabs, w_mat, b_row)
    return out[:P].reshape(N, OHo, OWo, Ncp)


def fused_mlp(flat, q, *, n_out=2, tm_cap=512):
    """Single pallas_call for fc1->relu->fc2->relu->fc3 on (N, 512) input."""
    N, F = flat.shape
    tm = min(tm_cap, _round_up(N, 8))
    Mp = _round_up(N, tm)
    xpad = jnp.pad(flat, ((0, Mp - N), (0, 0))).astype(jnp.bfloat16)
    H1 = q['fc1_w'].shape[1]
    H2 = q['fc2_w'].shape[1]
    NO = q['fc3_w'].shape[1]
    out = pl.pallas_call(
        _mlp_kernel,
        out_shape=jax.ShapeDtypeStruct((Mp, NO), jnp.float32),
        grid=(Mp // tm,),
        in_specs=[pl.BlockSpec((tm, F), lambda i: (i, 0)),
                  pl.BlockSpec((F, H1), lambda i: (0, 0)),
                  pl.BlockSpec((1, H1), lambda i: (0, 0)),
                  pl.BlockSpec((H1, H2), lambda i: (0, 0)),
                  pl.BlockSpec((1, H2), lambda i: (0, 0)),
                  pl.BlockSpec((H2, NO), lambda i: (0, 0)),
                  pl.BlockSpec((1, NO), lambda i: (0, 0))],
        out_specs=pl.BlockSpec((tm, NO), lambda i: (i, 0)),
        compiler_params=pltpu.CompilerParams(
            dimension_semantics=("parallel",)),
    )(xpad, q['fc1_w'], q['fc1_b'], q['fc2_w'], q['fc2_b'],
      q['fc3_w'], q['fc3_b'])
    return out[:N, :n_out]


# ----------------------------------------------------------------------------
# Parameters
# ----------------------------------------------------------------------------
def init_params(key):
    ks = jax.random.split(key, 16)

    def nrm(k, shape, s=0.05):
        return jax.random.normal(k, shape, jnp.float32) * s

    p = {}
    p['w1'] = nrm(ks[0], (16, 3, 5, 5));   p['b1'] = nrm(ks[1], (16,))
    p['w2'] = nrm(ks[2], (32, 16, 5, 5));  p['b2'] = nrm(ks[3], (32,))
    p['w3'] = nrm(ks[4], (64, 32, 3, 3));  p['b3'] = nrm(ks[5], (64,))
    p['bn_gamma'] = 1.0 + nrm(ks[6], (64,))
    p['bn_beta'] = nrm(ks[7], (64,))
    p['bn_mean'] = nrm(ks[8], (64,))
    p['bn_var'] = 1.0 + jnp.abs(nrm(ks[9], (64,)))
    p['fc1_w'] = nrm(ks[10], (200, 256));  p['fc1_b'] = nrm(ks[11], (200,))
    p['fc2_w'] = nrm(ks[12], (20, 200));   p['fc2_b'] = nrm(ks[13], (20,))
    p['fc3_w'] = nrm(ks[14], (2, 20));     p['fc3_b'] = nrm(ks[15], (2,))
    return p


def prepare_params(p):
    """One-time prep: conv filters -> (Kp, 128)-padded matmul matrices with the
    BatchNorm affine folded into conv3, FC weights pre-transposed / input-dim
    permuted / 128-padded, MXU operands in bf16 (biases stay f32 epilogue)."""
    eps = 1e-5
    # TODO(synk): BatchNorm2d folded with inference-mode running stats (not the
    #             batch statistics PyTorch's default train() mode would use).
    scale = p['bn_gamma'] / jnp.sqrt(p['bn_var'] + eps)
    shift = p['bn_beta'] - p['bn_mean'] * scale

    def conv_mat(w, b, col_scale=None, col_shift=None):
        cout, cin, kh, kw = w.shape
        k = kh * kw * cin
        m = jnp.transpose(w, (2, 3, 1, 0)).reshape(k, cout)  # (K, Cout), (i,j,cin)
        if col_scale is not None:                            # fold BN affine
            m = m * col_scale[None, :]
            b = b * col_scale + col_shift
        kp, ncp = _round_up(k, 128), _round_up(cout, 128)
        m = jnp.pad(m, ((0, kp - k), (0, ncp - cout)))
        b = jnp.pad(b, (0, ncp - cout))
        return m.astype(jnp.bfloat16), b.reshape(1, ncp).astype(jnp.float32)

    q = {}
    q['w1'], q['b1'] = conv_mat(p['w1'], p['b1'])
    q['w2'], q['b2'] = conv_mat(p['w2'], p['b2'])
    q['w3'], q['b3'] = conv_mat(p['w3'], p['b3'], scale, shift)

    # fc1: PyTorch flattens NCHW (c, h, w); the conv3+pool pallas output is
    # (h, w, c_padded_to_128).  Permute & zero-pad fc1's input dim once so the
    # flatten in forward() is a free reshape of the padded output slab.
    cout3 = p['w3'].shape[0]                 # 64
    ncp3 = _round_up(cout3, 128)             # 128
    h1 = p['fc1_w'].shape[0]                 # 200
    w = p['fc1_w'].reshape(h1, cout3, 2, 2)  # (out, c, h, w)
    w = jnp.transpose(w, (0, 2, 3, 1))       # (out, h, w, c)
    w = jnp.pad(w, ((0, 0), (0, 0), (0, 0), (0, ncp3 - cout3)))
    w = w.reshape(h1, 2 * 2 * ncp3).T        # (512, 200)
    h1p = _round_up(h1, 128)                 # 256
    q['fc1_w'] = jnp.pad(w, ((0, 0), (0, h1p - h1))).astype(jnp.bfloat16)
    q['fc1_b'] = jnp.pad(p['fc1_b'], (0, h1p - h1)).reshape(1, h1p).astype(jnp.float32)

    h2 = p['fc2_w'].shape[0]                 # 20
    h2p = _round_up(h2, 128)                 # 128
    q['fc2_w'] = jnp.pad(p['fc2_w'].T,
                         ((0, h1p - h1), (0, h2p - h2))).astype(jnp.bfloat16)
    q['fc2_b'] = jnp.pad(p['fc2_b'], (0, h2p - h2)).reshape(1, h2p).astype(jnp.float32)

    n_out = p['fc3_w'].shape[0]              # 2
    nop = _round_up(n_out, 128)              # 128
    q['fc3_w'] = jnp.pad(p['fc3_w'].T,
                         ((0, h2p - h2), (0, nop - n_out))).astype(jnp.bfloat16)
    q['fc3_b'] = jnp.pad(p['fc3_b'], (0, nop - n_out)).reshape(1, nop).astype(jnp.float32)
    return q


# ----------------------------------------------------------------------------
# Model forward
# ----------------------------------------------------------------------------
def forward(x_nchw, q):
    N = x_nchw.shape[0]
    x = jnp.transpose(x_nchw, (0, 2, 3, 1)).astype(jnp.bfloat16)       # NHWC
    # conv1 (5x5, s2, p1) + relu + 2x2 pool : 80 -> 39 -> 19
    y = conv_pool_layer(x, q['w1'], q['b1'], kh=5, kw=5, stride=2, pad=1)
    # conv2 (5x5, s2, p1) + relu + 2x2 pool : 19 -> 9 -> 4   (slice true 16 ch)
    y = conv_pool_layer(y[..., :16], q['w2'], q['b2'], kh=5, kw=5, stride=2, pad=1)
    # conv3 (3x3, p1) + BN(folded) + relu + 2x2 pool : 4 -> 4 -> 2 (slice 32 ch)
    y = conv_pool_layer(y[..., :32], q['w3'], q['b3'], kh=3, kw=3, stride=1, pad=1)
    # flatten: fc1's input dim was pre-permuted/padded to (h, w, c_pad128),
    # so this is a free reshape of the padded (N, 2, 2, 128) output.
    flat = y.reshape(N, -1)                                            # (N, 512)
    return fused_mlp(flat, q, n_out=2)


if __name__ == "__main__":
    key = jax.random.PRNGKey(0)
    k_params, k_x = jax.random.split(key)
    params = init_params(k_params)
    prepped = prepare_params(params)      # one-time fold/transpose/pad/cast
    # 80x80 RGB: 80 -> conv1 39 -> pool 19 -> conv2 9 -> pool 4
    #             -> conv3 4 -> pool 2  => fc1 sees 64*2*2 = 256 true features.
    x = jax.random.normal(k_x, (2, 3, 80, 80), jnp.float32)   # NCHW like PyTorch
    logits = jax.jit(forward)(x, prepped)
    jax.block_until_ready(logits)
    assert logits.shape == (2, 2)
    print("KERNEL_OK")
</pallas_src>

<mosaic_0001>
module attributes {stable_mosaic.version = 11 : i64} {
  func.func @_conv_pool_kernel(%arg0: i32, %arg1: memref<728x128xbf16, #tpu.memory_space<vmem>>, %arg2: memref<728x128xbf16, #tpu.memory_space<vmem>>, %arg3: memref<728x128xbf16, #tpu.memory_space<vmem>>, %arg4: memref<728x128xbf16, #tpu.memory_space<vmem>>, %arg5: memref<128x128xbf16, #tpu.memory_space<vmem>>, %arg6: memref<1x128xf32, #tpu.memory_space<vmem>>, %arg7: memref<728x128xbf16, #tpu.memory_space<vmem>>) attributes {dimension_semantics = [#tpu.dimension_semantics<parallel>], iteration_bounds = array<i64: 1>, scalar_prefetch = 0 : i64, scratch_operands = 0 : i64, tpu.core_type = #tpu.core_type<tc>, window_params = [{transform_indices = @transform_0, window_bounds = array<i64: 728, 128>}, {transform_indices = @transform_1, window_bounds = array<i64: 728, 128>}, {transform_indices = @transform_2, window_bounds = array<i64: 728, 128>}, {transform_indices = @transform_3, window_bounds = array<i64: 728, 128>}, {pipeline_mode = #tpu.pipeline_mode<synchronous>, transform_indices = @transform_4, window_bounds = array<i64: 128, 128>}, {pipeline_mode = #tpu.pipeline_mode<synchronous>, transform_indices = @transform_5, window_bounds = array<i64: 1, 128>}, {transform_indices = @transform_6, window_bounds = array<i64: 728, 128>}]} {
    %c0 = arith.constant 0 : index
    %c0_0 = arith.constant 0 : index
    %0 = vector.load %arg5[%c0, %c0_0] : memref<128x128xbf16, #tpu.memory_space<vmem>>, vector<128x128xbf16>
    %c0_1 = arith.constant 0 : index
    %c0_2 = arith.constant 0 : index
    %1 = vector.load %arg1[%c0_1, %c0_2] : memref<728x128xbf16, #tpu.memory_space<vmem>>, vector<728x128xbf16>
    %cst = arith.constant dense<0.000000e+00> : vector<728x128xf32>
    %2 = tpu.matmul %1, %0, %cst {dimension_numbers = #tpu.dot_dimension_numbers<[1], [0], [0], [1], [0, 0, 1, 1], [], []>} : vector<728x128xbf16>, vector<128x128xbf16>, vector<728x128xf32> -> vector<728x128xf32>
    %c0_3 = arith.constant 0 : index
    %c0_4 = arith.constant 0 : index
    %3 = vector.load %arg2[%c0_3, %c0_4] : memref<728x128xbf16, #tpu.memory_space<vmem>>, vector<728x128xbf16>
    %cst_5 = arith.constant dense<0.000000e+00> : vector<728x128xf32>
    %4 = tpu.matmul %3, %0, %cst_5 {dimension_numbers = #tpu.dot_dimension_numbers<[1], [0], [0], [1], [0, 0, 1, 1], [], []>} : vector<728x128xbf16>, vector<128x128xbf16>, vector<728x128xf32> -> vector<728x128xf32>
    %c0_6 = arith.constant 0 : index
    %c0_7 = arith.constant 0 : index
    %5 = vector.load %arg3[%c0_6, %c0_7] : memref<728x128xbf16, #tpu.memory_space<vmem>>, vector<728x128xbf16>
    %cst_8 = arith.constant dense<0.000000e+00> : vector<728x128xf32>
    %6 = tpu.matmul %5, %0, %cst_8 {dimension_numbers = #tpu.dot_dimension_numbers<[1], [0], [0], [1], [0, 0, 1, 1], [], []>} : vector<728x128xbf16>, vector<128x128xbf16>, vector<728x128xf32> -> vector<728x128xf32>
    %c0_9 = arith.constant 0 : index
    %c0_10 = arith.constant 0 : index
    %7 = vector.load %arg4[%c0_9, %c0_10] : memref<728x128xbf16, #tpu.memory_space<vmem>>, vector<728x128xbf16>
    %cst_11 = arith.constant dense<0.000000e+00> : vector<728x128xf32>
    %8 = tpu.matmul %7, %0, %cst_11 {dimension_numbers = #tpu.dot_dimension_numbers<[1], [0], [0], [1], [0, 0, 1, 1], [], []>} : vector<728x128xbf16>, vector<128x128xbf16>, vector<728x128xf32> -> vector<728x128xf32>
    %9 = arith.maximumf %2, %4 : vector<728x128xf32>
    %10 = arith.maximumf %6, %8 : vector<728x128xf32>
    %11 = arith.maximumf %9, %10 : vector<728x128xf32>
    %c0_12 = arith.constant 0 : index
    %c0_13 = arith.constant 0 : index
    %12 = vector.load %arg6[%c0_12, %c0_13] : memref<1x128xf32, #tpu.memory_space<vmem>>, vector<1x128xf32>
    %13 = vector.broadcast %12 : vector<1x128xf32> to vector<728x128xf32>
    %14 = arith.addf %11, %13 : vector<728x128xf32>
    %cst_14 = arith.constant 0.000000e+00 : f32
    %15 = vector.broadcast %cst_14 : f32 to vector<728x128xf32>
    %16 = arith.maximumf %14, %15 : vector<728x128xf32>
    %17 = arith.truncf %16 : vector<728x128xf32> to vector<728x128xbf16>
    %c0_15 = arith.constant 0 : index
    %c0_16 = arith.constant 0 : index
    %18 = vector.load %arg7[%c0_15, %c0_16] : memref<728x128xbf16, #tpu.memory_space<vmem>>, vector<728x128xbf16>
    tpu.vector_store %arg7[%c0_15, %c0_16], %17 {strides = array<i32>} : memref<728x128xbf16, #tpu.memory_space<vmem>>, vector<728x128xbf16>,
    return
  }
  func.func @transform_0(%arg0: i32) -> (i32, i32) {
    %c0_i32 = arith.constant 0 : i32
    %c0_i32_0 = arith.constant 0 : i32
    return %arg0, %c0_i32 : i32, i32
  }
  func.func @transform_1(%arg0: i32) -> (i32, i32) {
    %c0_i32 = arith.constant 0 : i32
    %c0_i32_0 = arith.constant 0 : i32
    return %arg0, %c0_i32 : i32, i32
  }
  func.func @transform_2(%arg0: i32) -> (i32, i32) {
    %c0_i32 = arith.constant 0 : i32
    %c0_i32_0 = arith.constant 0 : i32
    return %arg0, %c0_i32 : i32, i32
  }
  func.func @transform_3(%arg0: i32) -> (i32, i32) {
    %c0_i32 = arith.constant 0 : i32
    %c0_i32_0 = arith.constant 0 : i32
    return %arg0, %c0_i32 : i32, i32
  }
  func.func @transform_4(%arg0: i32) -> (i32, i32) {
    %c0_i32 = arith.constant 0 : i32
    %c0_i32_0 = arith.constant 0 : i32
    %c0_i32_1 = arith.constant 0 : i32
    return %c0_i32, %c0_i32_0 : i32, i32
  }
  func.func @transform_5(%arg0: i32) -> (i32, i32) {
    %c0_i32 = arith.constant 0 : i32
    %c0_i32_0 = arith.constant 0 : i32
    %c0_i32_1 = arith.constant 0 : i32
    return %c0_i32, %c0_i32_0 : i32, i32
  }
  func.func @transform_6(%arg0: i32) -> (i32, i32) {
    %c0_i32 = arith.constant 0 : i32
    %c0_i32_0 = arith.constant 0 : i32
    return %arg0, %c0_i32 : i32, i32
  }
}

module attributes {stable_mosaic.version = 11 : i64} {
  func.func @_conv_pool_kernel(%arg0: i32, %arg1: memref<32x512xbf16, #tpu.memory_space<vmem>>, %arg2: memref<32x512xbf16, #tpu.memory_space<vmem>>, %arg3: memref<32x512xbf16, #tpu.memory_space<vmem>>, %arg4: memref<32x512xbf16, #tpu.memory_space<vmem>>, %arg5: memref<512x128xbf16, #tpu.memory_space<vmem>>, %arg6: memref<1x128xf32, #tpu.memory_space<vmem>>, %arg7: memref<32x128xbf16, #tpu.memory_space<vmem>>) attributes {dimension_semantics = [#tpu.dimension_semantics<parallel>], iteration_bounds = array<i64: 1>, scalar_prefetch = 0 : i64, scratch_operands = 0 : i64, tpu.core_type = #tpu.core_type<tc>, window_params = [{transform_indices = @transform_0, window_bounds = array<i64: 32, 512>}, {transform_indices = @transform_1, window_bounds = array<i64: 32, 512>}, {transform_indices = @transform_2, window_bounds = array<i64: 32, 512>}, {transform_indices = @transform_3, window_bounds = array<i64: 32, 512>}, {pipeline_mode = #tpu.pipeline_mode<synchronous>, transform_indices = @transform_4, window_bounds = array<i64: 512, 128>}, {pipeline_mode = #tpu.pipeline_mode<synchronous>, transform_indices = @transform_5, window_bounds = array<i64: 1, 128>}, {transform_indices = @transform_6, window_bounds = array<i64: 32, 128>}]} {
    %c0 = arith.constant 0 : index
    %c0_0 = arith.constant 0 : index
    %0 = vector.load %arg5[%c0, %c0_0] : memref<512x128xbf16, #tpu.memory_space<vmem>>, vector<512x128xbf16>
    %c0_1 = arith.constant 0 : index
    %c0_2 = arith.constant 0 : index
    %1 = vector.load %arg1[%c0_1, %c0_2] : memref<32x512xbf16, #tpu.memory_space<vmem>>, vector<32x512xbf16>
    %cst = arith.constant dense<0.000000e+00> : vector<32x128xf32>
    %2 = tpu.matmul %1, %0, %cst {dimension_numbers = #tpu.dot_dimension_numbers<[1], [0], [0], [1], [0, 0, 1, 1], [], []>} : vector<32x512xbf16>, vector<512x128xbf16>, vector<32x128xf32> -> vector<32x128xf32>
    %c0_3 = arith.constant 0 : index
    %c0_4 = arith.constant 0 : index
    %3 = vector.load %arg2[%c0_3, %c0_4] : memref<32x512xbf16, #tpu.memory_space<vmem>>, vector<32x512xbf16>
    %cst_5 = arith.constant dense<0.000000e+00> : vector<32x128xf32>
    %4 = tpu.matmul %3, %0, %cst_5 {dimension_numbers = #tpu.dot_dimension_numbers<[1], [0], [0], [1], [0, 0, 1, 1], [], []>} : vector<32x512xbf16>, vector<512x128xbf16>, vector<32x128xf32> -> vector<32x128xf32>
    %c0_6 = arith.constant 0 : index
    %c0_7 = arith.constant 0 : index
    %5 = vector.load %arg3[%c0_6, %c0_7] : memref<32x512xbf16, #tpu.memory_space<vmem>>, vector<32x512xbf16>
    %cst_8 = arith.constant dense<0.000000e+00> : vector<32x128xf32>
    %6 = tpu.matmul %5, %0, %cst_8 {dimension_numbers = #tpu.dot_dimension_numbers<[1], [0], [0], [1], [0, 0, 1, 1], [], []>} : vector<32x512xbf16>, vector<512x128xbf16>, vector<32x128xf32> -> vector<32x128xf32>
    %c0_9 = arith.constant 0 : index
    %c0_10 = arith.constant 0 : index
    %7 = vector.load %arg4[%c0_9, %c0_10] : memref<32x512xbf16, #tpu.memory_space<vmem>>, vector<32x512xbf16>
    %cst_11 = arith.constant dense<0.000000e+00> : vector<32x128xf32>
    %8 = tpu.matmul %7, %0, %cst_11 {dimension_numbers = #tpu.dot_dimension_numbers<[1], [0], [0], [1], [0, 0, 1, 1], [], []>} : vector<32x512xbf16>, vector<512x128xbf16>, vector<32x128xf32> -> vector<32x128xf32>
    %9 = arith.maximumf %2, %4 : vector<32x128xf32>
    %10 = arith.maximumf %6, %8 : vector<32x128xf32>
    %11 = arith.maximumf %9, %10 : vector<32x128xf32>
    %c0_12 = arith.constant 0 : index
    %c0_13 = arith.constant 0 : index
    %12 = vector.load %arg6[%c0_12, %c0_13] : memref<1x128xf32, #tpu.memory_space<vmem>>, vector<1x128xf32>
    %13 = vector.broadcast %12 : vector<1x128xf32> to vector<32x128xf32>
    %14 = arith.addf %11, %13 : vector<32x128xf32>
    %cst_14 = arith.constant 0.000000e+00 : f32
    %15 = vector.broadcast %cst_14 : f32 to vector<32x128xf32>
    %16 = arith.maximumf %14, %15 : vector<32x128xf32>
    %17 = arith.truncf %16 : vector<32x128xf32> to vector<32x128xbf16>
    %c0_15 = arith.constant 0 : index
    %c0_16 = arith.constant 0 : index
    %18 = vector.load %arg7[%c0_15, %c0_16] : memref<32x128xbf16, #tpu.memory_space<vmem>>, vector<32x128xbf16>
    tpu.vector_store %arg7[%c0_15, %c0_16], %17 {strides = array<i32>} : memref<32x128xbf16, #tpu.memory_space<vmem>>, vector<32x128xbf16>,
    return
  }
  func.func @transform_0(%arg0: i32) -> (i32, i32) {
    %c0_i32 = arith.constant 0 : i32
    %c0_i32_0 = arith.constant 0 : i32
    return %arg0, %c0_i32 : i32, i32
  }
  func.func @transform_1(%arg0: i32) -> (i32, i32) {
    %c0_i32 = arith.constant 0 : i32
    %c0_i32_0 = arith.constant 0 : i32
    return %arg0, %c0_i32 : i32, i32
  }
  func.func @transform_2(%arg0: i32) -> (i32, i32) {
    %c0_i32 = arith.constant 0 : i32
    %c0_i32_0 = arith.constant 0 : i32
    return %arg0, %c0_i32 : i32, i32
  }
  func.func @transform_3(%arg0: i32) -> (i32, i32) {
    %c0_i32 = arith.constant 0 : i32
    %c0_i32_0 = arith.constant 0 : i32
    return %arg0, %c0_i32 : i32, i32
  }
  func.func @transform_4(%arg0: i32) -> (i32, i32) {
    %c0_i32 = arith.constant 0 : i32
    %c0_i32_0 = arith.constant 0 : i32
    %c0_i32_1 = arith.constant 0 : i32
    return %c0_i32, %c0_i32_0 : i32, i32
  }
  func.func @transform_5(%arg0: i32) -> (i32, i32) {
    %c0_i32 = arith.constant 0 : i32
    %c0_i32_0 = arith.constant 0 : i32
    %c0_i32_1 = arith.constant 0 : i32
    return %c0_i32, %c0_i32_0 : i32, i32
  }
  func.func @transform_6(%arg0: i32) -> (i32, i32) {
    %c0_i32 = arith.constant 0 : i32
    %c0_i32_0 = arith.constant 0 : i32
    return %arg0, %c0_i32 : i32, i32
  }
}

module attributes {stable_mosaic.version = 11 : i64} {
  func.func @_conv_pool_kernel(%arg0: i32, %arg1: memref<8x384xbf16, #tpu.memory_space<vmem>>, %arg2: memref<8x384xbf16, #tpu.memory_space<vmem>>, %arg3: memref<8x384xbf16, #tpu.memory_space<vmem>>, %arg4: memref<8x384xbf16, #tpu.memory_space<vmem>>, %arg5: memref<384x128xbf16, #tpu.memory_space<vmem>>, %arg6: memref<1x128xf32, #tpu.memory_space<vmem>>, %arg7: memref<8x128xbf16, #tpu.memory_space<vmem>>) attributes {dimension_semantics = [#tpu.dimension_semantics<parallel>], iteration_bounds = array<i64: 1>, scalar_prefetch = 0 : i64, scratch_operands = 0 : i64, tpu.core_type = #tpu.core_type<tc>, window_params = [{transform_indices = @transform_0, window_bounds = array<i64: 8, 384>}, {transform_indices = @transform_1, window_bounds = array<i64: 8, 384>}, {transform_indices = @transform_2, window_bounds = array<i64: 8, 384>}, {transform_indices = @transform_3, window_bounds = array<i64: 8, 384>}, {pipeline_mode = #tpu.pipeline_mode<synchronous>, transform_indices = @transform_4, window_bounds = array<i64: 384, 128>}, {pipeline_mode = #tpu.pipeline_mode<synchronous>, transform_indices = @transform_5, window_bounds = array<i64: 1, 128>}, {transform_indices = @transform_6, window_bounds = array<i64: 8, 128>}]} {
    %c0 = arith.constant 0 : index
    %c0_0 = arith.constant 0 : index
    %0 = vector.load %arg5[%c0, %c0_0] : memref<384x128xbf16, #tpu.memory_space<vmem>>, vector<384x128xbf16>
    %c0_1 = arith.constant 0 : index
    %c0_2 = arith.constant 0 : index
    %1 = vector.load %arg1[%c0_1, %c0_2] : memref<8x384xbf16, #tpu.memory_space<vmem>>, vector<8x384xbf16>
    %cst = arith.constant dense<0.000000e+00> : vector<8x128xf32>
    %2 = tpu.matmul %1, %0, %cst {dimension_numbers = #tpu.dot_dimension_numbers<[1], [0], [0], [1], [0, 0, 1, 1], [], []>} : vector<8x384xbf16>, vector<384x128xbf16>, vector<8x128xf32> -> vector<8x128xf32>
    %c0_3 = arith.constant 0 : index
    %c0_4 = arith.constant 0 : index
    %3 = vector.load %arg2[%c0_3, %c0_4] : memref<8x384xbf16, #tpu.memory_space<vmem>>, vector<8x384xbf16>
    %cst_5 = arith.constant dense<0.000000e+00> : vector<8x128xf32>
    %4 = tpu.matmul %3, %0, %cst_5 {dimension_numbers = #tpu.dot_dimension_numbers<[1], [0], [0], [1], [0, 0, 1, 1], [], []>} : vector<8x384xbf16>, vector<384x128xbf16>, vector<8x128xf32> -> vector<8x128xf32>
    %c0_6 = arith.constant 0 : index
    %c0_7 = arith.constant 0 : index
    %5 = vector.load %arg3[%c0_6, %c0_7] : memref<8x384xbf16, #tpu.memory_space<vmem>>, vector<8x384xbf16>
    %cst_8 = arith.constant dense<0.000000e+00> : vector<8x128xf32>
    %6 = tpu.matmul %5, %0, %cst_8 {dimension_numbers = #tpu.dot_dimension_numbers<[1], [0], [0], [1], [0, 0, 1, 1], [], []>} : vector<8x384xbf16>, vector<384x128xbf16>, vector<8x128xf32> -> vector<8x128xf32>
    %c0_9 = arith.constant 0 : index
    %c0_10 = arith.constant 0 : index
    %7 = vector.load %arg4[%c0_9, %c0_10] : memref<8x384xbf16, #tpu.memory_space<vmem>>, vector<8x384xbf16>
    %cst_11 = arith.constant dense<0.000000e+00> : vector<8x128xf32>
    %8 = tpu.matmul %7, %0, %cst_11 {dimension_numbers = #tpu.dot_dimension_numbers<[1], [0], [0], [1], [0, 0, 1, 1], [], []>} : vector<8x384xbf16>, vector<384x128xbf16>, vector<8x128xf32> -> vector<8x128xf32>
    %9 = arith.maximumf %2, %4 : vector<8x128xf32>
    %10 = arith.maximumf %6, %8 : vector<8x128xf32>
    %11 = arith.maximumf %9, %10 : vector<8x128xf32>
    %c0_12 = arith.constant 0 : index
    %c0_13 = arith.constant 0 : index
    %12 = vector.load %arg6[%c0_12, %c0_13] : memref<1x128xf32, #tpu.memory_space<vmem>>, vector<1x128xf32>
    %13 = vector.broadcast %12 : vector<1x128xf32> to vector<8x128xf32>
    %14 = arith.addf %11, %13 : vector<8x128xf32>
    %cst_14 = arith.constant 0.000000e+00 : f32
    %15 = vector.broadcast %cst_14 : f32 to vector<8x128xf32>
    %16 = arith.maximumf %14, %15 : vector<8x128xf32>
    %17 = arith.truncf %16 : vector<8x128xf32> to vector<8x128xbf16>
    %c0_15 = arith.constant 0 : index
    %c0_16 = arith.constant 0 : index
    %18 = vector.load %arg7[%c0_15, %c0_16] : memref<8x128xbf16, #tpu.memory_space<vmem>>, vector<8x128xbf16>
    tpu.vector_store %arg7[%c0_15, %c0_16], %17 {strides = array<i32>} : memref<8x128xbf16, #tpu.memory_space<vmem>>, vector<8x128xbf16>,
    return
  }
  func.func @transform_0(%arg0: i32) -> (i32, i32) {
    %c0_i32 = arith.constant 0 : i32
    %c0_i32_0 = arith.constant 0 : i32
    return %arg0, %c0_i32 : i32, i32
  }
  func.func @transform_1(%arg0: i32) -> (i32, i32) {
    %c0_i32 = arith.constant 0 : i32
    %c0_i32_0 = arith.constant 0 : i32
    return %arg0, %c0_i32 : i32, i32
  }
  func.func @transform_2(%arg0: i32) -> (i32, i32) {
    %c0_i32 = arith.constant 0 : i32
    %c0_i32_0 = arith.constant 0 : i32
    return %arg0, %c0_i32 : i32, i32
  }
  func.func @transform_3(%arg0: i32) -> (i32, i32) {
    %c0_i32 = arith.constant 0 : i32
    %c0_i32_0 = arith.constant 0 : i32
    return %arg0, %c0_i32 : i32, i32
  }
  func.func @transform_4(%arg0: i32) -> (i32, i32) {
    %c0_i32 = arith.constant 0 : i32
    %c0_i32_0 = arith.constant 0 : i32
    %c0_i32_1 = arith.constant 0 : i32
    return %c0_i32, %c0_i32_0 : i32, i32
  }
  func.func @transform_5(%arg0: i32) -> (i32, i32) {
    %c0_i32 = arith.constant 0 : i32
    %c0_i32_0 = arith.constant 0 : i32
    %c0_i32_1 = arith.constant 0 : i32
    return %c0_i32, %c0_i32_0 : i32, i32
  }
  func.func @transform_6(%arg0: i32) -> (i32, i32) {
    %c0_i32 = arith.constant 0 : i32
    %c0_i32_0 = arith.constant 0 : i32
    return %arg0, %c0_i32 : i32, i32
  }
}

module attributes {stable_mosaic.version = 11 : i64} {
  func.func @_mlp_kernel(%arg0: i32, %arg1: memref<8x512xbf16, #tpu.memory_space<vmem>>, %arg2: memref<512x256xbf16, #tpu.memory_space<vmem>>, %arg3: memref<1x256xf32, #tpu.memory_space<vmem>>, %arg4: memref<256x128xbf16, #tpu.memory_space<vmem>>, %arg5: memref<1x128xf32, #tpu.memory_space<vmem>>, %arg6: memref<128x128xbf16, #tpu.memory_space<vmem>>, %arg7: memref<1x128xf32, #tpu.memory_space<vmem>>, %arg8: memref<8x128xf32, #tpu.memory_space<vmem>>) attributes {dimension_semantics = [#tpu.dimension_semantics<parallel>], iteration_bounds = array<i64: 1>, scalar_prefetch = 0 : i64, scratch_operands = 0 : i64, tpu.core_type = #tpu.core_type<tc>, window_params = [{transform_indices = @transform_0, window_bounds = array<i64: 8, 512>}, {pipeline_mode = #tpu.pipeline_mode<synchronous>, transform_indices = @transform_1, window_bounds = array<i64: 512, 256>}, {pipeline_mode = #tpu.pipeline_mode<synchronous>, transform_indices = @transform_2, window_bounds = array<i64: 1, 256>}, {pipeline_mode = #tpu.pipeline_mode<synchronous>, transform_indices = @transform_3, window_bounds = array<i64: 256, 128>}, {pipeline_mode = #tpu.pipeline_mode<synchronous>, transform_indices = @transform_4, window_bounds = array<i64: 1, 128>}, {pipeline_mode = #tpu.pipeline_mode<synchronous>, transform_indices = @transform_5, window_bounds = array<i64: 128, 128>}, {pipeline_mode = #tpu.pipeline_mode<synchronous>, transform_indices = @transform_6, window_bounds = array<i64: 1, 128>}, {transform_indices = @transform_7, window_bounds = array<i64: 8, 128>}]} {
    %c0 = arith.constant 0 : index
    %c0_0 = arith.constant 0 : index
    %0 = vector.load %arg1[%c0, %c0_0] : memref<8x512xbf16, #tpu.memory_space<vmem>>, vector<8x512xbf16>
    %c0_1 = arith.constant 0 : index
    %c0_2 = arith.constant 0 : index
    %1 = vector.load %arg2[%c0_1, %c0_2] : memref<512x256xbf16, #tpu.memory_space<vmem>>, vector<512x256xbf16>
    %cst = arith.constant dense<0.000000e+00> : vector<8x256xf32>
    %2 = tpu.matmul %0, %1, %cst {dimension_numbers = #tpu.dot_dimension_numbers<[1], [0], [0], [1], [0, 0, 1, 1], [], []>} : vector<8x512xbf16>, vector<512x256xbf16>, vector<8x256xf32> -> vector<8x256xf32>
    %c0_3 = arith.constant 0 : index
    %c0_4 = arith.constant 0 : index
    %3 = vector.load %arg3[%c0_3, %c0_4] : memref<1x256xf32, #tpu.memory_space<vmem>>, vector<1x256xf32>
    %4 = vector.broadcast %3 : vector<1x256xf32> to vector<8x256xf32>
    %5 = arith.addf %2, %4 : vector<8x256xf32>
    %cst_5 = arith.constant 0.000000e+00 : f32
    %6 = vector.broadcast %cst_5 : f32 to vector<8x256xf32>
    %7 = arith.maximumf %5, %6 : vector<8x256xf32>
    %8 = arith.truncf %7 : vector<8x256xf32> to vector<8x256xbf16>
    %c0_6 = arith.constant 0 : index
    %c0_7 = arith.constant 0 : index
    %9 = vector.load %arg4[%c0_6, %c0_7] : memref<256x128xbf16, #tpu.memory_space<vmem>>, vector<256x128xbf16>
    %cst_8 = arith.constant dense<0.000000e+00> : vector<8x128xf32>
    %10 = tpu.matmul %8, %9, %cst_8 {dimension_numbers = #tpu.dot_dimension_numbers<[1], [0], [0], [1], [0, 0, 1, 1], [], []>} : vector<8x256xbf16>, vector<256x128xbf16>, vector<8x128xf32> -> vector<8x128xf32>
    %c0_9 = arith.constant 0 : index
    %c0_10 = arith.constant 0 : index
    %11 = vector.load %arg5[%c0_9, %c0_10] : memref<1x128xf32, #tpu.memory_space<vmem>>, vector<1x128xf32>
    %12 = vector.broadcast %11 : vector<1x128xf32> to vector<8x128xf32>
    %13 = arith.addf %10, %12 : vector<8x128xf32>
    %cst_11 = arith.constant 0.000000e+00 : f32
    %14 = vector.broadcast %cst_11 : f32 to vector<8x128xf32>
    %15 = arith.maximumf %13, %14 : vector<8x128xf32>
    %16 = arith.truncf %15 : vector<8x128xf32> to vector<8x128xbf16>
    %c0_12 = arith.constant 0 : index
    %c0_13 = arith.constant 0 : index
    %17 = vector.load %arg6[%c0_12, %c0_13] : memref<128x128xbf16, #tpu.memory_space<vmem>>, vector<128x128xbf16>
    %cst_14 = arith.constant dense<0.000000e+00> : vector<8x128xf32>
    %18 = tpu.matmul %16, %17, %cst_14 {dimension_numbers = #tpu.dot_dimension_numbers<[1], [0], [0], [1], [0, 0, 1, 1], [], []>} : vector<8x128xbf16>, vector<128x128xbf16>, vector<8x128xf32> -> vector<8x128xf32>
    %c0_15 = arith.constant 0 : index
    %c0_16 = arith.constant 0 : index
    %19 = vector.load %arg7[%c0_15, %c0_16] : memref<1x128xf32, #tpu.memory_space<vmem>>, vector<1x128xf32>
    %20 = vector.broadcast %19 : vector<1x128xf32> to vector<8x128xf32>
    %21 = arith.addf %18, %20 : vector<8x128xf32>
    %c0_17 = arith.constant 0 : index
    %c0_18 = arith.constant 0 : index
    %22 = vector.load %arg8[%c0_17, %c0_18] : memref<8x128xf32, #tpu.memory_space<vmem>>, vector<8x128xf32>
    tpu.vector_store %arg8[%c0_17, %c0_18], %21 {strides = array<i32>} : memref<8x128xf32, #tpu.memory_space<vmem>>, vector<8x128xf32>,
    return
  }
  func.func @transform_0(%arg0: i32) -> (i32, i32) {
    %c0_i32 = arith.constant 0 : i32
    %c0_i32_0 = arith.constant 0 : i32
    return %arg0, %c0_i32 : i32, i32
  }
  func.func @transform_1(%arg0: i32) -> (i32, i32) {
    %c0_i32 = arith.constant 0 : i32
    %c0_i32_0 = arith.constant 0 : i32
    %c0_i32_1 = arith.constant 0 : i32
    return %c0_i32, %c0_i32_0 : i32, i32
  }
  func.func @transform_2(%arg0: i32) -> (i32, i32) {
    %c0_i32 = arith.constant 0 : i32
    %c0_i32_0 = arith.constant 0 : i32
    %c0_i32_1 = arith.constant 0 : i32
    return %c0_i32, %c0_i32_0 : i32, i32
  }
  func.func @transform_3(%arg0: i32) -> (i32, i32) {
    %c0_i32 = arith.constant 0 : i32
    %c0_i32_0 = arith.constant 0 : i32
    %c0_i32_1 = arith.constant 0 : i32
    return %c0_i32, %c0_i32_0 : i32, i32
  }
  func.func @transform_4(%arg0: i32) -> (i32, i32) {
    %c0_i32 = arith.constant 0 : i32
    %c0_i32_0 = arith.constant 0 : i32
    %c0_i32_1 = arith.constant 0 : i32
    return %c0_i32, %c0_i32_0 : i32, i32
  }
  func.func @transform_5(%arg0: i32) -> (i32, i32) {
    %c0_i32 = arith.constant 0 : i32
    %c0_i32_0 = arith.constant 0 : i32
    %c0_i32_1 = arith.constant 0 : i32
    return %c0_i32, %c0_i32_0 : i32, i32
  }
  func.func @transform_6(%arg0: i32) -> (i32, i32) {
    %c0_i32 = arith.constant 0 : i32
    %c0_i32_0 = arith.constant 0 : i32
    %c0_i32_1 = arith.constant 0 : i32
    return %c0_i32, %c0_i32_0 : i32, i32
  }
  func.func @transform_7(%arg0: i32) -> (i32, i32) {
    %c0_i32 = arith.constant 0 : i32
    %c0_i32_0 = arith.constant 0 : i32
    return %arg0, %c0_i32 : i32, i32
  }
}

</mosaic_0001>

<llo_original>
// kernel: forward.4
$region0: #{forward.4}
  #allocation0 [shape = 'u32[]', space=smem, size = 0x4, offset = 0x4, fixed_abs, tag = 'smem constant byte address 0x4 - core index']
  #allocation1 [shape = 'u32[144,128]{1,0:T(1,128)}', space=vmem, size = 0x12000, scoped, tag = 'internal scratch']
  %s0 = inlined_call_operand.vmem [shape: bf16[728,128], index: 0, kind: input, shape index: {}]
  %s1 = inlined_call_operand.vmem [shape: bf16[728,128], index: 1, kind: input, shape index: {}]
  %s2 = inlined_call_operand.vmem [shape: bf16[728,128], index: 2, kind: input, shape index: {}]
  %s3 = inlined_call_operand.vmem [shape: bf16[728,128], index: 3, kind: input, shape index: {}]
  %s4 = inlined_call_operand.vmem [shape: bf16[128,128], index: 4, kind: input, shape index: {}]
  %s5 = inlined_call_operand.vmem [shape: f32[1,128], index: 5, kind: input, shape index: {}]
  %s6 = inlined_call_operand.vmem [shape: bf16[728,128], index: 6, kind: output, shape index: {}]
  %s7 = sld [smem:[#allocation0]]
  $region34: #{forward.4} parent=0
    _
  %s9 = ssub.s32 1, %s7
  %s10 = scalar_select 0, %s9, %s7
  // Predicated region
  $region2: #{forward.4} parent=0 // pred_check
    _
  $region3: #{forward.4} parent=0 // pred_check_branch
    %12 = sbr.rel (0) target = $region5
  $region4: #{forward.4} parent=0 // pred_region
    _
  $region5: #{forward.4} parent=0 // pred_fallthru
    _
  // Predicated region
  $region6: #{forward.4} parent=0 // pred_check
    _
  $region7: #{forward.4} parent=0 // pred_check_branch
    %14 = sbr.rel (0) target = $region9
  $region8: #{forward.4} parent=0 // pred_region
    _
  $region9: #{forward.4} parent=0 // pred_fallthru
    _
  // Predicated region
  $region10: #{forward.4} parent=0 // pred_check
    _
  $region11: #{forward.4} parent=0 // pred_check_branch
    %16 = sbr.rel (0) target = $region13
  $region12: #{forward.4} parent=0 // pred_region
    _
  $region13: #{forward.4} parent=0 // pred_fallthru
    _
  // Predicated region
  $region14: #{forward.4} parent=0 // pred_check
    _
  $region15: #{forward.4} parent=0 // pred_check_branch
    %18 = sbr.rel (0) target = $region17
  $region16: #{forward.4} parent=0 // pred_region
    _
  $region17: #{forward.4} parent=0 // pred_fallthru
    _
  // Predicated region
  $region18: #{forward.4} parent=0 // pred_check
    _
  $region19: #{forward.4} parent=0 // pred_check_branch
    %20 = sbr.rel (0) target = $region21
  $region20: #{forward.4} parent=0 // pred_region
    _
  $region21: #{forward.4} parent=0 // pred_fallthru
    _
  // Predicated region
  $region22: #{forward.4} parent=0 // pred_check
    _
  $region23: #{forward.4} parent=0 // pred_check_branch
    %22 = sbr.rel (0) target = $region25
  $region24: #{forward.4} parent=0 // pred_region
    _
  $region25: #{forward.4} parent=0 // pred_fallthru
    _
  %v24 = vld [vmem:[%s4] sm:$0xf]
  %v25 = vld [vmem:[%s4 + $0x4] sm:$0xf]
  %v26 = vld [vmem:[%s4 + $0x8] sm:$0xf]
  %v27 = vld [vmem:[%s4 + $0xc] sm:$0xf]
  %v28 = vld [vmem:[%s4 + $0x10] sm:$0xf]
  %v29 = vld [vmem:[%s4 + $0x14] sm:$0xf]
  %v30 = vld [vmem:[%s4 + $0x18] sm:$0xf]
  %v31 = vld [vmem:[%s4 + $0x1c] sm:$0xf]
  %v32 = vld [vmem:[%s4 + $0x20] sm:$0xf]
  %v33 = vld [vmem:[%s4 + $0x24] sm:$0xf]
  %v34 = vld [vmem:[%s4 + $0x28] sm:$0xf]
  %v35 = vld [vmem:[%s4 + $0x2c] sm:$0xf]
  %v36 = vld [vmem:[%s4 + $0x30] sm:$0xf]
  %v37 = vld [vmem:[%s4 + $0x34] sm:$0xf]
  %v38 = vld [vmem:[%s4 + $0x38] sm:$0xf]
  %v39 = vld [vmem:[%s4 + $0x3c] sm:$0xf]
  %v40 = vld [vmem:[%s0] sm:$0xf]
  %v41 = vld [vmem:[%s0 + $0x4] sm:$0xf]
  %v42 = vld [vmem:[%s0 + $0x8] sm:$0xf]
  %v43 = vld [vmem:[%s0 + $0xc] sm:$0xf]
  %v44 = vld [vmem:[%s0 + $0x10] sm:$0xf]
  %v45 = vld [vmem:[%s0 + $0x14] sm:$0xf]
  %v46 = vld [vmem:[%s0 + $0x18] sm:$0xf]
  %v47 = vld [vmem:[%s0 + $0x1c] sm:$0xf]
  %v48 = vld [vmem:[%s0 + $0x20] sm:$0xf]
  %v49 = vld [vmem:[%s0 + $0x24] sm:$0xf]
  %v50 = vld [vmem:[%s0 + $0x28] sm:$0xf]
  %v51 = vld [vmem:[%s0 + $0x2c] sm:$0xf]
  %v52 = vld [vmem:[%s0 + $0x30] sm:$0xf]
  %v53 = vld [vmem:[%s0 + $0x34] sm:$0xf]
  %v54 = vld [vmem:[%s0 + $0x38] sm:$0xf]
  %v55 = vld [vmem:[%s0 + $0x3c] sm:$0xf]
  %v56 = vld [vmem:[%s0 + $0x40] sm:$0xf]
  %v57 = vld [vmem:[%s0 + $0x44] sm:$0xf]
  %v58 = vld [vmem:[%s0 + $0x48] sm:$0xf]
  %v59 = vld [vmem:[%s0 + $0x4c] sm:$0xf]
  %v60 = vld [vmem:[%s0 + $0x50] sm:$0xf]
  %v61 = vld [vmem:[%s0 + $0x54] sm:$0xf]
  %v62 = vld [vmem:[%s0 + $0x58] sm:$0xf]
  %v63 = vld [vmem:[%s0 + $0x5c] sm:$0xf]
  %v64 = vld [vmem:[%s0 + $0x60] sm:$0xf]
  %v65 = vld [vmem:[%s0 + $0x64] sm:$0xf]
  %v66 = vld [vmem:[%s0 + $0x68] sm:$0xf]
  %v67 = vld [vmem:[%s0 + $0x6c] sm:$0xf]
  %v68 = vld [vmem:[%s0 + $0x70] sm:$0xf]
  %v69 = vld [vmem:[%s0 + $0x74] sm:$0xf]
  %v70 = vld [vmem:[%s0 + $0x78] sm:$0xf]
  %v71 = vld [vmem:[%s0 + $0x7c] sm:$0xf]
  %v72 = vld [vmem:[%s0 + $0x80] sm:$0xf]
  %v73 = vld [vmem:[%s0 + $0x84] sm:$0xf]
  %v74 = vld [vmem:[%s0 + $0x88] sm:$0xf]
  %v75 = vld [vmem:[%s0 + $0x8c] sm:$0xf]
  %v76 = vld [vmem:[%s0 + $0x90] sm:$0xf]
  %v77 = vld [vmem:[%s0 + $0x94] sm:$0xf]
  %v78 = vld [vmem:[%s0 + $0x98] sm:$0xf]
  %v79 = vld [vmem:[%s0 + $0x9c] sm:$0xf]
  %v80 = vld [vmem:[%s0 + $0xa0] sm:$0xf]
  %v81 = vld [vmem:[%s0 + $0xa4] sm:$0xf]
  %v82 = vld [vmem:[%s0 + $0xa8] sm:$0xf]
  %v83 = vld [vmem:[%s0 + $0xac] sm:$0xf]
  %v84 = vld [vmem:[%s0 + $0xb0] sm:$0xf]
  %v85 = vld [vmem:[%s0 + $0xb4] sm:$0xf]
  %v86 = vld [vmem:[%s0 + $0xb8] sm:$0xf]
  %v87 = vld [vmem:[%s0 + $0xbc] sm:$0xf]
  %v88 = vld [vmem:[%s0 + $0xc0] sm:$0xf]
  %v89 = vld [vmem:[%s0 + $0xc4] sm:$0xf]
  %v90 = vld [vmem:[%s0 + $0xc8] sm:$0xf]
  %v91 = vld [vmem:[%s0 + $0xcc] sm:$0xf]
  %v92 = vld [vmem:[%s0 + $0xd0] sm:$0xf]
  %v93 = vld [vmem:[%s0 + $0xd4] sm:$0xf]
  %v94 = vld [vmem:[%s0 + $0xd8] sm:$0xf]
  %v95 = vld [vmem:[%s0 + $0xdc] sm:$0xf]
  %v96 = vld [vmem:[%s0 + $0xe0] sm:$0xf]
  %v97 = vld [vmem:[%s0 + $0xe4] sm:$0xf]
  %v98 = vld [vmem:[%s0 + $0xe8] sm:$0xf]
  %v99 = vld [vmem:[%s0 + $0xec] sm:$0xf]
  %v100 = vld [vmem:[%s0 + $0xf0] sm:$0xf]
  %v101 = vld [vmem:[%s0 + $0xf4] sm:$0xf]
  %v102 = vld [vmem:[%s0 + $0xf8] sm:$0xf]
  %v103 = vld [vmem:[%s0 + $0xfc] sm:$0xf]
  %v104 = vld [vmem:[%s0 + $0x100] sm:$0xf]
  %v105 = vld [vmem:[%s0 + $0x104] sm:$0xf]
  %v106 = vld [vmem:[%s0 + $0x108] sm:$0xf]
  %v107 = vld [vmem:[%s0 + $0x10c] sm:$0xf]
  %v108 = vld [vmem:[%s0 + $0x110] sm:$0xf]
  %v109 = vld [vmem:[%s0 + $0x114] sm:$0xf]
  %v110 = vld [vmem:[%s0 + $0x118] sm:$0xf]
  %v111 = vld [vmem:[%s0 + $0x11c] sm:$0xf]
  %v112 = vld [vmem:[%s0 + $0x120] sm:$0xf]
  %v113 = vld [vmem:[%s0 + $0x124] sm:$0xf]
  %v114 = vld [vmem:[%s0 + $0x128] sm:$0xf]
  %v115 = vld [vmem:[%s0 + $0x12c] sm:$0xf]
  %v116 = vld [vmem:[%s0 + $0x130] sm:$0xf]
  %v117 = vld [vmem:[%s0 + $0x134] sm:$0xf]
  %v118 = vld [vmem:[%s0 + $0x138] sm:$0xf]
  %v119 = vld [vmem:[%s0 + $0x13c] sm:$0xf]
  %v120 = vld [vmem:[%s0 + $0x140] sm:$0xf]
  %v121 = vld [vmem:[%s0 + $0x144] sm:$0xf]
  %v122 = vld [vmem:[%s0 + $0x148] sm:$0xf]
  %v123 = vld [vmem:[%s0 + $0x14c] sm:$0xf]
  %v124 = vld [vmem:[%s0 + $0x150] sm:$0xf]
  %v125 = vld [vmem:[%s0 + $0x154] sm:$0xf]
  %v126 = vld [vmem:[%s0 + $0x158] sm:$0xf]
  %v127 = vld [vmem:[%s0 + $0x15c] sm:$0xf]
  %v128 = vld [vmem:[%s0 + $0x160] sm:$0xf]
  %v129 = vld [vmem:[%s0 + $0x164] sm:$0xf]
  %v130 = vld [vmem:[%s0 + $0x168] sm:$0xf]
  %v222 = vunpack.c.l.b16 %v40
  %v223 = vunpack.c.l.b16 %v41
  %v224 = vunpack.c.l.b16 %v42
  %v225 = vunpack.c.l.b16 %v43
  %v226 = vunpack.c.l.b16 %v44
  %v227 = vunpack.c.l.b16 %v45
  %v228 = vunpack.c.l.b16 %v46
  %v229 = vunpack.c.l.b16 %v47
  %v230 = vunpack.c.l.b16 %v48
  %v231 = vunpack.c.l.b16 %v49
  %v232 = vunpack.c.l.b16 %v50
  %v233 = vunpack.c.l.b16 %v51
  %v234 = vunpack.c.l.b16 %v52
  %v235 = vunpack.c.l.b16 %v53
  %v236 = vunpack.c.l.b16 %v54
  %v237 = vunpack.c.l.b16 %v55
  %v238 = vunpack.c.l.b16 %v56
  %v239 = vunpack.c.l.b16 %v57
  %v240 = vunpack.c.l.b16 %v58
  %v241 = vunpack.c.l.b16 %v59
  %v242 = vunpack.c.l.b16 %v60
  %v243 = vunpack.c.l.b16 %v61
  %v244 = vunpack.c.l.b16 %v62
  %v245 = vunpack.c.l.b16 %v63
  %v246 = vunpack.c.l.b16 %v64
  %v247 = vunpack.c.l.b16 %v65
  %v248 = vunpack.c.l.b16 %v66
  %v249 = vunpack.c.l.b16 %v67
  %v250 = vunpack.c.l.b16 %v68
  %v251 = vunpack.c.l.b16 %v69
  %v252 = vunpack.c.l.b16 %v70
  %v253 = vunpack.c.l.b16 %v71
  %v254 = vunpack.c.l.b16 %v72
  %v255 = vunpack.c.l.b16 %v73
  %v256 = vunpack.c.l.b16 %v74
  %v257 = vunpack.c.l.b16 %v75
  %v258 = vunpack.c.l.b16 %v76
  %v259 = vunpack.c.l.b16 %v77
  %v260 = vunpack.c.l.b16 %v78
  %v261 = vunpack.c.l.b16 %v79
  %v262 = vunpack.c.l.b16 %v80
  %v263 = vunpack.c.l.b16 %v81
  %v264 = vunpack.c.l.b16 %v82
  %v265 = vunpack.c.l.b16 %v83
  %v266 = vunpack.c.l.b16 %v84
  %v267 = vunpack.c.l.b16 %v85
  %v268 = vunpack.c.l.b16 %v86
  %v269 = vunpack.c.l.b16 %v87
  %v270 = vunpack.c.l.b16 %v88
  %v271 = vunpack.c.l.b16 %v89
  %v272 = vunpack.c.l.b16 %v90
  %v273 = vunpack.c.l.b16 %v91
  %v274 = vunpack.c.l.b16 %v92
  %v275 = vunpack.c.l.b16 %v93
  %v276 = vunpack.c.l.b16 %v94
  %v277 = vunpack.c.l.b16 %v95
  %v278 = vunpack.c.l.b16 %v96
  %v279 = vunpack.c.l.b16 %v97
  %v280 = vunpack.c.l.b16 %v98
  %v281 = vunpack.c.l.b16 %v99
  %v282 = vunpack.c.l.b16 %v100
  %v283 = vunpack.c.l.b16 %v101
  %v284 = vunpack.c.l.b16 %v102
  %v285 = vunpack.c.l.b16 %v103
  %v286 = vunpack.c.l.b16 %v104
  %v287 = vunpack.c.l.b16 %v105
  %v288 = vunpack.c.l.b16 %v106
  %v289 = vunpack.c.l.b16 %v107
  %v290 = vunpack.c.l.b16 %v108
  %v291 = vunpack.c.l.b16 %v109
  %v292 = vunpack.c.l.b16 %v110
  %v293 = vunpack.c.l.b16 %v111
  %v294 = vunpack.c.l.b16 %v112
  %v295 = vunpack.c.l.b16 %v113
  %v296 = vunpack.c.l.b16 %v114
  %v297 = vunpack.c.l.b16 %v115
  %v298 = vunpack.c.l.b16 %v116
  %v299 = vunpack.c.l.b16 %v117
  %v300 = vunpack.c.l.b16 %v118
  %v301 = vunpack.c.l.b16 %v119
  %v302 = vunpack.c.l.b16 %v120
  %v303 = vunpack.c.l.b16 %v121
  %v304 = vunpack.c.l.b16 %v122
  %v305 = vunpack.c.l.b16 %v123
  %v306 = vunpack.c.l.b16 %v124
  %v307 = vunpack.c.l.b16 %v125
  %v308 = vunpack.c.l.b16 %v126
  %v309 = vunpack.c.l.b16 %v127
  %v310 = vunpack.c.l.b16 %v128
  %v311 = vunpack.c.l.b16 %v129
  %v312 = vunpack.c.l.b16 %v130
  %v313 = vpack.c.b16 %v223, %v222
  %v314 = vpack.c.b16 %v225, %v224
  %v315 = vpack.c.b16 %v227, %v226
  %v316 = vpack.c.b16 %v229, %v228
  %v317 = vpack.c.b16 %v231, %v230
  %v318 = vpack.c.b16 %v233, %v232
  %v319 = vpack.c.b16 %v235, %v234
  %v320 = vpack.c.b16 %v237, %v236
  %v321 = vpack.c.b16 %v239, %v238
  %v322 = vpack.c.b16 %v241, %v240
  %v323 = vpack.c.b16 %v243, %v242
  %v324 = vpack.c.b16 %v245, %v244
  %v325 = vpack.c.b16 %v247, %v246
  %v326 = vpack.c.b16 %v249, %v248
  %v327 = vpack.c.b16 %v251, %v250
  %v328 = vpack.c.b16 %v253, %v252
  %v329 = vpack.c.b16 %v255, %v254
  %v330 = vpack.c.b16 %v257, %v256
  %v331 = vpack.c.b16 %v259, %v258
  %v332 = vpack.c.b16 %v261, %v260
  %v333 = vpack.c.b16 %v263, %v262
  %v334 = vpack.c.b16 %v265, %v264
  %v335 = vpack.c.b16 %v267, %v266
  %v336 = vpack.c.b16 %v269, %v268
  %v337 = vpack.c.b16 %v271, %v270
  %v338 = vpack.c.b16 %v273, %v272
  %v339 = vpack.c.b16 %v275, %v274
  %v340 = vpack.c.b16 %v277, %v276
  %v341 = vpack.c.b16 %v279, %v278
  %v342 = vpack.c.b16 %v281, %v280
  %v343 = vpack.c.b16 %v283, %v282
  %v344 = vpack.c.b16 %v285, %v284
  %v345 = vpack.c.b16 %v287, %v286
  %v346 = vpack.c.b16 %v289, %v288
  %v347 = vpack.c.b16 %v291, %v290
  %v348 = vpack.c.b16 %v293, %v292
  %v349 = vpack.c.b16 %v295, %v294
  %v350 = vpack.c.b16 %v297, %v296
  %v351 = vpack.c.b16 %v299, %v298
  %v352 = vpack.c.b16 %v301, %v300
  %v353 = vpack.c.b16 %v303, %v302
  %v354 = vpack.c.b16 %v305, %v304
  %v355 = vpack.c.b16 %v307, %v306
  %v356 = vpack.c.b16 %v309, %v308
  %v357 = vpack.c.b16 %v311, %v310
  %v358 = vpack.c.b16 %v312, %v312
  %v421 = vunpack.c.l.b16 %v24
  %v422 = vunpack.c.l.b16 %v25
  %v423 = vunpack.c.l.b16 %v26
  %v424 = vunpack.c.l.b16 %v27
  %v425 = vunpack.c.l.b16 %v28
  %v426 = vunpack.c.l.b16 %v29
  %v427 = vunpack.c.l.b16 %v30
  %v428 = vunpack.c.l.b16 %v31
  %v429 = vunpack.c.l.b16 %v32
  %v430 = vunpack.c.l.b16 %v33
  %v431 = vunpack.c.l.b16 %v34
  %v432 = vunpack.c.l.b16 %v35
  %v433 = vunpack.c.l.b16 %v36
  %v434 = vunpack.c.l.b16 %v37
  %v435 = vunpack.c.l.b16 %v38
  %v436 = vunpack.c.l.b16 %v39
  %v437 = vpack.c.b16 %v422, %v421
  %v438 = vpack.c.b16 %v424, %v423
  %v439 = vpack.c.b16 %v426, %v425
  %v440 = vpack.c.b16 %v428, %v427
  %v441 = vpack.c.b16 %v430, %v429
  %v442 = vpack.c.b16 %v432, %v431
  %v443 = vpack.c.b16 %v434, %v433
  %v444 = vpack.c.b16 %v436, %v435
  %453 = vmatprep.subr.bf16.mxu0 0
  %454 = vmatpush1.bf16.msra.mxu0 %v437
  %455 = vmatprep.subr.bf16.mxu0 0
  %456 = vmatpush1.bf16.msra.mxu0 %v438
  %457 = vmatprep.subr.bf16.mxu0 0
  %458 = vmatpush1.bf16.msra.mxu0 %v439
  %459 = vmatprep.subr.bf16.mxu0 0
  %460 = vmatpush1.bf16.msra.mxu0 %v440
  %461 = vmatprep.subr.bf16.mxu0 0
  %462 = vmatpush1.bf16.msra.mxu0 %v441
  %463 = vmatprep.subr.bf16.mxu0 0
  %464 = vmatpush1.bf16.msra.mxu0 %v442
  %465 = vmatprep.subr.bf16.mxu0 0
  %466 = vmatpush1.bf16.msra.mxu0 %v443
  %467 = vmatprep.subr.bf16.mxu0 0
  %468 = vmatpush1.bf16.msra.mxu0 %v444
  %469 = vmatprep.subr.bf16.mxu0 0
  %470 = vmatpush1.bf16.msra.mxu0 0
  %471 = vmatprep.subr.bf16.mxu0 0
  %472 = vmatpush1.bf16.msra.mxu0 0
  %473 = vmatprep.subr.bf16.mxu0 0
  %474 = vmatpush1.bf16.msra.mxu0 0
  %475 = vmatprep.subr.bf16.mxu0 0
  %476 = vmatpush1.bf16.msra.mxu0 0
  %477 = vmatprep.subr.bf16.mxu0 0
  %478 = vmatpush1.bf16.msra.mxu0 0
  %479 = vmatprep.subr.bf16.mxu0 0
  %480 = vmatpush1.bf16.msra.mxu0 0
  %481 = vmatprep.subr.bf16.mxu0 0
  %482 = vmatpush1.bf16.msra.mxu0 0
  %483 = vmatprep.subr.bf16.mxu0 0
  %484 = vmatpush1.bf16.msra.mxu0 0
  %485 = vmatprep.mubr.bf16.mxu0 0
  %486 = vmatmul.mubr.bf16.gmra.mrb[0].mxu0 %v313
  %v487 = vpop.f32.mrb[0].mxu0
  %v488 = vadd.f32 0.0, %v487
  %v489 = vpop.f32.mrb[0].mxu0
  %v490 = vpop.f32.mrb[0].mxu0
  %v491 = vadd.f32 0.0, %v490
  %v492 = vpop.f32.mrb[0].mxu0
  %493 = vmatprep.mubr.bf16.mxu0 0
  %494 = vmatmul.mubr.bf16.gmra.mrb[0].mxu0 %v314
  %v495 = vpop.f32.mrb[0].mxu0
  %v496 = vadd.f32 0.0, %v495
  %v497 = vpop.f32.mrb[0].mxu0
  %v498 = vpop.f32.mrb[0].mxu0
  %v499 = vadd.f32 0.0, %v498
  %v500 = vpop.f32.mrb[0].mxu0
  %501 = vmatprep.mubr.bf16.mxu0 0
  %502 = vmatmul.mubr.bf16.gmra.mrb[0].mxu0 %v315
  %v503 = vpop.f32.mrb[0].mxu0
  %v504 = vadd.f32 0.0, %v503
  %v505 = vpop.f32.mrb[0].mxu0
  %v506 = vpop.f32.mrb[0].mxu0
  %v507 = vadd.f32 0.0, %v506
  %v508 = vpop.f32.mrb[0].mxu0
  %509 = vmatprep.mubr.bf16.mxu0 0
  %510 = vmatmul.mubr.bf16.gmra.mrb[0].mxu0 %v316
  %v511 = vpop.f32.mrb[0].mxu0
  %v512 = vadd.f32 0.0, %v511
  %v513 = vpop.f32.mrb[0].mxu0
  %v514 = vpop.f32.mrb[0].mxu0
  %v515 = vadd.f32 0.0, %v514
  %v516 = vpop.f32.mrb[0].mxu0
  %517 = vmatprep.mubr.bf16.mxu0 0
  %518 = vmatmul.mubr.bf16.gmra.mrb[0].mxu0 %v317
  %v519 = vpop.f32.mrb[0].mxu0
  %v520 = vadd.f32 0.0, %v519
  %v521 = vpop.f32.mrb[0].mxu0
  %v522 = vpop.f32.mrb[0].mxu0
  %v523 = vadd.f32 0.0, %v522
  %v524 = vpop.f32.mrb[0].mxu0
  %525 = vmatprep.mubr.bf16.mxu0 0
  %526 = vmatmul.mubr.bf16.gmra.mrb[0].mxu0 %v318
  %v527 = vpop.f32.mrb[0].mxu0
  %v528 = vadd.f32 0.0, %v527
  %v529 = vpop.f32.mrb[0].mxu0
  %v530 = vpop.f32.mrb[0].mxu0
  %v531 = vadd.f32 0.0, %v530
  %v532 = vpop.f32.mrb[0].mxu0
  %533 = vmatprep.mubr.bf16.mxu0 0
  %534 = vmatmul.mubr.bf16.gmra.mrb[0].mxu0 %v319
  %v535 = vpop.f32.mrb[0].mxu0
  %v536 = vadd.f32 0.0, %v535
  %v537 = vpop.f32.mrb[0].mxu0
  %v538 = vpop.f32.mrb[0].mxu0
  %v539 = vadd.f32 0.0, %v538
  %v540 = vpop.f32.mrb[0].mxu0
  %541 = vmatprep.mubr.bf16.mxu0 0
  %542 = vmatmul.mubr.bf16.gmra.mrb[0].mxu0 %v320
  %v543 = vpop.f32.mrb[0].mxu0
  %v544 = vadd.f32 0.0, %v543
  %v545 = vpop.f32.mrb[0].mxu0
  %v546 = vpop.f32.mrb[0].mxu0
  %v547 = vadd.f32 0.0, %v546
  %v548 = vpop.f32.mrb[0].mxu0
  %549 = vmatprep.mubr.bf16.mxu0 0
  %550 = vmatmul.mubr.bf16.gmra.mrb[0].mxu0 %v321
  %v551 = vpop.f32.mrb[0].mxu0
  %v552 = vadd.f32 0.0, %v551
  %v553 = vpop.f32.mrb[0].mxu0
  %v554 = vpop.f32.mrb[0].mxu0
  %v555 = vadd.f32 0.0, %v554
  %v556 = vpop.f32.mrb[0].mxu0
  %557 = vmatprep.mubr.bf16.mxu0 0
  %558 = vmatmul.mubr.bf16.gmra.mrb[0].mxu0 %v322
  %v559 = vpop.f32.mrb[0].mxu0
  %v560 = vadd.f32 0.0, %v559
  %v561 = vpop.f32.mrb[0].mxu0
  %v562 = vpop.f32.mrb[0].mxu0
  %v563 = vadd.f32 0.0, %v562
  %v564 = vpop.f32.mrb[0].mxu0
  %565 = vmatprep.mubr.bf16.mxu0 0
  %566 = vmatmul.mubr.bf16.gmra.mrb[0].mxu0 %v323
  %v567 = vpop.f32.mrb[0].mxu0
  %v568 = vadd.f32 0.0, %v567
  %v569 = vpop.f32.mrb[0].mxu0
  %v570 = vpop.f32.mrb[0].mxu0
  %v571 = vadd.f32 0.0, %v570
  %v572 = vpop.f32.mrb[0].mxu0
  %573 = vmatprep.mubr.bf16.mxu0 0
  %574 = vmatmul.mubr.bf16.gmra.mrb[0].mxu0 %v324
  %v575 = vpop.f32.mrb[0].mxu0
  %v576 = vadd.f32 0.0, %v575
  %v577 = vpop.f32.mrb[0].mxu0
  %v578 = vpop.f32.mrb[0].mxu0
  %v579 = vadd.f32 0.0, %v578
  %v580 = vpop.f32.mrb[0].mxu0
  %581 = vmatprep.mubr.bf16.mxu0 0
  %582 = vmatmul.mubr.bf16.gmra.mrb[0].mxu0 %v325
  %v583 = vpop.f32.mrb[0].mxu0
  %v584 = vadd.f32 0.0, %v583
  %v585 = vpop.f32.mrb[0].mxu0
  %v586 = vpop.f32.mrb[0].mxu0
  %v587 = vadd.f32 0.0, %v586
  %v588 = vpop.f32.mrb[0].mxu0
  %589 = vmatprep.mubr.bf16.mxu0 0
  %590 = vmatmul.mubr.bf16.gmra.mrb[0].mxu0 %v326
  %v591 = vpop.f32.mrb[0].mxu0
  %v592 = vadd.f32 0.0, %v591
  %v593 = vpop.f32.mrb[0].mxu0
  %v594 = vpop.f32.mrb[0].mxu0
  %v595 = vadd.f32 0.0, %v594
  %v596 = vpop.f32.mrb[0].mxu0
  %597 = vmatprep.mubr.bf16.mxu0 0
  %598 = vmatmul.mubr.bf16.gmra.mrb[0].mxu0 %v327
  %v599 = vpop.f32.mrb[0].mxu0
  %v600 = vadd.f32 0.0, %v599
  %v601 = vpop.f32.mrb[0].mxu0
  %v602 = vpop.f32.mrb[0].mxu0
  %v603 = vadd.f32 0.0, %v602
  %v604 = vpop.f32.mrb[0].mxu0
  %605 = vmatprep.mubr.bf16.mxu0 0
  %606 = vmatmul.mubr.bf16.gmra.mrb[0].mxu0 %v328
  %v607 = vpop.f32.mrb[0].mxu0
  %v608 = vadd.f32 0.0, %v607
  %v609 = vpop.f32.mrb[0].mxu0
  %v610 = vpop.f32.mrb[0].mxu0
  %v611 = vadd.f32 0.0, %v610
  %v612 = vpop.f32.mrb[0].mxu0
  %613 = vmatprep.mubr.bf16.mxu0 0
  %614 = vmatmul.mubr.bf16.gmra.mrb[0].mxu0 %v329
  %v615 = vpop.f32.mrb[0].mxu0
  %v616 = vadd.f32 0.0, %v615
  %v617 = vpop.f32.mrb[0].mxu0
  %v618 = vpop.f32.mrb[0].mxu0
  %v619 = vadd.f32 0.0, %v618
  %v620 = vpop.f32.mrb[0].mxu0
  %621 = vmatprep.mubr.bf16.mxu0 0
  %622 = vmatmul.mubr.bf16.gmra.mrb[0].mxu0 %v330
  %v623 = vpop.f32.mrb[0].mxu0
  %v624 = vadd.f32 0.0, %v623
  %v625 = vpop.f32.mrb[0].mxu0
  %v626 = vpop.f32.mrb[0].mxu0
  %v627 = vadd.f32 0.0, %v626
  %v628 = vpop.f32.mrb[0].mxu0
  %629 = vmatprep.mubr.bf16.mxu0 0
  %630 = vmatmul.mubr.bf16.gmra.mrb[0].mxu0 %v331
  %v631 = vpop.f32.mrb[0].mxu0
  %v632 = vadd.f32 0.0, %v631
  %v633 = vpop.f32.mrb[0].mxu0
  %v634 = vpop.f32.mrb[0].mxu0
  %v635 = vadd.f32 0.0, %v634
  %v636 = vpop.f32.mrb[0].mxu0
  %637 = vmatprep.mubr.bf16.mxu0 0
  %638 = vmatmul.mubr.bf16.gmra.mrb[0].mxu0 %v332
  %v639 = vpop.f32.mrb[0].mxu0
  %v640 = vadd.f32 0.0, %v639
  %v641 = vpop.f32.mrb[0].mxu0
  %v642 = vpop.f32.mrb[0].mxu0
  %v643 = vadd.f32 0.0, %v642
  %v644 = vpop.f32.mrb[0].mxu0
  %645 = vmatprep.mubr.bf16.mxu0 0
  %646 = vmatmul.mubr.bf16.gmra.mrb[0].mxu0 %v333
  %v647 = vpop.f32.mrb[0].mxu0
  %v648 = vadd.f32 0.0, %v647
  %v649 = vpop.f32.mrb[0].mxu0
  %v650 = vpop.f32.mrb[0].mxu0
  %v651 = vadd.f32 0.0, %v650
  %v652 = vpop.f32.mrb[0].mxu0
  %653 = vmatprep.mubr.bf16.mxu0 0
  %654 = vmatmul.mubr.bf16.gmra.mrb[0].mxu0 %v334
  %v655 = vpop.f32.mrb[0].mxu0
  %v656 = vadd.f32 0.0, %v655
  %v657 = vpop.f32.mrb[0].mxu0
  %v658 = vpop.f32.mrb[0].mxu0
  %v659 = vadd.f32 0.0, %v658
  %v660 = vpop.f32.mrb[0].mxu0
  %661 = vmatprep.mubr.bf16.mxu0 0
  %662 = vmatmul.mubr.bf16.gmra.mrb[0].mxu0 %v335
  %v663 = vpop.f32.mrb[0].mxu0
  %v664 = vadd.f32 0.0, %v663
  %v665 = vpop.f32.mrb[0].mxu0
  %v666 = vpop.f32.mrb[0].mxu0
  %v667 = vadd.f32 0.0, %v666
  %v668 = vpop.f32.mrb[0].mxu0
  %669 = vmatprep.mubr.bf16.mxu0 0
  %670 = vmatmul.mubr.bf16.gmra.mrb[0].mxu0 %v336
  %v671 = vpop.f32.mrb[0].mxu0
  %v672 = vadd.f32 0.0, %v671
  %v673 = vpop.f32.mrb[0].mxu0
  %v674 = vpop.f32.mrb[0].mxu0
  %v675 = vadd.f32 0.0, %v674
  %v676 = vpop.f32.mrb[0].mxu0
  %677 = vmatprep.mubr.bf16.mxu0 0
  %678 = vmatmul.mubr.bf16.gmra.mrb[0].mxu0 %v337
  %v679 = vpop.f32.mrb[0].mxu0
  %v680 = vadd.f32 0.0, %v679
  %v681 = vpop.f32.mrb[0].mxu0
  %v682 = vpop.f32.mrb[0].mxu0
  %v683 = vadd.f32 0.0, %v682
  %v684 = vpop.f32.mrb[0].mxu0
  %685 = vmatprep.mubr.bf16.mxu0 0
  %686 = vmatmul.mubr.bf16.gmra.mrb[0].mxu0 %v338
  %v687 = vpop.f32.mrb[0].mxu0
  %v688 = vadd.f32 0.0, %v687
  %v689 = vpop.f32.mrb[0].mxu0
  %v690 = vpop.f32.mrb[0].mxu0
  %v691 = vadd.f32 0.0, %v690
  %v692 = vpop.f32.mrb[0].mxu0
  %693 = vmatprep.mubr.bf16.mxu0 0
  %694 = vmatmul.mubr.bf16.gmra.mrb[0].mxu0 %v339
  %v695 = vpop.f32.mrb[0].mxu0
  %v696 = vadd.f32 0.0, %v695
  %v697 = vpop.f32.mrb[0].mxu0
  %v698 = vpop.f32.mrb[0].mxu0
  %v699 = vadd.f32 0.0, %v698
  %v700 = vpop.f32.mrb[0].mxu0
  %701 = vmatprep.mubr.bf16.mxu0 0
  %702 = vmatmul.mubr.bf16.gmra.mrb[0].mxu0 %v340
  %v703 = vpop.f32.mrb[0].mxu0
  %v704 = vadd.f32 0.0, %v703
  %v705 = vpop.f32.mrb[0].mxu0
  %v706 = vpop.f32.mrb[0].mxu0
  %v707 = vadd.f32 0.0, %v706
  %v708 = vpop.f32.mrb[0].mxu0
  %709 = vmatprep.mubr.bf16.mxu0 0
  %710 = vmatmul.mubr.bf16.gmra.mrb[0].mxu0 %v341
  %v711 = vpop.f32.mrb[0].mxu0
  %v712 = vadd.f32 0.0, %v711
  %v713 = vpop.f32.mrb[0].mxu0
  %v714 = vpop.f32.mrb[0].mxu0
  %v715 = vadd.f32 0.0, %v714
  %v716 = vpop.f32.mrb[0].mxu0
  %717 = vmatprep.mubr.bf16.mxu0 0
  %718 = vmatmul.mubr.bf16.gmra.mrb[0].mxu0 %v342
  %v719 = vpop.f32.mrb[0].mxu0
  %v720 = vadd.f32 0.0, %v719
  %v721 = vpop.f32.mrb[0].mxu0
  %v722 = vpop.f32.mrb[0].mxu0
  %v723 = vadd.f32 0.0, %v722
  %v724 = vpop.f32.mrb[0].mxu0
  %725 = vmatprep.mubr.bf16.mxu0 0
  %726 = vmatmul.mubr.bf16.gmra.mrb[0].mxu0 %v343
  %v727 = vpop.f32.mrb[0].mxu0
  %v728 = vadd.f32 0.0, %v727
  %v729 = vpop.f32.mrb[0].mxu0
  %v730 = vpop.f32.mrb[0].mxu0
  %v731 = vadd.f32 0.0, %v730
  %v732 = vpop.f32.mrb[0].mxu0
  %733 = vmatprep.mubr.bf16.mxu0 0
  %734 = vmatmul.mubr.bf16.gmra.mrb[0].mxu0 %v344
  %v735 = vpop.f32.mrb[0].mxu0
  %v736 = vadd.f32 0.0, %v735
  %v737 = vpop.f32.mrb[0].mxu0
  %v738 = vpop.f32.mrb[0].mxu0
  %v739 = vadd.f32 0.0, %v738
  %v740 = vpop.f32.mrb[0].mxu0
  %741 = vmatprep.mubr.bf16.mxu0 0
  %742 = vmatmul.mubr.bf16.gmra.mrb[0].mxu0 %v345
  %v743 = vpop.f32.mrb[0].mxu0
  %v744 = vadd.f32 0.0, %v743
  %v745 = vpop.f32.mrb[0].mxu0
  %v746 = vpop.f32.mrb[0].mxu0
  %v747 = vadd.f32 0.0, %v746
  %v748 = vpop.f32.mrb[0].mxu0
  %749 = vmatprep.mubr.bf16.mxu0 0
  %750 = vmatmul.mubr.bf16.gmra.mrb[0].mxu0 %v346
  %v751 = vpop.f32.mrb[0].mxu0
  %v752 = vadd.f32 0.0, %v751
  %v753 = vpop.f32.mrb[0].mxu0
  %v754 = vpop.f32.mrb[0].mxu0
  %v755 = vadd.f32 0.0, %v754
  %v756 = vpop.f32.mrb[0].mxu0
  %757 = vmatprep.mubr.bf16.mxu0 0
  %758 = vmatmul.mubr.bf16.gmra.mrb[0].mxu0 %v347
  %v759 = vpop.f32.mrb[0].mxu0
  %v760 = vadd.f32 0.0, %v759
  %v761 = vpop.f32.mrb[0].mxu0
  %v762 = vpop.f32.mrb[0].mxu0
  %v763 = vadd.f32 0.0, %v762
  %v764 = vpop.f32.mrb[0].mxu0
  %765 = vmatprep.mubr.bf16.mxu0 0
  %766 = vmatmul.mubr.bf16.gmra.mrb[0].mxu0 %v348
  %v767 = vpop.f32.mrb[0].mxu0
  %v768 = vadd.f32 0.0, %v767
  %v769 = vpop.f32.mrb[0].mxu0
  %v770 = vpop.f32.mrb[0].mxu0
  %v771 = vadd.f32 0.0, %v770
  %v772 = vpop.f32.mrb[0].mxu0
  %773 = vmatprep.mubr.bf16.mxu0 0
  %774 = vmatmul.mubr.bf16.gmra.mrb[0].mxu0 %v349
  %v775 = vpop.f32.mrb[0].mxu0
  %v776 = vadd.f32 0.0, %v775
  %v777 = vpop.f32.mrb[0].mxu0
  %v778 = vpop.f32.mrb[0].mxu0
  %v779 = vadd.f32 0.0, %v778
  %v780 = vpop.f32.mrb[0].mxu0
  %781 = vmatprep.mubr.bf16.mxu0 0
  %782 = vmatmul.mubr.bf16.gmra.mrb[0].mxu0 %v350
  %v783 = vpop.f32.mrb[0].mxu0
  %v784 = vadd.f32 0.0, %v783
  %v785 = vpop.f32.mrb[0].mxu0
  %v786 = vpop.f32.mrb[0].mxu0
  %v787 = vadd.f32 0.0, %v786
  %v788 = vpop.f32.mrb[0].mxu0
  %789 = vmatprep.mubr.bf16.mxu0 0
  %790 = vmatmul.mubr.bf16.gmra.mrb[0].mxu0 %v351
  %v791 = vpop.f32.mrb[0].mxu0
  %v792 = vadd.f32 0.0, %v791
  %v793 = vpop.f32.mrb[0].mxu0
  %v794 = vpop.f32.mrb[0].mxu0
  %v795 = vadd.f32 0.0, %v794
  %v796 = vpop.f32.mrb[0].mxu0
  %797 = vmatprep.mubr.bf16.mxu0 0
  %798 = vmatmul.mubr.bf16.gmra.mrb[0].mxu0 %v352
  %v799 = vpop.f32.mrb[0].mxu0
  %v800 = vadd.f32 0.0, %v799
  %v801 = vpop.f32.mrb[0].mxu0
  %v802 = vpop.f32.mrb[0].mxu0
  %v803 = vadd.f32 0.0, %v802
  %v804 = vpop.f32.mrb[0].mxu0
  %805 = vmatprep.mubr.bf16.mxu0 0
  %806 = vmatmul.mubr.bf16.gmra.mrb[0].mxu0 %v353
  %v807 = vpop.f32.mrb[0].mxu0
  %v808 = vadd.f32 0.0, %v807
  %v809 = vpop.f32.mrb[0].mxu0
  %v810 = vpop.f32.mrb[0].mxu0
  %v811 = vadd.f32 0.0, %v810
  %v812 = vpop.f32.mrb[0].mxu0
  %813 = vmatprep.mubr.bf16.mxu0 0
  %814 = vmatmul.mubr.bf16.gmra.mrb[0].mxu0 %v354
  %v815 = vpop.f32.mrb[0].mxu0
  %v816 = vadd.f32 0.0, %v815
  %v817 = vpop.f32.mrb[0].mxu0
  %v818 = vpop.f32.mrb[0].mxu0
  %v819 = vadd.f32 0.0, %v818
  %v820 = vpop.f32.mrb[0].mxu0
  %821 = vmatprep.mubr.bf16.mxu0 0
  %822 = vmatmul.mubr.bf16.gmra.mrb[0].mxu0 %v355
  %v823 = vpop.f32.mrb[0].mxu0
  %v824 = vadd.f32 0.0, %v823
  %v825 = vpop.f32.mrb[0].mxu0
  %v826 = vpop.f32.mrb[0].mxu0
  %v827 = vadd.f32 0.0, %v826
  %v828 = vpop.f32.mrb[0].mxu0
  %829 = vmatprep.mubr.bf16.mxu0 0
  %830 = vmatmul.mubr.bf16.gmra.mrb[0].mxu0 %v356
  %v831 = vpop.f32.mrb[0].mxu0
  %v832 = vadd.f32 0.0, %v831
  %v833 = vpop.f32.mrb[0].mxu0
  %v834 = vpop.f32.mrb[0].mxu0
  %v835 = vadd.f32 0.0, %v834
  %v836 = vpop.f32.mrb[0].mxu0
  %837 = vmatprep.mubr.bf16.mxu0 0
  %838 = vmatmul.mubr.bf16.gmra.mrb[0].mxu0 %v357
  %v839 = vpop.f32.mrb[0].mxu0
  %v840 = vadd.f32 0.0, %v839
  %v841 = vpop.f32.mrb[0].mxu0
  %v842 = vpop.f32.mrb[0].mxu0
  %v843 = vadd.f32 0.0, %v842
  %v844 = vpop.f32.mrb[0].mxu0
  %845 = vmatprep.mubr.bf16.mxu0 0
  %846 = vmatmul.mubr.bf16.gmra.mrb[0].mxu0 %v358
  %v847 = vpop.f32.mrb[0].mxu0
  %v848 = vadd.f32 0.0, %v847
  %v849 = vpop.f32.mrb[0].mxu0
  %v850 = vpop.f32.mrb[0].mxu0
  %v851 = vpop.f32.mrb[0].mxu0
  %852 = vdwg.mxu0
  %v853 = vld [vmem:[%s1] sm:$0xf]
  %v854 = vld [vmem:[%s1 + $0x4] sm:$0xf]
  %v855 = vld [vmem:[%s1 + $0x8] sm:$0xf]
  %v856 = vld [vmem:[%s1 + $0xc] sm:$0xf]
  %v857 = vld [vmem:[%s1 + $0x10] sm:$0xf]
  %v858 = vld [vmem:[%s1 + $0x14] sm:$0xf]
  %v859 = vld [vmem:[%s1 + $0x18] sm:$0xf]
  %v860 = vld [vmem:[%s1 + $0x1c] sm:$0xf]
  %v861 = vld [vmem:[%s1 + $0x20] sm:$0xf]
  %v862 = vld [vmem:[%s1 + $0x24] sm:$0xf]
  %v863 = vld [vmem:[%s1 + $0x28] sm:$0xf]
  %v864 = vld [vmem:[%s1 + $0x2c] sm:$0xf]
  %v865 = vld [vmem:[%s1 + $0x30] sm:$0xf]
  %v866 = vld [vmem:[%s1 + $0x34] sm:$0xf]
  %v867 = vld [vmem:[%s1 + $0x38] sm:$0xf]
  %v868 = vld [vmem:[%s1 + $0x3c] sm:$0xf]
  %v869 = vld [vmem:[%s1 + $0x40] sm:$0xf]
  %v870 = vld [vmem:[%s1 + $0x44] sm:$0xf]
  %v871 = vld [vmem:[%s1 + $0x48] sm:$0xf]
  %v872 = vld [vmem:[%s1 + $0x4c] sm:$0xf]
  %v873 = vld [vmem:[%s1 + $0x50] sm:$0xf]
  %v874 = vld [vmem:[%s1 + $0x54] sm:$0xf]
  %v875 = vld [vmem:[%s1 + $0x58] sm:$0xf]
  %v876 = vld [vmem:[%s1 + $0x5c] sm:$0xf]
  %v877 = vld [vmem:[%s1 + $0x60] sm:$0xf]
  %v878 = vld [vmem:[%s1 + $0x64] sm:$0xf]
  %v879 = vld [vmem:[%s1 + $0x68] sm:$0xf]
  %v880 = vld [vmem:[%s1 + $0x6c] sm:$0xf]
  %v881 = vld [vmem:[%s1 + $0x70] sm:$0xf]
  %v882 = vld [vmem:[%s1 + $0x74] sm:$0xf]
  %v883 = vld [vmem:[%s1 + $0x78] sm:$0xf]
  %v884 = vld [vmem:[%s1 + $0x7c] sm:$0xf]
  %v885 = vld [vmem:[%s1 + $0x80] sm:$0xf]
  %v886 = vld [vmem:[%s1 + $0x84] sm:$0xf]
  %v887 = vld [vmem:[%s1 + $0x88] sm:$0xf]
  %v888 = vld [vmem:[%s1 + $0x8c] sm:$0xf]
  %v889 = vld [vmem:[%s1 + $0x90] sm:$0xf]
  %v890 = vld [vmem:[%s1 + $0x94] sm:$0xf]
  %v891 = vld [vmem:[%s1 + $0x98] sm:$0xf]
  %v892 = vld [vmem:[%s1 + $0x9c] sm:$0xf]
  %v893 = vld [vmem:[%s1 + $0xa0] sm:$0xf]
  %v894 = vld [vmem:[%s1 + $0xa4] sm:$0xf]
  %v895 = vld [vmem:[%s1 + $0xa8] sm:$0xf]
  %v896 = vld [vmem:[%s1 + $0xac] sm:$0xf]
  %v897 = vld [vmem:[%s1 + $0xb0] sm:$0xf]
  %v898 = vld [vmem:[%s1 + $0xb4] sm:$0xf]
  %v899 = vld [vmem:[%s1 + $0xb8] sm:$0xf]
  %v900 = vld [vmem:[%s1 + $0xbc] sm:$0xf]
  %v901 = vld [vmem:[%s1 + $0xc0] sm:$0xf]
  %v902 = vld [vmem:[%s1 + $0xc4] sm:$0xf]
  %v903 = vld [vmem:[%s1 + $0xc8] sm:$0xf]
  %v904 = vld [vmem:[%s1 + $0xcc] sm:$0xf]
  %v905 = vld [vmem:[%s1 + $0xd0] sm:$0xf]
  %v906 = vld [vmem:[%s1 + $0xd4] sm:$0xf]
  %v907 = vld [vmem:[%s1 + $0xd8] sm:$0xf]
  %v908 = vld [vmem:[%s1 + $0xdc] sm:$0xf]
  %v909 = vld [vmem:[%s1 + $0xe0] sm:$0xf]
  %v910 = vld [vmem:[%s1 + $0xe4] sm:$0xf]
  %v911 = vld [vmem:[%s1 + $0xe8] sm:$0xf]
  %v912 = vld [vmem:[%s1 + $0xec] sm:$0xf]
  %v913 = vld [vmem:[%s1 + $0xf0] sm:$0xf]
  %v914 = vld [vmem:[%s1 + $0xf4] sm:$0xf]
  %v915 = vld [vmem:[%s1 + $0xf8] sm:$0xf]
  %v916 = vld [vmem:[%s1 + $0xfc] sm:$0xf]
  %v917 = vld [vmem:[%s1 + $0x100] sm:$0xf]
  %v918 = vld [vmem:[%s1 + $0x104] sm:$0xf]
  %v919 = vld [vmem:[%s1 + $0x108] sm:$0xf]
  %v920 = vld [vmem:[%s1 + $0x10c] sm:$0xf]
  %v921 = vld [vmem:[%s1 + $0x110] sm:$0xf]
  %v922 = vld [vmem:[%s1 + $0x114] sm:$0xf]
  %v923 = vld [vmem:[%s1 + $0x118] sm:$0xf]
  %v924 = vld [vmem:[%s1 + $0x11c] sm:$0xf]
  %v925 = vld [vmem:[%s1 + $0x120] sm:$0xf]
  %v926 = vld [vmem:[%s1 + $0x124] sm:$0xf]
  %v927 = vld [vmem:[%s1 + $0x128] sm:$0xf]
  %v928 = vld [vmem:[%s1 + $0x12c] sm:$0xf]
  %v929 = vld [vmem:[%s1 + $0x130] sm:$0xf]
  %v930 = vld [vmem:[%s1 + $0x134] sm:$0xf]
  %v931 = vld [vmem:[%s1 + $0x138] sm:$0xf]
  %v932 = vld [vmem:[%s1 + $0x13c] sm:$0xf]
  %v933 = vld [vmem:[%s1 + $0x140] sm:$0xf]
  %v934 = vld [vmem:[%s1 + $0x144] sm:$0xf]
  %v935 = vld [vmem:[%s1 + $0x148] sm:$0xf]
  %v936 = vld [vmem:[%s1 + $0x14c] sm:$0xf]
  %v937 = vld [vmem:[%s1 + $0x150] sm:$0xf]
  %v938 = vld [vmem:[%s1 + $0x154] sm:$0xf]
  %v939 = vld [vmem:[%s1 + $0x158] sm:$0xf]
  %v940 = vld [vmem:[%s1 + $0x15c] sm:$0xf]
  %v941 = vld [vmem:[%s1 + $0x160] sm:$0xf]
  %v942 = vld [vmem:[%s1 + $0x164] sm:$0xf]
  %v943 = vld [vmem:[%s1 + $0x168] sm:$0xf]
  %v1035 = vunpack.c.l.b16 %v853
  %v1036 = vunpack.c.l.b16 %v854
  %v1037 = vunpack.c.l.b16 %v855
  %v1038 = vunpack.c.l.b16 %v856
  %v1039 = vunpack.c.l.b16 %v857
  %v1040 = vunpack.c.l.b16 %v858
  %v1041 = vunpack.c.l.b16 %v859
  %v1042 = vunpack.c.l.b16 %v860
  %v1043 = vunpack.c.l.b16 %v861
  %v1044 = vunpack.c.l.b16 %v862
  %v1045 = vunpack.c.l.b16 %v863
  %v1046 = vunpack.c.l.b16 %v864
  %v1047 = vunpack.c.l.b16 %v865
  %v1048 = vunpack.c.l.b16 %v866
  %v1049 = vunpack.c.l.b16 %v867
  %v1050 = vunpack.c.l.b16 %v868
  %v1051 = vunpack.c.l.b16 %v869
  %v1052 = vunpack.c.l.b16 %v870
  %v1053 = vunpack.c.l.b16 %v871
  %v1054 = vunpack.c.l.b16 %v872
  %v1055 = vunpack.c.l.b16 %v873
  %v1056 = vunpack.c.l.b16 %v874
  %v1057 = vunpack.c.l.b16 %v875
  %v1058 = vunpack.c.l.b16 %v876
  %v1059 = vunpack.c.l.b16 %v877
  %v1060 = vunpack.c.l.b16 %v878
  %v1061 = vunpack.c.l.b16 %v879
  %v1062 = vunpack.c.l.b16 %v880
  %v1063 = vunpack.c.l.b16 %v881
  %v1064 = vunpack.c.l.b16 %v882
  %v1065 = vunpack.c.l.b16 %v883
  %v1066 = vunpack.c.l.b16 %v884
  %v1067 = vunpack.c.l.b16 %v885
  %v1068 = vunpack.c.l.b16 %v886
  %v1069 = vunpack.c.l.b16 %v887
  %v1070 = vunpack.c.l.b16 %v888
  %v1071 = vunpack.c.l.b16 %v889
  %v1072 = vunpack.c.l.b16 %v890
  %v1073 = vunpack.c.l.b16 %v891
  %v1074 = vunpack.c.l.b16 %v892
  %v1075 = vunpack.c.l.b16 %v893
  %v1076 = vunpack.c.l.b16 %v894
  %v1077 = vunpack.c.l.b16 %v895
  %v1078 = vunpack.c.l.b16 %v896
  %v1079 = vunpack.c.l.b16 %v897
  %v1080 = vunpack.c.l.b16 %v898
  %v1081 = vunpack.c.l.b16 %v899
  %v1082 = vunpack.c.l.b16 %v900
  %v1083 = vunpack.c.l.b16 %v901
  %v1084 = vunpack.c.l.b16 %v902
  %v1085 = vunpack.c.l.b16 %v903
  %v1086 = vunpack.c.l.b16 %v904
  %v1087 = vunpack.c.l.b16 %v905
  %v1088 = vunpack.c.l.b16 %v906
  %v1089 = vunpack.c.l.b16 %v907
  %v1090 = vunpack.c.l.b16 %v908
  %v1091 = vunpack.c.l.b16 %v909
  %v1092 = vunpack.c.l.b16 %v910
  %v1093 = vunpack.c.l.b16 %v911
  %v1094 = vunpack.c.l.b16 %v912
  %v1095 = vunpack.c.l.b16 %v913
  %v1096 = vunpack.c.l.b16 %v914
  %v1097 = vunpack.c.l.b16 %v915
  %v1098 = vunpack.c.l.b16 %v916
  %v1099 = vunpack.c.l.b16 %v917
  %v1100 = vunpack.c.l.b16 %v918
  %v1101 = vunpack.c.l.b16 %v919
  %v1102 = vunpack.c.l.b16 %v920
  %v1103 = vunpack.c.l.b16 %v921
  %v1104 = vunpack.c.l.b16 %v922
  %v1105 = vunpack.c.l.b16 %v923
  %v1106 = vunpack.c.l.b16 %v924
  %v1107 = vunpack.c.l.b16 %v925
  %v1108 = vunpack.c.l.b16 %v926
  %v1109 = vunpack.c.l.b16 %v927
  %v1110 = vunpack.c.l.b16 %v928
  %v1111 = vunpack.c.l.b16 %v929
  %v1112 = vunpack.c.l.b16 %v930
  %v1113 = vunpack.c.l.b16 %v931
  %v1114 = vunpack.c.l.b16 %v932
  %v1115 = vunpack.c.l.b16 %v933
  %v1116 = vunpack.c.l.b16 %v934
  %v1117 = vunpack.c.l.b16 %v935
  %v1118 = vunpack.c.l.b16 %v936
  %v1119 = vunpack.c.l.b16 %v937
  %v1120 = vunpack.c.l.b16 %v938
  %v1121 = vunpack.c.l.b16 %v939
  %v1122 = vunpack.c.l.b16 %v940
  %v1123 = vunpack.c.l.b16 %v941
  %v1124 = vunpack.c.l.b16 %v942
  %v1125 = vunpack.c.l.b16 %v943
  %v1126 = vpack.c.b16 %v1036, %v1035
  %v1127 = vpack.c.b16 %v1038, %v1037
  %v1128 = vpack.c.b16 %v1040, %v1039
  %v1129 = vpack.c.b16 %v1042, %v1041
  %v1130 = vpack.c.b16 %v1044, %v1043
  %v1131 = vpack.c.b16 %v1046, %v1045
  %v1132 = vpack.c.b16 %v1048, %v1047
  %v1133 = vpack.c.b16 %v1050, %v1049
  %v1134 = vpack.c.b16 %v1052, %v1051
  %v1135 = vpack.c.b16 %v1054, %v1053
  %v1136 = vpack.c.b16 %v1056, %v1055
  %v1137 = vpack.c.b16 %v1058, %v1057
  %v1138 = vpack.c.b16 %v1060, %v1059
  %v1139 = vpack.c.b16 %v1062, %v1061
  %v1140 = vpack.c.b16 %v1064, %v1063
  %v1141 = vpack.c.b16 %v1066, %v1065
  %v1142 = vpack.c.b16 %v1068, %v1067
  %v1143 = vpack.c.b16 %v1070, %v1069
  %v1144 = vpack.c.b16 %v1072, %v1071
  %v1145 = vpack.c.b16 %v1074, %v1073
  %v1146 = vpack.c.b16 %v1076, %v1075
  %v1147 = vpack.c.b16 %v1078, %v1077
  %v1148 = vpack.c.b16 %v1080, %v1079
  %v1149 = vpack.c.b16 %v1082, %v1081
  %v1150 = vpack.c.b16 %v1084, %v1083
  %v1151 = vpack.c.b16 %v1086, %v1085
  %v1152 = vpack.c.b16 %v1088, %v1087
  %v1153 = vpack.c.b16 %v1090, %v1089
  %v1154 = vpack.c.b16 %v1092, %v1091
  %v1155 = vpack.c.b16 %v1094, %v1093
  %v1156 = vpack.c.b16 %v1096, %v1095
  %v1157 = vpack.c.b16 %v1098, %v1097
  %v1158 = vpack.c.b16 %v1100, %v1099
  %v1159 = vpack.c.b16 %v1102, %v1101
  %v1160 = vpack.c.b16 %v1104, %v1103
  %v1161 = vpack.c.b16 %v1106, %v1105
  %v1162 = vpack.c.b16 %v1108, %v1107
  %v1163 = vpack.c.b16 %v1110, %v1109
  %v1164 = vpack.c.b16 %v1112, %v1111
  %v1165 = vpack.c.b16 %v1114, %v1113
  %v1166 = vpack.c.b16 %v1116, %v1115
  %v1167 = vpack.c.b16 %v1118, %v1117
  %v1168 = vpack.c.b16 %v1120, %v1119
  %v1169 = vpack.c.b16 %v1122, %v1121
  %v1170 = vpack.c.b16 %v1124, %v1123
  %v1171 = vpack.c.b16 %v1125, %v1125
  %1218 = vmatprep.subr.bf16.mxu0 0
  %1219 = vmatpush1.bf16.msra.mxu0 %v437
  %1220 = vmatprep.subr.bf16.mxu0 0
  %1221 = vmatpush1.bf16.msra.mxu0 %v438
  %1222 = vmatprep.subr.bf16.mxu0 0
  %1223 = vmatpush1.bf16.msra.mxu0 %v439
  %1224 = vmatprep.subr.bf16.mxu0 0
  %1225 = vmatpush1.bf16.msra.mxu0 %v440
  %1226 = vmatprep.subr.bf16.mxu0 0
  %1227 = vmatpush1.bf16.msra.mxu0 %v441
  %1228 = vmatprep.subr.bf16.mxu0 0
  %1229 = vmatpush1.bf16.msra.mxu0 %v442
  %1230 = vmatprep.subr.bf16.mxu0 0
  %1231 = vmatpush1.bf16.msra.mxu0 %v443
  %1232 = vmatprep.subr.bf16.mxu0 0
  %1233 = vmatpush1.bf16.msra.mxu0 %v444
  %1234 = vmatprep.subr.bf16.mxu0 0
  %1235 = vmatpush1.bf16.msra.mxu0 0
  %1236 = vmatprep.subr.bf16.mxu0 0
  %1237 = vmatpush1.bf16.msra.mxu0 0
  %1238 = vmatprep.subr.bf16.mxu0 0
  %1239 = vmatpush1.bf16.msra.mxu0 0
  %1240 = vmatprep.subr.bf16.mxu0 0
  %1241 = vmatpush1.bf16.msra.mxu0 0
  %1242 = vmatprep.subr.bf16.mxu0 0
  %1243 = vmatpush1.bf16.msra.mxu0 0
  %1244 = vmatprep.subr.bf16.mxu0 0
  %1245 = vmatpush1.bf16.msra.mxu0 0
  %1246 = vmatprep.subr.bf16.mxu0 0
  %1247 = vmatpush1.bf16.msra.mxu0 0
  %1248 = vmatprep.subr.bf16.mxu0 0
  %1249 = vmatpush1.bf16.msra.mxu0 0
  %1250 = vmatprep.mubr.bf16.mxu0 0
  %1251 = vmatmul.mubr.bf16.gmra.mrb[0].mxu0 %v1126
  %v1252 = vpop.f32.mrb[0].mxu0
  %v1253 = vadd.f32 0.0, %v1252
  %v1254 = vpop.f32.mrb[0].mxu0
  %v1255 = vpop.f32.mrb[0].mxu0
  %v1256 = vadd.f32 0.0, %v1255
  %v1257 = vpop.f32.mrb[0].mxu0
  %1258 = vmatprep.mubr.bf16.mxu0 0
  %1259 = vmatmul.mubr.bf16.gmra.mrb[0].mxu0 %v1127
  %v1260 = vpop.f32.mrb[0].mxu0
  %v1261 = vadd.f32 0.0, %v1260
  %v1262 = vpop.f32.mrb[0].mxu0
  %v1263 = vpop.f32.mrb[0].mxu0
  %v1264 = vadd.f32 0.0, %v1263
  %v1265 = vpop.f32.mrb[0].mxu0
  %1266 = vmatprep.mubr.bf16.mxu0 0
  %1267 = vmatmul.mubr.bf16.gmra.mrb[0].mxu0 %v1128
  %v1268 = vpop.f32.mrb[0].mxu0
  %v1269 = vadd.f32 0.0, %v1268
  %v1270 = vpop.f32.mrb[0].mxu0
  %v1271 = vpop.f32.mrb[0].mxu0
  %v1272 = vadd.f32 0.0, %v1271
  %v1273 = vpop.f32.mrb[0].mxu0
  %1274 = vmatprep.mubr.bf16.mxu0 0
  %1275 = vmatmul.mubr.bf16.gmra.mrb[0].mxu0 %v1129
  %v1276 = vpop.f32.mrb[0].mxu0
  %v1277 = vadd.f32 0.0, %v1276
  %v1278 = vpop.f32.mrb[0].mxu0
  %v1279 = vpop.f32.mrb[0].mxu0
  %v1280 = vadd.f32 0.0, %v1279
  %v1281 = vpop.f32.mrb[0].mxu0
  %1282 = vmatprep.mubr.bf16.mxu0 0
  %1283 = vmatmul.mubr.bf16.gmra.mrb[0].mxu0 %v1130
  %v1284 = vpop.f32.mrb[0].mxu0
  %v1285 = vadd.f32 0.0, %v1284
  %v1286 = vpop.f32.mrb[0].mxu0
  %v1287 = vpop.f32.mrb[0].mxu0
  %v1288 = vadd.f32 0.0, %v1287
  %v1289 = vpop.f32.mrb[0].mxu0
  %1290 = vmatprep.mubr.bf16.mxu0 0
  %1291 = vmatmul.mubr.bf16.gmra.mrb[0].mxu0 %v1131
  %v1292 = vpop.f32.mrb[0].mxu0
  %v1293 = vadd.f32 0.0, %v1292
  %v1294 = vpop.f32.mrb[0].mxu0
  %v1295 = vpop.f32.mrb[0].mxu0
  %v1296 = vadd.f32 0.0, %v1295
  %v1297 = vpop.f32.mrb[0].mxu0
  %1298 = vmatprep.mubr.bf16.mxu0 0
  %1299 = vmatmul.mubr.bf16.gmra.mrb[0].mxu0 %v1132
  %v1300 = vpop.f32.mrb[0].mxu0
  %v1301 = vadd.f32 0.0, %v1300
  %v1302 = vpop.f32.mrb[0].mxu0
  %v1303 = vpop.f32.mrb[0].mxu0
  %v1304 = vadd.f32 0.0, %v1303
  %v1305 = vpop.f32.mrb[0].mxu0
  %1306 = vmatprep.mubr.bf16.mxu0 0
  %1307 = vmatmul.mubr.bf16.gmra.mrb[0].mxu0 %v1133
  %v1308 = vpop.f32.mrb[0].mxu0
  %v1309 = vadd.f32 0.0, %v1308
  %v1310 = vpop.f32.mrb[0].mxu0
  %v1311 = vpop.f32.mrb[0].mxu0
  %v1312 = vadd.f32 0.0, %v1311
  %v1313 = vpop.f32.mrb[0].mxu0
  %1314 = vmatprep.mubr.bf16.mxu0 0
  %1315 = vmatmul.mubr.bf16.gmra.mrb[0].mxu0 %v1134
  %v1316 = vpop.f32.mrb[0].mxu0
  %v1317 = vadd.f32 0.0, %v1316
  %v1318 = vpop.f32.mrb[0].mxu0
  %v1319 = vpop.f32.mrb[0].mxu0
  %v1320 = vadd.f32 0.0, %v1319
  %v1321 = vpop.f32.mrb[0].mxu0
  %1322 = vmatprep.mubr.bf16.mxu0 0
  %1323 = vmatmul.mubr.bf16.gmra.mrb[0].mxu0 %v1135
  %v1324 = vpop.f32.mrb[0].mxu0
  %v1325 = vadd.f32 0.0, %v1324
  %v1326 = vpop.f32.mrb[0].mxu0
  %v1327 = vpop.f32.mrb[0].mxu0
  %v1328 = vadd.f32 0.0, %v1327
  %v1329 = vpop.f32.mrb[0].mxu0
  %1330 = vmatprep.mubr.bf16.mxu0 0
  %1331 = vmatmul.mubr.bf16.gmra.mrb[0].mxu0 %v1136
  %v1332 = vpop.f32.mrb[0].mxu0
  %v1333 = vadd.f32 0.0, %v1332
  %v1334 = vpop.f32.mrb[0].mxu0
  %v1335 = vpop.f32.mrb[0].mxu0
  %v1336 = vadd.f32 0.0, %v1335
  %v1337 = vpop.f32.mrb[0].mxu0
  %1338 = vmatprep.mubr.bf16.mxu0 0
  %1339 = vmatmul.mubr.bf16.gmra.mrb[0].mxu0 %v1137
  %v1340 = vpop.f32.mrb[0].mxu0
  %v1341 = vadd.f32 0.0, %v1340
  %v1342 = vpop.f32.mrb[0].mxu0
  %v1343 = vpop.f32.mrb[0].mxu0
  %v1344 = vadd.f32 0.0, %v1343
  %v1345 = vpop.f32.mrb[0].mxu0
  %1346 = vmatprep.mubr.bf16.mxu0 0
  %1347 = vmatmul.mubr.bf16.gmra.mrb[0].mxu0 %v1138
  %v1348 = vpop.f32.mrb[0].mxu0
  %v1349 = vadd.f32 0.0, %v1348
  %v1350 = vpop.f32.mrb[0].mxu0
  %v1351 = vpop.f32.mrb[0].mxu0
  %v1352 = vadd.f32 0.0, %v1351
  %v1353 = vpop.f32.mrb[0].mxu0
  %1354 = vmatprep.mubr.bf16.mxu0 0
  %1355 = vmatmul.mubr.bf16.gmra.mrb[0].mxu0 %v1139
  %v1356 = vpop.f32.mrb[0].mxu0
  %v1357 = vadd.f32 0.0, %v1356
  %v1358 = vpop.f32.mrb[0].mxu0
  %v1359 = vpop.f32.mrb[0].mxu0
  %v1360 = vadd.f32 0.0, %v1359
  %v1361 = vpop.f32.mrb[0].mxu0
  %1362 = vmatprep.mubr.bf16.mxu0 0
  %1363 = vmatmul.mubr.bf16.gmra.mrb[0].mxu0 %v1140
  %v1364 = vpop.f32.mrb[0].mxu0
  %v1365 = vadd.f32 0.0, %v1364
  %v1366 = vpop.f32.mrb[0].mxu0
  %v1367 = vpop.f32.mrb[0].mxu0
  %v1368 = vadd.f32 0.0, %v1367
  %v1369 = vpop.f32.mrb[0].mxu0
  %1370 = vmatprep.mubr.bf16.mxu0 0
  %1371 = vmatmul.mubr.bf16.gmra.mrb[0].mxu0 %v1141
  %v1372 = vpop.f32.mrb[0].mxu0
  %v1373 = vadd.f32 0.0, %v1372
  %v1374 = vpop.f32.mrb[0].mxu0
  %v1375 = vpop.f32.mrb[0].mxu0
  %v1376 = vadd.f32 0.0, %v1375
  %v1377 = vpop.f32.mrb[0].mxu0
  %1378 = vmatprep.mubr.bf16.mxu0 0
  %1379 = vmatmul.mubr.bf16.gmra.mrb[0].mxu0 %v1142
  %v1380 = vpop.f32.mrb[0].mxu0
  %v1381 = vadd.f32 0.0, %v1380
  %v1382 = vpop.f32.mrb[0].mxu0
  %v1383 = vpop.f32.mrb[0].mxu0
  %v1384 = vadd.f32 0.0, %v1383
  %v1385 = vpop.f32.mrb[0].mxu0
  %1386 = vmatprep.mubr.bf16.mxu0 0
  %1387 = vmatmul.mubr.bf16.gmra.mrb[0].mxu0 %v1143
  %v1388 = vpop.f32.mrb[0].mxu0
  %v1389 = vadd.f32 0.0, %v1388
  %v1390 = vpop.f32.mrb[0].mxu0
  %v1391 = vpop.f32.mrb[0].mxu0
  %v1392 = vadd.f32 0.0, %v1391
  %v1393 = vpop.f32.mrb[0].mxu0
  %1394 = vmatprep.mubr.bf16.mxu0 0
  %1395 = vmatmul.mubr.bf16.gmra.mrb[0].mxu0 %v1144
  %v1396 = vpop.f32.mrb[0].mxu0
  %v1397 = vadd.f32 0.0, %v1396
  %v1398 = vpop.f32.mrb[0].mxu0
  %v1399 = vpop.f32.mrb[0].mxu0
  %v1400 = vadd.f32 0.0, %v1399
  %v1401 = vpop.f32.mrb[0].mxu0
  %1402 = vmatprep.mubr.bf16.mxu0 0
  %1403 = vmatmul.mubr.bf16.gmra.mrb[0].mxu0 %v1145
  %v1404 = vpop.f32.mrb[0].mxu0
  %v1405 = vadd.f32 0.0, %v1404
  %v1406 = vpop.f32.mrb[0].mxu0
  %v1407 = vpop.f32.mrb[0].mxu0
  %v1408 = vadd.f32 0.0, %v1407
  %v1409 = vpop.f32.mrb[0].mxu0
  %1410 = vmatprep.mubr.bf16.mxu0 0
  %1411 = vmatmul.mubr.bf16.gmra.mrb[0].mxu0 %v1146
  %v1412 = vpop.f32.mrb[0].mxu0
  %v1413 = vadd.f32 0.0, %v1412
  %v1414 = vpop.f32.mrb[0].mxu0
  %v1415 = vpop.f32.mrb[0].mxu0
  %v1416 = vadd.f32 0.0, %v1415
  %v1417 = vpop.f32.mrb[0].mxu0
  %1418 = vmatprep.mubr.bf16.mxu0 0
  %1419 = vmatmul.mubr.bf16.gmra.mrb[0].mxu0 %v1147
  %v1420 = vpop.f32.mrb[0].mxu0
  %v1421 = vadd.f32 0.0, %v1420
  %v1422 = vpop.f32.mrb[0].mxu0
  %v1423 = vpop.f32.mrb[0].mxu0
  %v1424 = vadd.f32 0.0, %v1423
  %v1425 = vpop.f32.mrb[0].mxu0
  %1426 = vmatprep.mubr.bf16.mxu0 0
  %1427 = vmatmul.mubr.bf16.gmra.mrb[0].mxu0 %v1148
  %v1428 = vpop.f32.mrb[0].mxu0
  %v1429 = vadd.f32 0.0, %v1428
  %v1430 = vpop.f32.mrb[0].mxu0
  %v1431 = vpop.f32.mrb[0].mxu0
  %v1432 = vadd.f32 0.0, %v1431
  %v1433 = vpop.f32.mrb[0].mxu0
  %1434 = vmatprep.mubr.bf16.mxu0 0
  %1435 = vmatmul.mubr.bf16.gmra.mrb[0].mxu0 %v1149
  %v1436 = vpop.f32.mrb[0].mxu0
  %v1437 = vadd.f32 0.0, %v1436
  %v1438 = vpop.f32.mrb[0].mxu0
  %v1439 = vpop.f32.mrb[0].mxu0
  %v1440 = vadd.f32 0.0, %v1439
  %v1441 = vpop.f32.mrb[0].mxu0
  %1442 = vmatprep.mubr.bf16.mxu0 0
  %1443 = vmatmul.mubr.bf16.gmra.mrb[0].mxu0 %v1150
  %v1444 = vpop.f32.mrb[0].mxu0
  %v1445 = vadd.f32 0.0, %v1444
  %v1446 = vpop.f32.mrb[0].mxu0
  %v1447 = vpop.f32.mrb[0].mxu0
  %v1448 = vadd.f32 0.0, %v1447
  %v1449 = vpop.f32.mrb[0].mxu0
  %1450 = vmatprep.mubr.bf16.mxu0 0
  %1451 = vmatmul.mubr.bf16.gmra.mrb[0].mxu0 %v1151
  %v1452 = vpop.f32.mrb[0].mxu0
  %v1453 = vadd.f32 0.0, %v1452
  %v1454 = vpop.f32.mrb[0].mxu0
  %v1455 = vpop.f32.mrb[0].mxu0
  %v1456 = vadd.f32 0.0, %v1455
  %v1457 = vpop.f32.mrb[0].mxu0
  %1458 = vmatprep.mubr.bf16.mxu0 0
  %1459 = vmatmul.mubr.bf16.gmra.mrb[0].mxu0 %v1152
  %v1460 = vpop.f32.mrb[0].mxu0
  %v1461 = vadd.f32 0.0, %v1460
  %v1462 = vpop.f32.mrb[0].mxu0
  %v1463 = vpop.f32.mrb[0].mxu0
  %v1464 = vadd.f32 0.0, %v1463
  %v1465 = vpop.f32.mrb[0].mxu0
  %1466 = vmatprep.mubr.bf16.mxu0 0
  %1467 = vmatmul.mubr.bf16.gmra.mrb[0].mxu0 %v1153
  %v1468 = vpop.f32.mrb[0].mxu0
  %v1469 = vadd.f32 0.0, %v1468
  %v1470 = vpop.f32.mrb[0].mxu0
  %v1471 = vpop.f32.mrb[0].mxu0
  %v1472 = vadd.f32 0.0, %v1471
  %v1473 = vpop.f32.mrb[0].mxu0
  %1474 = vmatprep.mubr.bf16.mxu0 0
  %1475 = vmatmul.mubr.bf16.gmra.mrb[0].mxu0 %v1154
  %v1476 = vpop.f32.mrb[0].mxu0
  %v1477 = vadd.f32 0.0, %v1476
  %v1478 = vpop.f32.mrb[0].mxu0
  %v1479 = vpop.f32.mrb[0].mxu0
  %v1480 = vadd.f32 0.0, %v1479
  %v1481 = vpop.f32.mrb[0].mxu0
  %1482 = vmatprep.mubr.bf16.mxu0 0
  %1483 = vmatmul.mubr.bf16.gmra.mrb[0].mxu0 %v1155
  %v1484 = vpop.f32.mrb[0].mxu0
  %v1485 = vadd.f32 0.0, %v1484
  %v1486 = vpop.f32.mrb[0].mxu0
  %v1487 = vpop.f32.mrb[0].mxu0
  %v1488 = vadd.f32 0.0, %v1487
  %v1489 = vpop.f32.mrb[0].mxu0
  %1490 = vmatprep.mubr.bf16.mxu0 0
  %1491 = vmatmul.mubr.bf16.gmra.mrb[0].mxu0 %v1156
  %v1492 = vpop.f32.mrb[0].mxu0
  %v1493 = vadd.f32 0.0, %v1492
  %v1494 = vpop.f32.mrb[0].mxu0
  %v1495 = vpop.f32.mrb[0].mxu0
  %v1496 = vadd.f32 0.0, %v1495
  %v1497 = vpop.f32.mrb[0].mxu0
  %1498 = vmatprep.mubr.bf16.mxu0 0
  %1499 = vmatmul.mubr.bf16.gmra.mrb[0].mxu0 %v1157
  %v1500 = vpop.f32.mrb[0].mxu0
  %v1501 = vadd.f32 0.0, %v1500
  %v1502 = vpop.f32.mrb[0].mxu0
  %v1503 = vpop.f32.mrb[0].mxu0
  %v1504 = vadd.f32 0.0, %v1503
  %v1505 = vpop.f32.mrb[0].mxu0
  %1506 = vmatprep.mubr.bf16.mxu0 0
  %1507 = vmatmul.mubr.bf16.gmra.mrb[0].mxu0 %v1158
  %v1508 = vpop.f32.mrb[0].mxu0
  %v1509 = vadd.f32 0.0, %v1508
  %v1510 = vpop.f32.mrb[0].mxu0
  %v1511 = vpop.f32.mrb[0].mxu0
  %v1512 = vadd.f32 0.0, %v1511
  %v1513 = vpop.f32.mrb[0].mxu0
  %1514 = vmatprep.mubr.bf16.mxu0 0
  %1515 = vmatmul.mubr.bf16.gmra.mrb[0].mxu0 %v1159
  %v1516 = vpop.f32.mrb[0].mxu0
  %v1517 = vadd.f32 0.0, %v1516
  %v1518 = vpop.f32.mrb[0].mxu0
  %v1519 = vpop.f32.mrb[0].mxu0
  %v1520 = vadd.f32 0.0, %v1519
  %v1521 = vpop.f32.mrb[0].mxu0
  %1522 = vmatprep.mubr.bf16.mxu0 0
  %1523 = vmatmul.mubr.bf16.gmra.mrb[0].mxu0 %v1160
  %v1524 = vpop.f32.mrb[0].mxu0
  %v1525 = vadd.f32 0.0, %v1524
  %v1526 = vpop.f32.mrb[0].mxu0
  %v1527 = vpop.f32.mrb[0].mxu0
  %v1528 = vadd.f32 0.0, %v1527
  %v1529 = vpop.f32.mrb[0].mxu0
  %1530 = vmatprep.mubr.bf16.mxu0 0
  %1531 = vmatmul.mubr.bf16.gmra.mrb[0].mxu0 %v1161
  %v1532 = vpop.f32.mrb[0].mxu0
  %v1533 = vadd.f32 0.0, %v1532
  %v1534 = vpop.f32.mrb[0].mxu0
  %v1535 = vpop.f32.mrb[0].mxu0
  %v1536 = vadd.f32 0.0, %v1535
  %v1537 = vpop.f32.mrb[0].mxu0
  %1538 = vmatprep.mubr.bf16.mxu0 0
  %1539 = vmatmul.mubr.bf16.gmra.mrb[0].mxu0 %v1162
  %v1540 = vpop.f32.mrb[0].mxu0
  %v1541 = vadd.f32 0.0, %v1540
  %v1542 = vpop.f32.mrb[0].mxu0
  %v1543 = vpop.f32.mrb[0].mxu0
  %v1544 = vadd.f32 0.0, %v1543
  %v1545 = vpop.f32.mrb[0].mxu0
  %1546 = vmatprep.mubr.bf16.mxu0 0
  %1547 = vmatmul.mubr.bf16.gmra.mrb[0].mxu0 %v1163
  %v1548 = vpop.f32.mrb[0].mxu0
  %v1549 = vadd.f32 0.0, %v1548
  %v1550 = vpop.f32.mrb[0].mxu0
  %v1551 = vpop.f32.mrb[0].mxu0
  %v1552 = vadd.f32 0.0, %v1551
  %v1553 = vpop.f32.mrb[0].mxu0
  %1554 = vmatprep.mubr.bf16.mxu0 0
  %1555 = vmatmul.mubr.bf16.gmra.mrb[0].mxu0 %v1164
  %v1556 = vpop.f32.mrb[0].mxu0
  %v1557 = vadd.f32 0.0, %v1556
  %v1558 = vpop.f32.mrb[0].mxu0
  %v1559 = vpop.f32.mrb[0].mxu0
  %v1560 = vadd.f32 0.0, %v1559
  %v1561 = vpop.f32.mrb[0].mxu0
  %1562 = vmatprep.mubr.bf16.mxu0 0
  %1563 = vmatmul.mubr.bf16.gmra.mrb[0].mxu0 %v1165
  %v1564 = vpop.f32.mrb[0].mxu0
  %v1565 = vadd.f32 0.0, %v1564
  %v1566 = vpop.f32.mrb[0].mxu0
  %v1567 = vpop.f32.mrb[0].mxu0
  %v1568 = vadd.f32 0.0, %v1567
  %v1569 = vpop.f32.mrb[0].mxu0
  %1570 = vmatprep.mubr.bf16.mxu0 0
  %1571 = vmatmul.mubr.bf16.gmra.mrb[0].mxu0 %v1166
  %v1572 = vpop.f32.mrb[0].mxu0
  %v1573 = vadd.f32 0.0, %v1572
  %v1574 = vpop.f32.mrb[0].mxu0
  %v1575 = vpop.f32.mrb[0].mxu0
  %v1576 = vadd.f32 0.0, %v1575
  %v1577 = vpop.f32.mrb[0].mxu0
  %1578 = vmatprep.mubr.bf16.mxu0 0
  %1579 = vmatmul.mubr.bf16.gmra.mrb[0].mxu0 %v1167
  %v1580 = vpop.f32.mrb[0].mxu0
  %v1581 = vadd.f32 0.0, %v1580
  %v1582 = vpop.f32.mrb[0].mxu0
  %v1583 = vpop.f32.mrb[0].mxu0
  %v1584 = vadd.f32 0.0, %v1583
  %v1585 = vpop.f32.mrb[0].mxu0
  %1586 = vmatprep.mubr.bf16.mxu0 0
  %1587 = vmatmul.mubr.bf16.gmra.mrb[0].mxu0 %v1168
  %v1588 = vpop.f32.mrb[0].mxu0
  %v1589 = vadd.f32 0.0, %v1588
  %v1590 = vpop.f32.mrb[0].mxu0
  %v1591 = vpop.f32.mrb[0].mxu0
  %v1592 = vadd.f32 0.0, %v1591
  %v1593 = vpop.f32.mrb[0].mxu0
  %1594 = vmatprep.mubr.bf16.mxu0 0
  %1595 = vmatmul.mubr.bf16.gmra.mrb[0].mxu0 %v1169
  %v1596 = vpop.f32.mrb[0].mxu0
  %v1597 = vadd.f32 0.0, %v1596
  %v1598 = vpop.f32.mrb[0].mxu0
  %v1599 = vpop.f32.mrb[0].mxu0
  %v1600 = vadd.f32 0.0, %v1599
  %v1601 = vpop.f32.mrb[0].mxu0
  %1602 = vmatprep.mubr.bf16.mxu0 0
  %1603 = vmatmul.mubr.bf16.gmra.mrb[0].mxu0 %v1170
  %v1604 = vpop.f32.mrb[0].mxu0
  %v1605 = vadd.f32 0.0, %v1604
  %v1606 = vpop.f32.mrb[0].mxu0
  %v1607 = vpop.f32.mrb[0].mxu0
  %v1608 = vadd.f32 0.0, %v1607
  %v1609 = vpop.f32.mrb[0].mxu0
  %1610 = vmatprep.mubr.bf16.mxu0 0
  %1611 = vmatmul.mubr.bf16.gmra.mrb[0].mxu0 %v1171
  %v1612 = vpop.f32.mrb[0].mxu0
  %v1613 = vadd.f32 0.0, %v1612
  %v1614 = vpop.f32.mrb[0].mxu0
  %v1615 = vpop.f32.mrb[0].mxu0
  %v1616 = vpop.f32.mrb[0].mxu0
  %1617 = vdwg.mxu0
  %v1618 = vld [vmem:[%s2] sm:$0xf]
  %v1619 = vld [vmem:[%s2 + $0x4] sm:$0xf]
  %v1620 = vld [vmem:[%s2 + $0x8] sm:$0xf]
  %v1621 = vld [vmem:[%s2 + $0xc] sm:$0xf]
  %v1622 = vld [vmem:[%s2 + $0x10] sm:$0xf]
  %v1623 = vld [vmem:[%s2 + $0x14] sm:$0xf]
  %v1624 = vld [vmem:[%s2 + $0x18] sm:$0xf]
  %v1625 = vld [vmem:[%s2 + $0x1c] sm:$0xf]
  %v1626 = vld [vmem:[%s2 + $0x20] sm:$0xf]
  %v1627 = vld [vmem:[%s2 + $0x24] sm:$0xf]
  %v1628 = vld [vmem:[%s2 + $0x28] sm:$0xf]
  %v1629 = vld [vmem:[%s2 + $0x2c] sm:$0xf]
  %v1630 = vld [vmem:[%s2 + $0x30] sm:$0xf]
  %v1631 = vld [vmem:[%s2 + $0x34] sm:$0xf]
  %v1632 = vld [vmem:[%s2 + $0x38] sm:$0xf]
  %v1633 = vld [vmem:[%s2 + $0x3c] sm:$0xf]
  %v1634 = vld [vmem:[%s2 + $0x40] sm:$0xf]
  %v1635 = vld [vmem:[%s2 + $0x44] sm:$0xf]
  %v1636 = vld [vmem:[%s2 + $0x48] sm:$0xf]
  %v1637 = vld [vmem:[%s2 + $0x4c] sm:$0xf]
  %v1638 = vld [vmem:[%s2 + $0x50] sm:$0xf]
  %v1639 = vld [vmem:[%s2 + $0x54] sm:$0xf]
  %v1640 = vld [vmem:[%s2 + $0x58] sm:$0xf]
  %v1641 = vld [vmem:[%s2 + $0x5c] sm:$0xf]
  %v1642 = vld [vmem:[%s2 + $0x60] sm:$0xf]
  %v1643 = vld [vmem:[%s2 + $0x64] sm:$0xf]
  %v1644 = vld [vmem:[%s2 + $0x68] sm:$0xf]
  %v1645 = vld [vmem:[%s2 + $0x6c] sm:$0xf]
  %v1646 = vld [vmem:[%s2 + $0x70] sm:$0xf]
  %v1647 = vld [vmem:[%s2 + $0x74] sm:$0xf]
  %v1648 = vld [vmem:[%s2 + $0x78] sm:$0xf]
  %v1649 = vld [vmem:[%s2 + $0x7c] sm:$0xf]
  %v1650 = vld [vmem:[%s2 + $0x80] sm:$0xf]
  %v1651 = vld [vmem:[%s2 + $0x84] sm:$0xf]
  %v1652 = vld [vmem:[%s2 + $0x88] sm:$0xf]
  %v1653 = vld [vmem:[%s2 + $0x8c] sm:$0xf]
  %v1654 = vld [vmem:[%s2 + $0x90] sm:$0xf]
  %v1655 = vld [vmem:[%s2 + $0x94] sm:$0xf]
  %v1656 = vld [vmem:[%s2 + $0x98] sm:$0xf]
  %v1657 = vld [vmem:[%s2 + $0x9c] sm:$0xf]
  %v1658 = vld [vmem:[%s2 + $0xa0] sm:$0xf]
  %v1659 = vld [vmem:[%s2 + $0xa4] sm:$0xf]
  %v1660 = vld [vmem:[%s2 + $0xa8] sm:$0xf]
  %v1661 = vld [vmem:[%s2 + $0xac] sm:$0xf]
  %v1662 = vld [vmem:[%s2 + $0xb0] sm:$0xf]
  %v1663 = vld [vmem:[%s2 + $0xb4] sm:$0xf]
  %v1664 = vld [vmem:[%s2 + $0xb8] sm:$0xf]
  %v1665 = vld [vmem:[%s2 + $0xbc] sm:$0xf]
  %v1666 = vld [vmem:[%s2 + $0xc0] sm:$0xf]
  %v1667 = vld [vmem:[%s2 + $0xc4] sm:$0xf]
  %v1668 = vld [vmem:[%s2 + $0xc8] sm:$0xf]
  %v1669 = vld [vmem:[%s2 + $0xcc] sm:$0xf]
  %v1670 = vld [vmem:[%s2 + $0xd0] sm:$0xf]
  %v1671 = vld [vmem:[%s2 + $0xd4] sm:$0xf]
  %v1672 = vld [vmem:[%s2 + $0xd8] sm:$0xf]
  %v1673 = vld [vmem:[%s2 + $0xdc] sm:$0xf]
  %v1674 = vld [vmem:[%s2 + $0xe0] sm:$0xf]
  %v1675 = vld [vmem:[%s2 + $0xe4] sm:$0xf]
  %v1676 = vld [vmem:[%s2 + $0xe8] sm:$0xf]
  %v1677 = vld [vmem:[%s2 + $0xec] sm:$0xf]
  %v1678 = vld [vmem:[%s2 + $0xf0] sm:$0xf]
  %v1679 = vld [vmem:[%s2 + $0xf4] sm:$0xf]
  %v1680 = vld [vmem:[%s2 + $0xf8] sm:$0xf]
  %v1681 = vld [vmem:[%s2 + $0xfc] sm:$0xf]
  %v1682 = vld [vmem:[%s2 + $0x100] sm:$0xf]
  %v1683 = vld [vmem:[%s2 + $0x104] sm:$0xf]
  %v1684 = vld [vmem:[%s2 + $0x108] sm:$0xf]
  %v1685 = vld [vmem:[%s2 + $0x10c] sm:$0xf]
  %v1686 = vld [vmem:[%s2 + $0x110] sm:$0xf]
  %v1687 = vld [vmem:[%s2 + $0x114] sm:$0xf]
  %v1688 = vld [vmem:[%s2 + $0x118] sm:$0xf]
  %v1689 = vld [vmem:[%s2 + $0x11c] sm:$0xf]
  %v1690 = vld [vmem:[%s2 + $0x120] sm:$0xf]
  %v1691 = vld [vmem:[%s2 + $0x124] sm:$0xf]
  %v1692 = vld [vmem:[%s2 + $0x128] sm:$0xf]
  %v1693 = vld [vmem:[%s2 + $0x12c] sm:$0xf]
  %v1694 = vld [vmem:[%s2 + $0x130] sm:$0xf]
  %v1695 = vld [vmem:[%s2 + $0x134] sm:$0xf]
  %v1696 = vld [vmem:[%s2 + $0x138] sm:$0xf]
  %v1697 = vld [vmem:[%s2 + $0x13c] sm:$0xf]
  %v1698 = vld [vmem:[%s2 + $0x140] sm:$0xf]
  %v1699 = vld [vmem:[%s2 + $0x144] sm:$0xf]
  %v1700 = vld [vmem:[%s2 + $0x148] sm:$0xf]
  %v1701 = vld [vmem:[%s2 + $0x14c] sm:$0xf]
  %v1702 = vld [vmem:[%s2 + $0x150] sm:$0xf]
  %v1703 = vld [vmem:[%s2 + $0x154] sm:$0xf]
  %v1704 = vld [vmem:[%s2 + $0x158] sm:$0xf]
  %v1705 = vld [vmem:[%s2 + $0x15c] sm:$0xf]
  %v1706 = vld [vmem:[%s2 + $0x160] sm:$0xf]
  %v1707 = vld [vmem:[%s2 + $0x164] sm:$0xf]
  %v1708 = vld [vmem:[%s2 + $0x168] sm:$0xf]
  %v1800 = vunpack.c.l.b16 %v1618
  %v1801 = vunpack.c.l.b16 %v1619
  %v1802 = vunpack.c.l.b16 %v1620
  %v1803 = vunpack.c.l.b16 %v1621
  %v1804 = vunpack.c.l.b16 %v1622
  %v1805 = vunpack.c.l.b16 %v1623
  %v1806 = vunpack.c.l.b16 %v1624
  %v1807 = vunpack.c.l.b16 %v1625
  %v1808 = vunpack.c.l.b16 %v1626
  %v1809 = vunpack.c.l.b16 %v1627
  %v1810 = vunpack.c.l.b16 %v1628
  %v1811 = vunpack.c.l.b16 %v1629
  %v1812 = vunpack.c.l.b16 %v1630
  %v1813 = vunpack.c.l.b16 %v1631
  %v1814 = vunpack.c.l.b16 %v1632
  %v1815 = vunpack.c.l.b16 %v1633
  %v1816 = vunpack.c.l.b16 %v1634
  %v1817 = vunpack.c.l.b16 %v1635
  %v1818 = vunpack.c.l.b16 %v1636
  %v1819 = vunpack.c.l.b16 %v1637
  %v1820 = vunpack.c.l.b16 %v1638
  %v1821 = vunpack.c.l.b16 %v1639
  %v1822 = vunpack.c.l.b16 %v1640
  %v1823 = vunpack.c.l.b16 %v1641
  %v1824 = vunpack.c.l.b16 %v1642
  %v1825 = vunpack.c.l.b16 %v1643
  %v1826 = vunpack.c.l.b16 %v1644
  %v1827 = vunpack.c.l.b16 %v1645
  %v1828 = vunpack.c.l.b16 %v1646
  %v1829 = vunpack.c.l.b16 %v1647
  %v1830 = vunpack.c.l.b16 %v1648
  %v1831 = vunpack.c.l.b16 %v1649
  %v1832 = vunpack.c.l.b16 %v1650
  %v1833 = vunpack.c.l.b16 %v1651
  %v1834 = vunpack.c.l.b16 %v1652
  %v1835 = vunpack.c.l.b16 %v1653
  %v1836 = vunpack.c.l.b16 %v1654
  %v1837 = vunpack.c.l.b16 %v1655
  %v1838 = vunpack.c.l.b16 %v1656
  %v1839 = vunpack.c.l.b16 %v1657
  %v1840 = vunpack.c.l.b16 %v1658
  %v1841 = vunpack.c.l.b16 %v1659
  %v1842 = vunpack.c.l.b16 %v1660
  %v1843 = vunpack.c.l.b16 %v1661
  %v1844 = vunpack.c.l.b16 %v1662
  %v1845 = vunpack.c.l.b16 %v1663
  %v1846 = vunpack.c.l.b16 %v1664
  %v1847 = vunpack.c.l.b16 %v1665
  %v1848 = vunpack.c.l.b16 %v1666
  %v1849 = vunpack.c.l.b16 %v1667
  %v1850 = vunpack.c.l.b16 %v1668
  %v1851 = vunpack.c.l.b16 %v1669
  %v1852 = vunpack.c.l.b16 %v1670
  %v1853 = vunpack.c.l.b16 %v1671
  %v1854 = vunpack.c.l.b16 %v1672
  %v1855 = vunpack.c.l.b16 %v1673
  %v1856 = vunpack.c.l.b16 %v1674
  %v1857 = vunpack.c.l.b16 %v1675
  %v1858 = vunpack.c.l.b16 %v1676
  %v1859 = vunpack.c.l.b16 %v1677
  %v1860 = vunpack.c.l.b16 %v1678
  %v1861 = vunpack.c.l.b16 %v1679
  %v1862 = vunpack.c.l.b16 %v1680
  %v1863 = vunpack.c.l.b16 %v1681
  %v1864 = vunpack.c.l.b16 %v1682
  %v1865 = vunpack.c.l.b16 %v1683
  %v1866 = vunpack.c.l.b16 %v1684
  %v1867 = vunpack.c.l.b16 %v1685
  %v1868 = vunpack.c.l.b16 %v1686
  %v1869 = vunpack.c.l.b16 %v1687
  %v1870 = vunpack.c.l.b16 %v1688
  %v1871 = vunpack.c.l.b16 %v1689
  %v1872 = vunpack.c.l.b16 %v1690
  %v1873 = vunpack.c.l.b16 %v1691
  %v1874 = vunpack.c.l.b16 %v1692
  %v1875 = vunpack.c.l.b16 %v1693
  %v1876 = vunpack.c.l.b16 %v1694
  %v1877 = vunpack.c.l.b16 %v1695
  %v1878 = vunpack.c.l.b16 %v1696
  %v1879 = vunpack.c.l.b16 %v1697
  %v1880 = vunpack.c.l.b16 %v1698
  %v1881 = vunpack.c.l.b16 %v1699
  %v1882 = vunpack.c.l.b16 %v1700
  %v1883 = vunpack.c.l.b16 %v1701
  %v1884 = vunpack.c.l.b16 %v1702
  %v1885 = vunpack.c.l.b16 %v1703
  %v1886 = vunpack.c.l.b16 %v1704
  %v1887 = vunpack.c.l.b16 %v1705
  %v1888 = vunpack.c.l.b16 %v1706
  %v1889 = vunpack.c.l.b16 %v1707
  %v1890 = vunpack.c.l.b16 %v1708
  %v1891 = vpack.c.b16 %v1801, %v1800
  %v1892 = vpack.c.b16 %v1803, %v1802
  %v1893 = vpack.c.b16 %v1805, %v1804
  %v1894 = vpack.c.b16 %v1807, %v1806
  %v1895 = vpack.c.b16 %v1809, %v1808
  %v1896 = vpack.c.b16 %v1811, %v1810
  %v1897 = vpack.c.b16 %v1813, %v1812
  %v1898 = vpack.c.b16 %v1815, %v1814
  %v1899 = vpack.c.b16 %v1817, %v1816
  %v1900 = vpack.c.b16 %v1819, %v1818
  %v1901 = vpack.c.b16 %v1821, %v1820
  %v1902 = vpack.c.b16 %v1823, %v1822
  %v1903 = vpack.c.b16 %v1825, %v1824
  %v1904 = vpack.c.b16 %v1827, %v1826
  %v1905 = vpack.c.b16 %v1829, %v1828
  %v1906 = vpack.c.b16 %v1831, %v1830
  %v1907 = vpack.c.b16 %v1833, %v1832
  %v1908 = vpack.c.b16 %v1835, %v1834
  %v1909 = vpack.c.b16 %v1837, %v1836
  %v1910 = vpack.c.b16 %v1839, %v1838
  %v1911 = vpack.c.b16 %v1841, %v1840
  %v1912 = vpack.c.b16 %v1843, %v1842
  %v1913 = vpack.c.b16 %v1845, %v1844
  %v1914 = vpack.c.b16 %v1847, %v1846
  %v1915 = vpack.c.b16 %v1849, %v1848
  %v1916 = vpack.c.b16 %v1851, %v1850
  %v1917 = vpack.c.b16 %v1853, %v1852
  %v1918 = vpack.c.b16 %v1855, %v1854
  %v1919 = vpack.c.b16 %v1857, %v1856
  %v1920 = vpack.c.b16 %v1859, %v1858
  %v1921 = vpack.c.b16 %v1861, %v1860
  %v1922 = vpack.c.b16 %v1863, %v1862
  %v1923 = vpack.c.b16 %v1865, %v1864
  %v1924 = vpack.c.b16 %v1867, %v1866
  %v1925 = vpack.c.b16 %v1869, %v1868
  %v1926 = vpack.c.b16 %v1871, %v1870
  %v1927 = vpack.c.b16 %v1873, %v1872
  %v1928 = vpack.c.b16 %v1875, %v1874
  %v1929 = vpack.c.b16 %v1877, %v1876
  %v1930 = vpack.c.b16 %v1879, %v1878
  %v1931 = vpack.c.b16 %v1881, %v1880
  %v1932 = vpack.c.b16 %v1883, %v1882
  %v1933 = vpack.c.b16 %v1885, %v1884
  %v1934 = vpack.c.b16 %v1887, %v1886
  %v1935 = vpack.c.b16 %v1889, %v1888
  %v1936 = vpack.c.b16 %v1890, %v1890
  %1983 = vmatprep.subr.bf16.mxu0 0
  %1984 = vmatpush1.bf16.msra.mxu0 %v437
  %1985 = vmatprep.subr.bf16.mxu0 0
  %1986 = vmatpush1.bf16.msra.mxu0 %v438
  %1987 = vmatprep.subr.bf16.mxu0 0
  %1988 = vmatpush1.bf16.msra.mxu0 %v439
  %1989 = vmatprep.subr.bf16.mxu0 0
  %1990 = vmatpush1.bf16.msra.mxu0 %v440
  %1991 = vmatprep.subr.bf16.mxu0 0
  %1992 = vmatpush1.bf16.msra.mxu0 %v441
  %1993 = vmatprep.subr.bf16.mxu0 0
  %1994 = vmatpush1.bf16.msra.mxu0 %v442
  %1995 = vmatprep.subr.bf16.mxu0 0
  %1996 = vmatpush1.bf16.msra.mxu0 %v443
  %1997 = vmatprep.subr.bf16.mxu0 0
  %1998 = vmatpush1.bf16.msra.mxu0 %v444
  %1999 = vmatprep.subr.bf16.mxu0 0
  %2000 = vmatpush1.bf16.msra.mxu0 0
  %2001 = vmatprep.subr.bf16.mxu0 0
  %2002 = vmatpush1.bf16.msra.mxu0 0
  %2003 = vmatprep.subr.bf16.mxu0 0
  %2004 = vmatpush1.bf16.msra.mxu0 0
  %2005 = vmatprep.subr.bf16.mxu0 0
  %2006 = vmatpush1.bf16.msra.mxu0 0
  %2007 = vmatprep.subr.bf16.mxu0 0
  %2008 = vmatpush1.bf16.msra.mxu0 0
  %2009 = vmatprep.subr.bf16.mxu0 0
  %2010 = vmatpush1.bf16.msra.mxu0 0
  %2011 = vmatprep.subr.bf16.mxu0 0
  %2012 = vmatpush1.bf16.msra.mxu0 0
  %2013 = vmatprep.subr.bf16.mxu0 0
  %2014 = vmatpush1.bf16.msra.mxu0 0
  %2015 = vmatprep.mubr.bf16.mxu0 0
  %2016 = vmatmul.mubr.bf16.gmra.mrb[0].mxu0 %v1891
  %v2017 = vpop.f32.mrb[0].mxu0
  %v2018 = vadd.f32 0.0, %v2017
  %v2019 = vpop.f32.mrb[0].mxu0
  %v2020 = vpop.f32.mrb[0].mxu0
  %v2021 = vadd.f32 0.0, %v2020
  %v2022 = vpop.f32.mrb[0].mxu0
  %2023 = vmatprep.mubr.bf16.mxu0 0
  %2024 = vmatmul.mubr.bf16.gmra.mrb[0].mxu0 %v1892
  %v2025 = vpop.f32.mrb[0].mxu0
  %v2026 = vadd.f32 0.0, %v2025
  %v2027 = vpop.f32.mrb[0].mxu0
  %v2028 = vpop.f32.mrb[0].mxu0
  %v2029 = vadd.f32 0.0, %v2028
  %v2030 = vpop.f32.mrb[0].mxu0
  %2031 = vmatprep.mubr.bf16.mxu0 0
  %2032 = vmatmul.mubr.bf16.gmra.mrb[0].mxu0 %v1893
  %v2033 = vpop.f32.mrb[0].mxu0
  %v2034 = vadd.f32 0.0, %v2033
  %v2035 = vpop.f32.mrb[0].mxu0
  %v2036 = vpop.f32.mrb[0].mxu0
  %v2037 = vadd.f32 0.0, %v2036
  %v2038 = vpop.f32.mrb[0].mxu0
  %2039 = vmatprep.mubr.bf16.mxu0 0
  %2040 = vmatmul.mubr.bf16.gmra.mrb[0].mxu0 %v1894
  %v2041 = vpop.f32.mrb[0].mxu0
  %v2042 = vadd.f32 0.0, %v2041
  %v2043 = vpop.f32.mrb[0].mxu0
  %v2044 = vpop.f32.mrb[0].mxu0
  %v2045 = vadd.f32 0.0, %v2044
  %v2046 = vpop.f32.mrb[0].mxu0
  %2047 = vmatprep.mubr.bf16.mxu0 0
  %2048 = vmatmul.mubr.bf16.gmra.mrb[0].mxu0 %v1895
  %v2049 = vpop.f32.mrb[0].mxu0
  %v2050 = vadd.f32 0.0, %v2049
  %v2051 = vpop.f32.mrb[0].mxu0
  %v2052 = vpop.f32.mrb[0].mxu0
  %v2053 = vadd.f32 0.0, %v2052
  %v2054 = vpop.f32.mrb[0].mxu0
  %2055 = vmatprep.mubr.bf16.mxu0 0
  %2056 = vmatmul.mubr.bf16.gmra.mrb[0].mxu0 %v1896
  %v2057 = vpop.f32.mrb[0].mxu0
  %v2058 = vadd.f32 0.0, %v2057
  %v2059 = vpop.f32.mrb[0].mxu0
  %v2060 = vpop.f32.mrb[0].mxu0
  %v2061 = vadd.f32 0.0, %v2060
  %v2062 = vpop.f32.mrb[0].mxu0
  %2063 = vmatprep.mubr.bf16.mxu0 0
  %2064 = vmatmul.mubr.bf16.gmra.mrb[0].mxu0 %v1897
  %v2065 = vpop.f32.mrb[0].mxu0
  %v2066 = vadd.f32 0.0, %v2065
  %v2067 = vpop.f32.mrb[0].mxu0
  %v2068 = vpop.f32.mrb[0].mxu0
  %v2069 = vadd.f32 0.0, %v2068
  %v2070 = vpop.f32.mrb[0].mxu0
  %2071 = vmatprep.mubr.bf16.mxu0 0
  %2072 = vmatmul.mubr.bf16.gmra.mrb[0].mxu0 %v1898
  %v2073 = vpop.f32.mrb[0].mxu0
  %v2074 = vadd.f32 0.0, %v2073
  %v2075 = vpop.f32.mrb[0].mxu0
  %v2076 = vpop.f32.mrb[0].mxu0
  %v2077 = vadd.f32 0.0, %v2076
  %v2078 = vpop.f32.mrb[0].mxu0
  %2079 = vmatprep.mubr.bf16.mxu0 0
  %2080 = vmatmul.mubr.bf16.gmra.mrb[0].mxu0 %v1899
  %v2081 = vpop.f32.mrb[0].mxu0
  %v2082 = vadd.f32 0.0, %v2081
  %v2083 = vpop.f32.mrb[0].mxu0
  %v2084 = vpop.f32.mrb[0].mxu0
  %v2085 = vadd.f32 0.0, %v2084
  %v2086 = vpop.f32.mrb[0].mxu0
  %2087 = vmatprep.mubr.bf16.mxu0 0
  %2088 = vmatmul.mubr.bf16.gmra.mrb[0].mxu0 %v1900
  %v2089 = vpop.f32.mrb[0].mxu0
  %v2090 = vadd.f32 0.0, %v2089
  %v2091 = vpop.f32.mrb[0].mxu0
  %v2092 = vpop.f32.mrb[0].mxu0
  %v2093 = vadd.f32 0.0, %v2092
  %v2094 = vpop.f32.mrb[0].mxu0
  %2095 = vmatprep.mubr.bf16.mxu0 0
  %2096 = vmatmul.mubr.bf16.gmra.mrb[0].mxu0 %v1901
  %v2097 = vpop.f32.mrb[0].mxu0
  %v2098 = vadd.f32 0.0, %v2097
  %v2099 = vpop.f32.mrb[0].mxu0
  %v2100 = vpop.f32.mrb[0].mxu0
  %v2101 = vadd.f32 0.0, %v2100
  %v2102 = vpop.f32.mrb[0].mxu0
  %2103 = vmatprep.mubr.bf16.mxu0 0
  %2104 = vmatmul.mubr.bf16.gmra.mrb[0].mxu0 %v1902
  %v2105 = vpop.f32.mrb[0].mxu0
  %v2106 = vadd.f32 0.0, %v2105
  %v2107 = vpop.f32.mrb[0].mxu0
  %v2108 = vpop.f32.mrb[0].mxu0
  %v2109 = vadd.f32 0.0, %v2108
  %v2110 = vpop.f32.mrb[0].mxu0
  %2111 = vmatprep.mubr.bf16.mxu0 0
  %2112 = vmatmul.mubr.bf16.gmra.mrb[0].mxu0 %v1903
  %v2113 = vpop.f32.mrb[0].mxu0
  %v2114 = vadd.f32 0.0, %v2113
  %v2115 = vpop.f32.mrb[0].mxu0
  %v2116 = vpop.f32.mrb[0].mxu0
  %v2117 = vadd.f32 0.0, %v2116
  %v2118 = vpop.f32.mrb[0].mxu0
  %2119 = vmatprep.mubr.bf16.mxu0 0
  %2120 = vmatmul.mubr.bf16.gmra.mrb[0].mxu0 %v1904
  %v2121 = vpop.f32.mrb[0].mxu0
  %v2122 = vadd.f32 0.0, %v2121
  %v2123 = vpop.f32.mrb[0].mxu0
  %v2124 = vpop.f32.mrb[0].mxu0
  %v2125 = vadd.f32 0.0, %v2124
  %v2126 = vpop.f32.mrb[0].mxu0
  %2127 = vmatprep.mubr.bf16.mxu0 0
  %2128 = vmatmul.mubr.bf16.gmra.mrb[0].mxu0 %v1905
  %v2129 = vpop.f32.mrb[0].mxu0
  %v2130 = vadd.f32 0.0, %v2129
  %v2131 = vpop.f32.mrb[0].mxu0
  %v2132 = vpop.f32.mrb[0].mxu0
  %v2133 = vadd.f32 0.0, %v2132
  %v2134 = vpop.f32.mrb[0].mxu0
  %2135 = vmatprep.mubr.bf16.mxu0 0
  %2136 = vmatmul.mubr.bf16.gmra.mrb[0].mxu0 %v1906
  %v2137 = vpop.f32.mrb[0].mxu0
  %v2138 = vadd.f32 0.0, %v2137
  %v2139 = vpop.f32.mrb[0].mxu0
  %v2140 = vpop.f32.mrb[0].mxu0
  %v2141 = vadd.f32 0.0, %v2140
  %v2142 = vpop.f32.mrb[0].mxu0
  %2143 = vmatprep.mubr.bf16.mxu0 0
  %2144 = vmatmul.mubr.bf16.gmra.mrb[0].mxu0 %v1907
  %v2145 = vpop.f32.mrb[0].mxu0
  %v2146 = vadd.f32 0.0, %v2145
  %v2147 = vpop.f32.mrb[0].mxu0
  %v2148 = vpop.f32.mrb[0].mxu0
  %v2149 = vadd.f32 0.0, %v2148
  %v2150 = vpop.f32.mrb[0].mxu0
  %2151 = vmatprep.mubr.bf16.mxu0 0
  %2152 = vmatmul.mubr.bf16.gmra.mrb[0].mxu0 %v1908
  %v2153 = vpop.f32.mrb[0].mxu0
  %v2154 = vadd.f32 0.0, %v2153
  %v2155 = vpop.f32.mrb[0].mxu0
  %v2156 = vpop.f32.mrb[0].mxu0
  %v2157 = vadd.f32 0.0, %v2156
  %v2158 = vpop.f32.mrb[0].mxu0
  %2159 = vmatprep.mubr.bf16.mxu0 0
  %2160 = vmatmul.mubr.bf16.gmra.mrb[0].mxu0 %v1909
  %v2161 = vpop.f32.mrb[0].mxu0
  %v2162 = vadd.f32 0.0, %v2161
  %v2163 = vpop.f32.mrb[0].mxu0
  %v2164 = vpop.f32.mrb[0].mxu0
  %v2165 = vadd.f32 0.0, %v2164
  %v2166 = vpop.f32.mrb[0].mxu0
  %2167 = vmatprep.mubr.bf16.mxu0 0
  %2168 = vmatmul.mubr.bf16.gmra.mrb[0].mxu0 %v1910
  %v2169 = vpop.f32.mrb[0].mxu0
  %v2170 = vadd.f32 0.0, %v2169
  %v2171 = vpop.f32.mrb[0].mxu0
  %v2172 = vpop.f32.mrb[0].mxu0
  %v2173 = vadd.f32 0.0, %v2172
  %v2174 = vpop.f32.mrb[0].mxu0
  %2175 = vmatprep.mubr.bf16.mxu0 0
  %2176 = vmatmul.mubr.bf16.gmra.mrb[0].mxu0 %v1911
  %v2177 = vpop.f32.mrb[0].mxu0
  %v2178 = vadd.f32 0.0, %v2177
  %v2179 = vpop.f32.mrb[0].mxu0
  %v2180 = vpop.f32.mrb[0].mxu0
  %v2181 = vadd.f32 0.0, %v2180
  %v2182 = vpop.f32.mrb[0].mxu0
  %2183 = vmatprep.mubr.bf16.mxu0 0
  %2184 = vmatmul.mubr.bf16.gmra.mrb[0].mxu0 %v1912
  %v2185 = vpop.f32.mrb[0].mxu0
  %v2186 = vadd.f32 0.0, %v2185
  %v2187 = vpop.f32.mrb[0].mxu0
  %v2188 = vpop.f32.mrb[0].mxu0
  %v2189 = vadd.f32 0.0, %v2188
  %v2190 = vpop.f32.mrb[0].mxu0
  %2191 = vmatprep.mubr.bf16.mxu0 0
  %2192 = vmatmul.mubr.bf16.gmra.mrb[0].mxu0 %v1913
  %v2193 = vpop.f32.mrb[0].mxu0
  %v2194 = vadd.f32 0.0, %v2193
  %v2195 = vpop.f32.mrb[0].mxu0
  %v2196 = vpop.f32.mrb[0].mxu0
  %v2197 = vadd.f32 0.0, %v2196
  %v2198 = vpop.f32.mrb[0].mxu0
  %2199 = vmatprep.mubr.bf16.mxu0 0
  %2200 = vmatmul.mubr.bf16.gmra.mrb[0].mxu0 %v1914
  %v2201 = vpop.f32.mrb[0].mxu0
  %v2202 = vadd.f32 0.0, %v2201
  %v2203 = vpop.f32.mrb[0].mxu0
  %v2204 = vpop.f32.mrb[0].mxu0
  %v2205 = vadd.f32 0.0, %v2204
  %v2206 = vpop.f32.mrb[0].mxu0
  %2207 = vmatprep.mubr.bf16.mxu0 0
  %2208 = vmatmul.mubr.bf16.gmra.mrb[0].mxu0 %v1915
  %v2209 = vpop.f32.mrb[0].mxu0
  %v2210 = vadd.f32 0.0, %v2209
  %v2211 = vpop.f32.mrb[0].mxu0
  %v2212 = vpop.f32.mrb[0].mxu0
  %v2213 = vadd.f32 0.0, %v2212
  %v2214 = vpop.f32.mrb[0].mxu0
  %2215 = vmatprep.mubr.bf16.mxu0 0
  %2216 = vmatmul.mubr.bf16.gmra.mrb[0].mxu0 %v1916
  %v2217 = vpop.f32.mrb[0].mxu0
  %v2218 = vadd.f32 0.0, %v2217
  %v2219 = vpop.f32.mrb[0].mxu0
  %v2220 = vpop.f32.mrb[0].mxu0
  %v2221 = vadd.f32 0.0, %v2220
  %v2222 = vpop.f32.mrb[0].mxu0
  %2223 = vmatprep.mubr.bf16.mxu0 0
  %2224 = vmatmul.mubr.bf16.gmra.mrb[0].mxu0 %v1917
  %v2225 = vpop.f32.mrb[0].mxu0
  %v2226 = vadd.f32 0.0, %v2225
  %v2227 = vpop.f32.mrb[0].mxu0
  %v2228 = vpop.f32.mrb[0].mxu0
  %v2229 = vadd.f32 0.0, %v2228
  %v2230 = vpop.f32.mrb[0].mxu0
  %2231 = vmatprep.mubr.bf16.mxu0 0
  %2232 = vmatmul.mubr.bf16.gmra.mrb[0].mxu0 %v1918
  %v2233 = vpop.f32.mrb[0].mxu0
  %v2234 = vadd.f32 0.0, %v2233
  %v2235 = vpop.f32.mrb[0].mxu0
  %v2236 = vpop.f32.mrb[0].mxu0
  %v2237 = vadd.f32 0.0, %v2236
  %v2238 = vpop.f32.mrb[0].mxu0
  %2239 = vmatprep.mubr.bf16.mxu0 0
  %2240 = vmatmul.mubr.bf16.gmra.mrb[0].mxu0 %v1919
  %v2241 = vpop.f32.mrb[0].mxu0
  %v2242 = vadd.f32 0.0, %v2241
  %v2243 = vpop.f32.mrb[0].mxu0
  %v2244 = vpop.f32.mrb[0].mxu0
  %v2245 = vadd.f32 0.0, %v2244
  %v2246 = vpop.f32.mrb[0].mxu0
  %2247 = vmatprep.mubr.bf16.mxu0 0
  %2248 = vmatmul.mubr.bf16.gmra.mrb[0].mxu0 %v1920
  %v2249 = vpop.f32.mrb[0].mxu0
  %v2250 = vadd.f32 0.0, %v2249
  %v2251 = vpop.f32.mrb[0].mxu0
  %v2252 = vpop.f32.mrb[0].mxu0
  %v2253 = vadd.f32 0.0, %v2252
  %v2254 = vpop.f32.mrb[0].mxu0
  %2255 = vmatprep.mubr.bf16.mxu0 0
  %2256 = vmatmul.mubr.bf16.gmra.mrb[0].mxu0 %v1921
  %v2257 = vpop.f32.mrb[0].mxu0
  %v2258 = vadd.f32 0.0, %v2257
  %v2259 = vpop.f32.mrb[0].mxu0
  %v2260 = vpop.f32.mrb[0].mxu0
  %v2261 = vadd.f32 0.0, %v2260
  %v2262 = vpop.f32.mrb[0].mxu0
  %2263 = vmatprep.mubr.bf16.mxu0 0
  %2264 = vmatmul.mubr.bf16.gmra.mrb[0].mxu0 %v1922
  %v2265 = vpop.f32.mrb[0].mxu0
  %v2266 = vadd.f32 0.0, %v2265
  %v2267 = vpop.f32.mrb[0].mxu0
  %v2268 = vpop.f32.mrb[0].mxu0
  %v2269 = vadd.f32 0.0, %v2268
  %v2270 = vpop.f32.mrb[0].mxu0
  %2271 = vmatprep.mubr.bf16.mxu0 0
  %2272 = vmatmul.mubr.bf16.gmra.mrb[0].mxu0 %v1923
  %v2273 = vpop.f32.mrb[0].mxu0
  %v2274 = vadd.f32 0.0, %v2273
  %v2275 = vpop.f32.mrb[0].mxu0
  %v2276 = vpop.f32.mrb[0].mxu0
  %v2277 = vadd.f32 0.0, %v2276
  %v2278 = vpop.f32.mrb[0].mxu0
  %2279 = vmatprep.mubr.bf16.mxu0 0
  %2280 = vmatmul.mubr.bf16.gmra.mrb[0].mxu0 %v1924
  %v2281 = vpop.f32.mrb[0].mxu0
  %v2282 = vadd.f32 0.0, %v2281
  %v2283 = vpop.f32.mrb[0].mxu0
  %v2284 = vpop.f32.mrb[0].mxu0
  %v2285 = vadd.f32 0.0, %v2284
  %v2286 = vpop.f32.mrb[0].mxu0
  %2287 = vmatprep.mubr.bf16.mxu0 0
  %2288 = vmatmul.mubr.bf16.gmra.mrb[0].mxu0 %v1925
  %v2289 = vpop.f32.mrb[0].mxu0
  %v2290 = vadd.f32 0.0, %v2289
  %v2291 = vpop.f32.mrb[0].mxu0
  %v2292 = vpop.f32.mrb[0].mxu0
  %v2293 = vadd.f32 0.0, %v2292
  %v2294 = vpop.f32.mrb[0].mxu0
  %2295 = vmatprep.mubr.bf16.mxu0 0
  %2296 = vmatmul.mubr.bf16.gmra.mrb[0].mxu0 %v1926
  %v2297 = vpop.f32.mrb[0].mxu0
  %v2298 = vadd.f32 0.0, %v2297
  %v2299 = vpop.f32.mrb[0].mxu0
  %v2300 = vpop.f32.mrb[0].mxu0
  %v2301 = vadd.f32 0.0, %v2300
  %v2302 = vpop.f32.mrb[0].mxu0
  %2303 = vmatprep.mubr.bf16.mxu0 0
  %2304 = vmatmul.mubr.bf16.gmra.mrb[0].mxu0 %v1927
  %v2305 = vpop.f32.mrb[0].mxu0
  %v2306 = vadd.f32 0.0, %v2305
  %v2307 = vpop.f32.mrb[0].mxu0
  %v2308 = vpop.f32.mrb[0].mxu0
  %v2309 = vadd.f32 0.0, %v2308
  %v2310 = vpop.f32.mrb[0].mxu0
  %2311 = vmatprep.mubr.bf16.mxu0 0
  %2312 = vmatmul.mubr.bf16.gmra.mrb[0].mxu0 %v1928
  %v2313 = vpop.f32.mrb[0].mxu0
  %v2314 = vadd.f32 0.0, %v2313
  %v2315 = vpop.f32.mrb[0].mxu0
  %v2316 = vpop.f32.mrb[0].mxu0
  %v2317 = vadd.f32 0.0, %v2316
  %v2318 = vpop.f32.mrb[0].mxu0
  %2319 = vmatprep.mubr.bf16.mxu0 0
  %2320 = vmatmul.mubr.bf16.gmra.mrb[0].mxu0 %v1929
  %v2321 = vpop.f32.mrb[0].mxu0
  %v2322 = vadd.f32 0.0, %v2321
  %v2323 = vpop.f32.mrb[0].mxu0
  %v2324 = vpop.f32.mrb[0].mxu0
  %v2325 = vadd.f32 0.0, %v2324
  %v2326 = vpop.f32.mrb[0].mxu0
  %2327 = vmatprep.mubr.bf16.mxu0 0
  %2328 = vmatmul.mubr.bf16.gmra.mrb[0].mxu0 %v1930
  %v2329 = vpop.f32.mrb[0].mxu0
  %v2330 = vadd.f32 0.0, %v2329
  %v2331 = vpop.f32.mrb[0].mxu0
  %v2332 = vpop.f32.mrb[0].mxu0
  %v2333 = vadd.f32 0.0, %v2332
  %v2334 = vpop.f32.mrb[0].mxu0
  %2335 = vmatprep.mubr.bf16.mxu0 0
  %2336 = vmatmul.mubr.bf16.gmra.mrb[0].mxu0 %v1931
  %v2337 = vpop.f32.mrb[0].mxu0
  %v2338 = vadd.f32 0.0, %v2337
  %v2339 = vpop.f32.mrb[0].mxu0
  %v2340 = vpop.f32.mrb[0].mxu0
  %v2341 = vadd.f32 0.0, %v2340
  %v2342 = vpop.f32.mrb[0].mxu0
  %2343 = vmatprep.mubr.bf16.mxu0 0
  %2344 = vmatmul.mubr.bf16.gmra.mrb[0].mxu0 %v1932
  %v2345 = vpop.f32.mrb[0].mxu0
  %v2346 = vadd.f32 0.0, %v2345
  %v2347 = vpop.f32.mrb[0].mxu0
  %v2348 = vpop.f32.mrb[0].mxu0
  %v2349 = vadd.f32 0.0, %v2348
  %v2350 = vpop.f32.mrb[0].mxu0
  %2351 = vmatprep.mubr.bf16.mxu0 0
  %2352 = vmatmul.mubr.bf16.gmra.mrb[0].mxu0 %v1933
  %v2353 = vpop.f32.mrb[0].mxu0
  %v2354 = vadd.f32 0.0, %v2353
  %v2355 = vpop.f32.mrb[0].mxu0
  %v2356 = vpop.f32.mrb[0].mxu0
  %v2357 = vadd.f32 0.0, %v2356
  %v2358 = vpop.f32.mrb[0].mxu0
  %2359 = vmatprep.mubr.bf16.mxu0 0
  %2360 = vmatmul.mubr.bf16.gmra.mrb[0].mxu0 %v1934
  %v2361 = vpop.f32.mrb[0].mxu0
  %v2362 = vadd.f32 0.0, %v2361
  %v2363 = vpop.f32.mrb[0].mxu0
  %v2364 = vpop.f32.mrb[0].mxu0
  %v2365 = vadd.f32 0.0, %v2364
  %v2366 = vpop.f32.mrb[0].mxu0
  %2367 = vmatprep.mubr.bf16.mxu0 0
  %2368 = vmatmul.mubr.bf16.gmra.mrb[0].mxu0 %v1935
  %v2369 = vpop.f32.mrb[0].mxu0
  %v2370 = vadd.f32 0.0, %v2369
  %v2371 = vpop.f32.mrb[0].mxu0
  %v2372 = vpop.f32.mrb[0].mxu0
  %v2373 = vadd.f32 0.0, %v2372
  %v2374 = vpop.f32.mrb[0].mxu0
  %2375 = vmatprep.mubr.bf16.mxu0 0
  %2376 = vmatmul.mubr.bf16.gmra.mrb[0].mxu0 %v1936
  %v2377 = vpop.f32.mrb[0].mxu0
  %v2378 = vadd.f32 0.0, %v2377
  %v2379 = vpop.f32.mrb[0].mxu0
  %v2380 = vpop.f32.mrb[0].mxu0
  %v2381 = vpop.f32.mrb[0].mxu0
  %2382 = vdwg.mxu0
  %v2383 = vld [vmem:[%s3] sm:$0xf]
  %v2384 = vld [vmem:[%s3 + $0x4] sm:$0xf]
  %v2385 = vld [vmem:[%s3 + $0x8] sm:$0xf]
  %v2386 = vld [vmem:[%s3 + $0xc] sm:$0xf]
  %v2387 = vld [vmem:[%s3 + $0x10] sm:$0xf]
  %v2388 = vld [vmem:[%s3 + $0x14] sm:$0xf]
  %v2389 = vld [vmem:[%s3 + $0x18] sm:$0xf]
  %v2390 = vld [vmem:[%s3 + $0x1c] sm:$0xf]
  %v2391 = vld [vmem:[%s3 + $0x20] sm:$0xf]
  %v2392 = vld [vmem:[%s3 + $0x24] sm:$0xf]
  %v2393 = vld [vmem:[%s3 + $0x28] sm:$0xf]
  %v2394 = vld [vmem:[%s3 + $0x2c] sm:$0xf]
  %v2395 = vld [vmem:[%s3 + $0x30] sm:$0xf]
  %v2396 = vld [vmem:[%s3 + $0x34] sm:$0xf]
  %v2397 = vld [vmem:[%s3 + $0x38] sm:$0xf]
  %v2398 = vld [vmem:[%s3 + $0x3c] sm:$0xf]
  %v2399 = vld [vmem:[%s3 + $0x40] sm:$0xf]
  %v2400 = vld [vmem:[%s3 + $0x44] sm:$0xf]
  %v2401 = vld [vmem:[%s3 + $0x48] sm:$0xf]
  %v2402 = vld [vmem:[%s3 + $0x4c] sm:$0xf]
  %v2403 = vld [vmem:[%s3 + $0x50] sm:$0xf]
  %v2404 = vld [vmem:[%s3 + $0x54] sm:$0xf]
  %v2405 = vld [vmem:[%s3 + $0x58] sm:$0xf]
  %v2406 = vld [vmem:[%s3 + $0x5c] sm:$0xf]
  %v2407 = vld [vmem:[%s3 + $0x60] sm:$0xf]
  %v2408 = vld [vmem:[%s3 + $0x64] sm:$0xf]
  %v2409 = vld [vmem:[%s3 + $0x68] sm:$0xf]
  %v2410 = vld [vmem:[%s3 + $0x6c] sm:$0xf]
  %v2411 = vld [vmem:[%s3 + $0x70] sm:$0xf]
  %v2412 = vld [vmem:[%s3 + $0x74] sm:$0xf]
  %v2413 = vld [vmem:[%s3 + $0x78] sm:$0xf]
  %v2414 = vld [vmem:[%s3 + $0x7c] sm:$0xf]
  %v2415 = vld [vmem:[%s3 + $0x80] sm:$0xf]
  %v2416 = vld [vmem:[%s3 + $0x84] sm:$0xf]
  %v2417 = vld [vmem:[%s3 + $0x88] sm:$0xf]
  %v2418 = vld [vmem:[%s3 + $0x8c] sm:$0xf]
  %v2419 = vld [vmem:[%s3 + $0x90] sm:$0xf]
  %v2420 = vld [vmem:[%s3 + $0x94] sm:$0xf]
  %v2421 = vld [vmem:[%s3 + $0x98] sm:$0xf]
  %v2422 = vld [vmem:[%s3 + $0x9c] sm:$0xf]
  %v2423 = vld [vmem:[%s3 + $0xa0] sm:$0xf]
  %v2424 = vld [vmem:[%s3 + $0xa4] sm:$0xf]
  %v2425 = vld [vmem:[%s3 + $0xa8] sm:$0xf]
  %v2426 = vld [vmem:[%s3 + $0xac] sm:$0xf]
  %v2427 = vld [vmem:[%s3 + $0xb0] sm:$0xf]
  %v2428 = vld [vmem:[%s3 + $0xb4] sm:$0xf]
  %v2429 = vld [vmem:[%s3 + $0xb8] sm:$0xf]
  %v2430 = vld [vmem:[%s3 + $0xbc] sm:$0xf]
  %v2431 = vld [vmem:[%s3 + $0xc0] sm:$0xf]
  %v2432 = vld [vmem:[%s3 + $0xc4] sm:$0xf]
  %v2433 = vld [vmem:[%s3 + $0xc8] sm:$0xf]
  %v2434 = vld [vmem:[%s3 + $0xcc] sm:$0xf]
  %v2435 = vld [vmem:[%s3 + $0xd0] sm:$0xf]
  %v2436 = vld [vmem:[%s3 + $0xd4] sm:$0xf]
  %v2437 = vld [vmem:[%s3 + $0xd8] sm:$0xf]
  %v2438 = vld [vmem:[%s3 + $0xdc] sm:$0xf]
  %v2439 = vld [vmem:[%s3 + $0xe0] sm:$0xf]
  %v2440 = vld [vmem:[%s3 + $0xe4] sm:$0xf]
  %v2441 = vld [vmem:[%s3 + $0xe8] sm:$0xf]
  %v2442 = vld [vmem:[%s3 + $0xec] sm:$0xf]
  %v2443 = vld [vmem:[%s3 + $0xf0] sm:$0xf]
  %v2444 = vld [vmem:[%s3 + $0xf4] sm:$0xf]
  %v2445 = vld [vmem:[%s3 + $0xf8] sm:$0xf]
  %v2446 = vld [vmem:[%s3 + $0xfc] sm:$0xf]
  %v2447 = vld [vmem:[%s3 + $0x100] sm:$0xf]
  %v2448 = vld [vmem:[%s3 + $0x104] sm:$0xf]
  %v2449 = vld [vmem:[%s3 + $0x108] sm:$0xf]
  %v2450 = vld [vmem:[%s3 + $0x10c] sm:$0xf]
  %v2451 = vld [vmem:[%s3 + $0x110] sm:$0xf]
  %v2452 = vld [vmem:[%s3 + $0x114] sm:$0xf]
  %v2453 = vld [vmem:[%s3 + $0x118] sm:$0xf]
  %v2454 = vld [vmem:[%s3 + $0x11c] sm:$0xf]
  %v2455 = vld [vmem:[%s3 + $0x120] sm:$0xf]
  %v2456 = vld [vmem:[%s3 + $0x124] sm:$0xf]
  %v2457 = vld [vmem:[%s3 + $0x128] sm:$0xf]
  %v2458 = vld [vmem:[%s3 + $0x12c] sm:$0xf]
  %v2459 = vld [vmem:[%s3 + $0x130] sm:$0xf]
  %v2460 = vld [vmem:[%s3 + $0x134] sm:$0xf]
  %v2461 = vld [vmem:[%s3 + $0x138] sm:$0xf]
  %v2462 = vld [vmem:[%s3 + $0x13c] sm:$0xf]
  %v2463 = vld [vmem:[%s3 + $0x140] sm:$0xf]
  %v2464 = vld [vmem:[%s3 + $0x144] sm:$0xf]
  %v2465 = vld [vmem:[%s3 + $0x148] sm:$0xf]
  %v2466 = vld [vmem:[%s3 + $0x14c] sm:$0xf]
  %v2467 = vld [vmem:[%s3 + $0x150] sm:$0xf]
  %v2468 = vld [vmem:[%s3 + $0x154] sm:$0xf]
  %v2469 = vld [vmem:[%s3 + $0x158] sm:$0xf]
  %v2470 = vld [vmem:[%s3 + $0x15c] sm:$0xf]
  %v2471 = vld [vmem:[%s3 + $0x160] sm:$0xf]
  %v2472 = vld [vmem:[%s3 + $0x164] sm:$0xf]
  %v2473 = vld [vmem:[%s3 + $0x168] sm:$0xf]
  %v2565 = vunpack.c.l.b16 %v2383
  %v2566 = vunpack.c.l.b16 %v2384
  %v2567 = vunpack.c.l.b16 %v2385
  %v2568 = vunpack.c.l.b16 %v2386
  %v2569 = vunpack.c.l.b16 %v2387
  %v2570 = vunpack.c.l.b16 %v2388
  %v2571 = vunpack.c.l.b16 %v2389
  %v2572 = vunpack.c.l.b16 %v2390
  %v2573 = vunpack.c.l.b16 %v2391
  %v2574 = vunpack.c.l.b16 %v2392
  %v2575 = vunpack.c.l.b16 %v2393
  %v2576 = vunpack.c.l.b16 %v2394
  %v2577 = vunpack.c.l.b16 %v2395
  %v2578 = vunpack.c.l.b16 %v2396
  %v2579 = vunpack.c.l.b16 %v2397
  %v2580 = vunpack.c.l.b16 %v2398
  %v2581 = vunpack.c.l.b16 %v2399
  %v2582 = vunpack.c.l.b16 %v2400
  %v2583 = vunpack.c.l.b16 %v2401
  %v2584 = vunpack.c.l.b16 %v2402
  %v2585 = vunpack.c.l.b16 %v2403
  %v2586 = vunpack.c.l.b16 %v2404
  %v2587 = vunpack.c.l.b16 %v2405
  %v2588 = vunpack.c.l.b16 %v2406
  %v2589 = vunpack.c.l.b16 %v2407
  %v2590 = vunpack.c.l.b16 %v2408
  %v2591 = vunpack.c.l.b16 %v2409
  %v2592 = vunpack.c.l.b16 %v2410
  %v2593 = vunpack.c.l.b16 %v2411
  %v2594 = vunpack.c.l.b16 %v2412
  %v2595 = vunpack.c.l.b16 %v2413
  %v2596 = vunpack.c.l.b16 %v2414
  %v2597 = vunpack.c.l.b16 %v2415
  %v2598 = vunpack.c.l.b16 %v2416
  %v2599 = vunpack.c.l.b16 %v2417
  %v2600 = vunpack.c.l.b16 %v2418
  %v2601 = vunpack.c.l.b16 %v2419
  %v2602 = vunpack.c.l.b16 %v2420
  %v2603 = vunpack.c.l.b16 %v2421
  %v2604 = vunpack.c.l.b16 %v2422
  %v2605 = vunpack.c.l.b16 %v2423
  %v2606 = vunpack.c.l.b16 %v2424
  %v2607 = vunpack.c.l.b16 %v2425
  %v2608 = vunpack.c.l.b16 %v2426
  %v2609 = vunpack.c.l.b16 %v2427
  %v2610 = vunpack.c.l.b16 %v2428
  %v2611 = vunpack.c.l.b16 %v2429
  %v2612 = vunpack.c.l.b16 %v2430
  %v2613 = vunpack.c.l.b16 %v2431
  %v2614 = vunpack.c.l.b16 %v2432
  %v2615 = vunpack.c.l.b16 %v2433
  %v2616 = vunpack.c.l.b16 %v2434
  %v2617 = vunpack.c.l.b16 %v2435
  %v2618 = vunpack.c.l.b16 %v2436
  %v2619 = vunpack.c.l.b16 %v2437
  %v2620 = vunpack.c.l.b16 %v2438
  %v2621 = vunpack.c.l.b16 %v2439
  %v2622 = vunpack.c.l.b16 %v2440
  %v2623 = vunpack.c.l.b16 %v2441
  %v2624 = vunpack.c.l.b16 %v2442
  %v2625 = vunpack.c.l.b16 %v2443
  %v2626 = vunpack.c.l.b16 %v2444
  %v2627 = vunpack.c.l.b16 %v2445
  %v2628 = vunpack.c.l.b16 %v2446
  %v2629 = vunpack.c.l.b16 %v2447
  %v2630 = vunpack.c.l.b16 %v2448
  %v2631 = vunpack.c.l.b16 %v2449
  %v2632 = vunpack.c.l.b16 %v2450
  %v2633 = vunpack.c.l.b16 %v2451
  %v2634 = vunpack.c.l.b16 %v2452
  %v2635 = vunpack.c.l.b16 %v2453
  %v2636 = vunpack.c.l.b16 %v2454
  %v2637 = vunpack.c.l.b16 %v2455
  %v2638 = vunpack.c.l.b16 %v2456
  %v2639 = vunpack.c.l.b16 %v2457
  %v2640 = vunpack.c.l.b16 %v2458
  %v2641 = vunpack.c.l.b16 %v2459
  %v2642 = vunpack.c.l.b16 %v2460
  %v2643 = vunpack.c.l.b16 %v2461
  %v2644 = vunpack.c.l.b16 %v2462
  %v2645 = vunpack.c.l.b16 %v2463
  %v2646 = vunpack.c.l.b16 %v2464
  %v2647 = vunpack.c.l.b16 %v2465
  %v2648 = vunpack.c.l.b16 %v2466
  %v2649 = vunpack.c.l.b16 %v2467
  %v2650 = vunpack.c.l.b16 %v2468
  %v2651 = vunpack.c.l.b16 %v2469
  %v2652 = vunpack.c.l.b16 %v2470
  %v2653 = vunpack.c.l.b16 %v2471
  %v2654 = vunpack.c.l.b16 %v2472
  %v2655 = vunpack.c.l.b16 %v2473
  %v2656 = vpack.c.b16 %v2566, %v2565
  %v2657 = vpack.c.b16 %v2568, %v2567
  %v2658 = vpack.c.b16 %v2570, %v2569
  %v2659 = vpack.c.b16 %v2572, %v2571
  %v2660 = vpack.c.b16 %v2574, %v2573
  %v2661 = vpack.c.b16 %v2576, %v2575
  %v2662 = vpack.c.b16 %v2578, %v2577
  %v2663 = vpack.c.b16 %v2580, %v2579
  %v2664 = vpack.c.b16 %v2582, %v2581
  %v2665 = vpack.c.b16 %v2584, %v2583
  %v2666 = vpack.c.b16 %v2586, %v2585
  %v2667 = vpack.c.b16 %v2588, %v2587
  %v2668 = vpack.c.b16 %v2590, %v2589
  %v2669 = vpack.c.b16 %v2592, %v2591
  %v2670 = vpack.c.b16 %v2594, %v2593
  %v2671 = vpack.c.b16 %v2596, %v2595
  %v2672 = vpack.c.b16 %v2598, %v2597
  %v2673 = vpack.c.b16 %v2600, %v2599
  %v2674 = vpack.c.b16 %v2602, %v2601
  %v2675 = vpack.c.b16 %v2604, %v2603
  %v2676 = vpack.c.b16 %v2606, %v2605
  %v2677 = vpack.c.b16 %v2608, %v2607
  %v2678 = vpack.c.b16 %v2610, %v2609
  %v2679 = vpack.c.b16 %v2612, %v2611
  %v2680 = vpack.c.b16 %v2614, %v2613
  %v2681 = vpack.c.b16 %v2616, %v2615
  %v2682 = vpack.c.b16 %v2618, %v2617
  %v2683 = vpack.c.b16 %v2620, %v2619
  %v2684 = vpack.c.b16 %v2622, %v2621
  %v2685 = vpack.c.b16 %v2624, %v2623
  %v2686 = vpack.c.b16 %v2626, %v2625
  %v2687 = vpack.c.b16 %v2628, %v2627
  %v2688 = vpack.c.b16 %v2630, %v2629
  %v2689 = vpack.c.b16 %v2632, %v2631
  %v2690 = vpack.c.b16 %v2634, %v2633
  %v2691 = vpack.c.b16 %v2636, %v2635
  %v2692 = vpack.c.b16 %v2638, %v2637
  %v2693 = vpack.c.b16 %v2640, %v2639
  %v2694 = vpack.c.b16 %v2642, %v2641
  %v2695 = vpack.c.b16 %v2644, %v2643
  %v2696 = vpack.c.b16 %v2646, %v2645
  %v2697 = vpack.c.b16 %v2648, %v2647
  %v2698 = vpack.c.b16 %v2650, %v2649
  %v2699 = vpack.c.b16 %v2652, %v2651
  %v2700 = vpack.c.b16 %v2654, %v2653
  %v2701 = vpack.c.b16 %v2655, %v2655
  %2748 = vmatprep.subr.bf16.mxu0 0
  %2749 = vmatpush1.bf16.msra.mxu0 %v437
  %2750 = vmatprep.subr.bf16.mxu0 0
  %2751 = vmatpush1.bf16.msra.mxu0 %v438
  %2752 = vmatprep.subr.bf16.mxu0 0
  %2753 = vmatpush1.bf16.msra.mxu0 %v439
  %2754 = vmatprep.subr.bf16.mxu0 0
  %2755 = vmatpush1.bf16.msra.mxu0 %v440
  %2756 = vmatprep.subr.bf16.mxu0 0
  %2757 = vmatpush1.bf16.msra.mxu0 %v441
  %2758 = vmatprep.subr.bf16.mxu0 0
  %2759 = vmatpush1.bf16.msra.mxu0 %v442
  %2760 = vmatprep.subr.bf16.mxu0 0
  %2761 = vmatpush1.bf16.msra.mxu0 %v443
  %2762 = vmatprep.subr.bf16.mxu0 0
  %2763 = vmatpush1.bf16.msra.mxu0 %v444
  %2764 = vmatprep.subr.bf16.mxu0 0
  %2765 = vmatpush1.bf16.msra.mxu0 0
  %2766 = vmatprep.subr.bf16.mxu0 0
  %2767 = vmatpush1.bf16.msra.mxu0 0
  %2768 = vmatprep.subr.bf16.mxu0 0
  %2769 = vmatpush1.bf16.msra.mxu0 0
  %2770 = vmatprep.subr.bf16.mxu0 0
  %2771 = vmatpush1.bf16.msra.mxu0 0
  %2772 = vmatprep.subr.bf16.mxu0 0
  %2773 = vmatpush1.bf16.msra.mxu0 0
  %2774 = vmatprep.subr.bf16.mxu0 0
  %2775 = vmatpush1.bf16.msra.mxu0 0
  %2776 = vmatprep.subr.bf16.mxu0 0
  %2777 = vmatpush1.bf16.msra.mxu0 0
  %2778 = vmatprep.subr.bf16.mxu0 0
  %2779 = vmatpush1.bf16.msra.mxu0 0
  %2780 = vmatprep.mubr.bf16.mxu0 0
  %2781 = vmatmul.mubr.bf16.gmra.mrb[0].mxu0 %v2656
  %v2782 = vpop.f32.mrb[0].mxu0
  %v2783 = vadd.f32 0.0, %v2782
  %v2784 = vpop.f32.mrb[0].mxu0
  %v2785 = vpop.f32.mrb[0].mxu0
  %v2786 = vadd.f32 0.0, %v2785
  %v2787 = vpop.f32.mrb[0].mxu0
  %2788 = vmatprep.mubr.bf16.mxu0 0
  %2789 = vmatmul.mubr.bf16.gmra.mrb[0].mxu0 %v2657
  %v2790 = vpop.f32.mrb[0].mxu0
  %v2791 = vadd.f32 0.0, %v2790
  %v2792 = vpop.f32.mrb[0].mxu0
  %v2793 = vpop.f32.mrb[0].mxu0
  %v2794 = vadd.f32 0.0, %v2793
  %v2795 = vpop.f32.mrb[0].mxu0
  %2796 = vmatprep.mubr.bf16.mxu0 0
  %2797 = vmatmul.mubr.bf16.gmra.mrb[0].mxu0 %v2658
  %v2798 = vpop.f32.mrb[0].mxu0
  %v2799 = vadd.f32 0.0, %v2798
  %v2800 = vpop.f32.mrb[0].mxu0
  %v2801 = vpop.f32.mrb[0].mxu0
  %v2802 = vadd.f32 0.0, %v2801
  %v2803 = vpop.f32.mrb[0].mxu0
  %2804 = vmatprep.mubr.bf16.mxu0 0
  %2805 = vmatmul.mubr.bf16.gmra.mrb[0].mxu0 %v2659
  %v2806 = vpop.f32.mrb[0].mxu0
  %v2807 = vadd.f32 0.0, %v2806
  %v2808 = vpop.f32.mrb[0].mxu0
  %v2809 = vpop.f32.mrb[0].mxu0
  %v2810 = vadd.f32 0.0, %v2809
  %v2811 = vpop.f32.mrb[0].mxu0
  %2812 = vmatprep.mubr.bf16.mxu0 0
  %2813 = vmatmul.mubr.bf16.gmra.mrb[0].mxu0 %v2660
  %v2814 = vpop.f32.mrb[0].mxu0
  %v2815 = vadd.f32 0.0, %v2814
  %v2816 = vpop.f32.mrb[0].mxu0
  %v2817 = vpop.f32.mrb[0].mxu0
  %v2818 = vadd.f32 0.0, %v2817
  %v2819 = vpop.f32.mrb[0].mxu0
  %2820 = vmatprep.mubr.bf16.mxu0 0
  %2821 = vmatmul.mubr.bf16.gmra.mrb[0].mxu0 %v2661
  %v2822 = vpop.f32.mrb[0].mxu0
  %v2823 = vadd.f32 0.0, %v2822
  %v2824 = vpop.f32.mrb[0].mxu0
  %v2825 = vpop.f32.mrb[0].mxu0
  %v2826 = vadd.f32 0.0, %v2825
  %v2827 = vpop.f32.mrb[0].mxu0
  %2828 = vmatprep.mubr.bf16.mxu0 0
  %2829 = vmatmul.mubr.bf16.gmra.mrb[0].mxu0 %v2662
  %v2830 = vpop.f32.mrb[0].mxu0
  %v2831 = vadd.f32 0.0, %v2830
  %v2832 = vpop.f32.mrb[0].mxu0
  %v2833 = vpop.f32.mrb[0].mxu0
  %v2834 = vadd.f32 0.0, %v2833
  %v2835 = vpop.f32.mrb[0].mxu0
  %2836 = vmatprep.mubr.bf16.mxu0 0
  %2837 = vmatmul.mubr.bf16.gmra.mrb[0].mxu0 %v2663
  %v2838 = vpop.f32.mrb[0].mxu0
  %v2839 = vadd.f32 0.0, %v2838
  %v2840 = vpop.f32.mrb[0].mxu0
  %v2841 = vpop.f32.mrb[0].mxu0
  %v2842 = vadd.f32 0.0, %v2841
  %v2843 = vpop.f32.mrb[0].mxu0
  %2844 = vmatprep.mubr.bf16.mxu0 0
  %2845 = vmatmul.mubr.bf16.gmra.mrb[0].mxu0 %v2664
  %v2846 = vpop.f32.mrb[0].mxu0
  %v2847 = vadd.f32 0.0, %v2846
  %v2848 = vpop.f32.mrb[0].mxu0
  %v2849 = vpop.f32.mrb[0].mxu0
  %v2850 = vadd.f32 0.0, %v2849
  %v2851 = vpop.f32.mrb[0].mxu0
  %2852 = vmatprep.mubr.bf16.mxu0 0
  %2853 = vmatmul.mubr.bf16.gmra.mrb[0].mxu0 %v2665
  %v2854 = vpop.f32.mrb[0].mxu0
  %v2855 = vadd.f32 0.0, %v2854
  %v2856 = vpop.f32.mrb[0].mxu0
  %v2857 = vpop.f32.mrb[0].mxu0
  %v2858 = vadd.f32 0.0, %v2857
  %v2859 = vpop.f32.mrb[0].mxu0
  %2860 = vmatprep.mubr.bf16.mxu0 0
  %2861 = vmatmul.mubr.bf16.gmra.mrb[0].mxu0 %v2666
  %v2862 = vpop.f32.mrb[0].mxu0
  %v2863 = vadd.f32 0.0, %v2862
  %v2864 = vpop.f32.mrb[0].mxu0
  %v2865 = vpop.f32.mrb[0].mxu0
  %v2866 = vadd.f32 0.0, %v2865
  %v2867 = vpop.f32.mrb[0].mxu0
  %2868 = vmatprep.mubr.bf16.mxu0 0
  %2869 = vmatmul.mubr.bf16.gmra.mrb[0].mxu0 %v2667
  %v2870 = vpop.f32.mrb[0].mxu0
  %v2871 = vadd.f32 0.0, %v2870
  %v2872 = vpop.f32.mrb[0].mxu0
  %v2873 = vpop.f32.mrb[0].mxu0
  %v2874 = vadd.f32 0.0, %v2873
  %v2875 = vpop.f32.mrb[0].mxu0
  %2876 = vmatprep.mubr.bf16.mxu0 0
  %2877 = vmatmul.mubr.bf16.gmra.mrb[0].mxu0 %v2668
  %v2878 = vpop.f32.mrb[0].mxu0
  %v2879 = vadd.f32 0.0, %v2878
  %v2880 = vpop.f32.mrb[0].mxu0
  %v2881 = vpop.f32.mrb[0].mxu0
  %v2882 = vadd.f32 0.0, %v2881
  %v2883 = vpop.f32.mrb[0].mxu0
  %2884 = vmatprep.mubr.bf16.mxu0 0
  %2885 = vmatmul.mubr.bf16.gmra.mrb[0].mxu0 %v2669
  %v2886 = vpop.f32.mrb[0].mxu0
  %v2887 = vadd.f32 0.0, %v2886
  %v2888 = vpop.f32.mrb[0].mxu0
  %v2889 = vpop.f32.mrb[0].mxu0
  %v2890 = vadd.f32 0.0, %v2889
  %v2891 = vpop.f32.mrb[0].mxu0
  %2892 = vmatprep.mubr.bf16.mxu0 0
  %2893 = vmatmul.mubr.bf16.gmra.mrb[0].mxu0 %v2670
  %v2894 = vpop.f32.mrb[0].mxu0
  %v2895 = vadd.f32 0.0, %v2894
  %v2896 = vpop.f32.mrb[0].mxu0
  %v2897 = vpop.f32.mrb[0].mxu0
  %v2898 = vadd.f32 0.0, %v2897
  %v2899 = vpop.f32.mrb[0].mxu0
  %2900 = vmatprep.mubr.bf16.mxu0 0
  %2901 = vmatmul.mubr.bf16.gmra.mrb[0].mxu0 %v2671
  %v2902 = vpop.f32.mrb[0].mxu0
  %v2903 = vadd.f32 0.0, %v2902
  %v2904 = vpop.f32.mrb[0].mxu0
  %v2905 = vpop.f32.mrb[0].mxu0
  %v2906 = vadd.f32 0.0, %v2905
  %v2907 = vpop.f32.mrb[0].mxu0
  %2908 = vmatprep.mubr.bf16.mxu0 0
  %2909 = vmatmul.mubr.bf16.gmra.mrb[0].mxu0 %v2672
  %v2910 = vpop.f32.mrb[0].mxu0
  %v2911 = vadd.f32 0.0, %v2910
  %v2912 = vpop.f32.mrb[0].mxu0
  %v2913 = vpop.f32.mrb[0].mxu0
  %v2914 = vadd.f32 0.0, %v2913
  %v2915 = vpop.f32.mrb[0].mxu0
  %2916 = vmatprep.mubr.bf16.mxu0 0
  %2917 = vmatmul.mubr.bf16.gmra.mrb[0].mxu0 %v2673
  %v2918 = vpop.f32.mrb[0].mxu0
  %v2919 = vadd.f32 0.0, %v2918
  %v2920 = vpop.f32.mrb[0].mxu0
  %v2921 = vpop.f32.mrb[0].mxu0
  %v2922 = vadd.f32 0.0, %v2921
  %v2923 = vpop.f32.mrb[0].mxu0
  %2924 = vmatprep.mubr.bf16.mxu0 0
  %2925 = vmatmul.mubr.bf16.gmra.mrb[0].mxu0 %v2674
  %v2926 = vpop.f32.mrb[0].mxu0
  %v2927 = vadd.f32 0.0, %v2926
  %v2928 = vpop.f32.mrb[0].mxu0
  %v2929 = vpop.f32.mrb[0].mxu0
  %v2930 = vadd.f32 0.0, %v2929
  %v2931 = vpop.f32.mrb[0].mxu0
  %2932 = vmatprep.mubr.bf16.mxu0 0
  %2933 = vmatmul.mubr.bf16.gmra.mrb[0].mxu0 %v2675
  %v2934 = vpop.f32.mrb[0].mxu0
  %v2935 = vadd.f32 0.0, %v2934
  %v2936 = vpop.f32.mrb[0].mxu0
  %v2937 = vpop.f32.mrb[0].mxu0
  %v2938 = vadd.f32 0.0, %v2937
  %v2939 = vpop.f32.mrb[0].mxu0
  %2940 = vmatprep.mubr.bf16.mxu0 0
  %2941 = vmatmul.mubr.bf16.gmra.mrb[0].mxu0 %v2676
  %v2942 = vpop.f32.mrb[0].mxu0
  %v2943 = vadd.f32 0.0, %v2942
  %v2944 = vpop.f32.mrb[0].mxu0
  %v2945 = vpop.f32.mrb[0].mxu0
  %v2946 = vadd.f32 0.0, %v2945
  %v2947 = vpop.f32.mrb[0].mxu0
  %2948 = vmatprep.mubr.bf16.mxu0 0
  %2949 = vmatmul.mubr.bf16.gmra.mrb[0].mxu0 %v2677
  %v2950 = vpop.f32.mrb[0].mxu0
  %v2951 = vadd.f32 0.0, %v2950
  %v2952 = vpop.f32.mrb[0].mxu0
  %v2953 = vpop.f32.mrb[0].mxu0
  %v2954 = vadd.f32 0.0, %v2953
  %v2955 = vpop.f32.mrb[0].mxu0
  %2956 = vmatprep.mubr.bf16.mxu0 0
  %2957 = vmatmul.mubr.bf16.gmra.mrb[0].mxu0 %v2678
  %v2958 = vpop.f32.mrb[0].mxu0
  %v2959 = vadd.f32 0.0, %v2958
  %v2960 = vpop.f32.mrb[0].mxu0
  %v2961 = vpop.f32.mrb[0].mxu0
  %v2962 = vadd.f32 0.0, %v2961
  %v2963 = vpop.f32.mrb[0].mxu0
  %2964 = vmatprep.mubr.bf16.mxu0 0
  %2965 = vmatmul.mubr.bf16.gmra.mrb[0].mxu0 %v2679
  %v2966 = vpop.f32.mrb[0].mxu0
  %v2967 = vadd.f32 0.0, %v2966
  %v2968 = vpop.f32.mrb[0].mxu0
  %v2969 = vpop.f32.mrb[0].mxu0
  %v2970 = vadd.f32 0.0, %v2969
  %v2971 = vpop.f32.mrb[0].mxu0
  %2972 = vmatprep.mubr.bf16.mxu0 0
  %2973 = vmatmul.mubr.bf16.gmra.mrb[0].mxu0 %v2680
  %v2974 = vpop.f32.mrb[0].mxu0
  %v2975 = vadd.f32 0.0, %v2974
  %v2976 = vpop.f32.mrb[0].mxu0
  %v2977 = vpop.f32.mrb[0].mxu0
  %v2978 = vadd.f32 0.0, %v2977
  %v2979 = vpop.f32.mrb[0].mxu0
  %2980 = vmatprep.mubr.bf16.mxu0 0
  %2981 = vmatmul.mubr.bf16.gmra.mrb[0].mxu0 %v2681
  %v2982 = vpop.f32.mrb[0].mxu0
  %v2983 = vadd.f32 0.0, %v2982
  %v2984 = vpop.f32.mrb[0].mxu0
  %v2985 = vpop.f32.mrb[0].mxu0
  %v2986 = vadd.f32 0.0, %v2985
  %v2987 = vpop.f32.mrb[0].mxu0
  %2988 = vmatprep.mubr.bf16.mxu0 0
  %2989 = vmatmul.mubr.bf16.gmra.mrb[0].mxu0 %v2682
  %v2990 = vpop.f32.mrb[0].mxu0
  %v2991 = vadd.f32 0.0, %v2990
  %v2992 = vpop.f32.mrb[0].mxu0
  %v2993 = vpop.f32.mrb[0].mxu0
  %v2994 = vadd.f32 0.0, %v2993
  %v2995 = vpop.f32.mrb[0].mxu0
  %2996 = vmatprep.mubr.bf16.mxu0 0
  %2997 = vmatmul.mubr.bf16.gmra.mrb[0].mxu0 %v2683
  %v2998 = vpop.f32.mrb[0].mxu0
  %v2999 = vadd.f32 0.0, %v2998
  %v3000 = vpop.f32.mrb[0].mxu0
  %v3001 = vpop.f32.mrb[0].mxu0
  %v3002 = vadd.f32 0.0, %v3001
  %v3003 = vpop.f32.mrb[0].mxu0
  %3004 = vmatprep.mubr.bf16.mxu0 0
  %3005 = vmatmul.mubr.bf16.gmra.mrb[0].mxu0 %v2684
  %v3006 = vpop.f32.mrb[0].mxu0
  %v3007 = vadd.f32 0.0, %v3006
  %v3008 = vpop.f32.mrb[0].mxu0
  %v3009 = vpop.f32.mrb[0].mxu0
  %v3010 = vadd.f32 0.0, %v3009
  %v3011 = vpop.f32.mrb[0].mxu0
  %3012 = vmatprep.mubr.bf16.mxu0 0
  %3013 = vmatmul.mubr.bf16.gmra.mrb[0].mxu0 %v2685
  %v3014 = vpop.f32.mrb[0].mxu0
  %v3015 = vadd.f32 0.0, %v3014
  %v3016 = vpop.f32.mrb[0].mxu0
  %v3017 = vpop.f32.mrb[0].mxu0
  %v3018 = vadd.f32 0.0, %v3017
  %v3019 = vpop.f32.mrb[0].mxu0
  %3020 = vmatprep.mubr.bf16.mxu0 0
  %3021 = vmatmul.mubr.bf16.gmra.mrb[0].mxu0 %v2686
  %v3022 = vpop.f32.mrb[0].mxu0
  %v3023 = vadd.f32 0.0, %v3022
  %v3024 = vpop.f32.mrb[0].mxu0
  %v3025 = vpop.f32.mrb[0].mxu0
  %v3026 = vadd.f32 0.0, %v3025
  %v3027 = vpop.f32.mrb[0].mxu0
  %3028 = vmatprep.mubr.bf16.mxu0 0
  %3029 = vmatmul.mubr.bf16.gmra.mrb[0].mxu0 %v2687
  %v3030 = vpop.f32.mrb[0].mxu0
  %v3031 = vadd.f32 0.0, %v3030
  %v3032 = vpop.f32.mrb[0].mxu0
  %v3033 = vpop.f32.mrb[0].mxu0
  %v3034 = vadd.f32 0.0, %v3033
  %v3035 = vpop.f32.mrb[0].mxu0
  %3036 = vmatprep.mubr.bf16.mxu0 0
  %3037 = vmatmul.mubr.bf16.gmra.mrb[0].mxu0 %v2688
  %v3038 = vpop.f32.mrb[0].mxu0
  %v3039 = vadd.f32 0.0, %v3038
  %v3040 = vpop.f32.mrb[0].mxu0
  %v3041 = vpop.f32.mrb[0].mxu0
  %v3042 = vadd.f32 0.0, %v3041
  %v3043 = vpop.f32.mrb[0].mxu0
  %3044 = vmatprep.mubr.bf16.mxu0 0
  %3045 = vmatmul.mubr.bf16.gmra.mrb[0].mxu0 %v2689
  %v3046 = vpop.f32.mrb[0].mxu0
  %v3047 = vadd.f32 0.0, %v3046
  %v3048 = vpop.f32.mrb[0].mxu0
  %v3049 = vpop.f32.mrb[0].mxu0
  %v3050 = vadd.f32 0.0, %v3049
  %v3051 = vpop.f32.mrb[0].mxu0
  %3052 = vmatprep.mubr.bf16.mxu0 0
  %3053 = vmatmul.mubr.bf16.gmra.mrb[0].mxu0 %v2690
  %v3054 = vpop.f32.mrb[0].mxu0
  %v3055 = vadd.f32 0.0, %v3054
  %v3056 = vpop.f32.mrb[0].mxu0
  %v3057 = vpop.f32.mrb[0].mxu0
  %v3058 = vadd.f32 0.0, %v3057
  %v3059 = vpop.f32.mrb[0].mxu0
  %3060 = vmatprep.mubr.bf16.mxu0 0
  %3061 = vmatmul.mubr.bf16.gmra.mrb[0].mxu0 %v2691
  %v3062 = vpop.f32.mrb[0].mxu0
  %v3063 = vadd.f32 0.0, %v3062
  %v3064 = vpop.f32.mrb[0].mxu0
  %v3065 = vpop.f32.mrb[0].mxu0
  %v3066 = vadd.f32 0.0, %v3065
  %v3067 = vpop.f32.mrb[0].mxu0
  %3068 = vmatprep.mubr.bf16.mxu0 0
  %3069 = vmatmul.mubr.bf16.gmra.mrb[0].mxu0 %v2692
  %v3070 = vpop.f32.mrb[0].mxu0
  %v3071 = vadd.f32 0.0, %v3070
  %v3072 = vpop.f32.mrb[0].mxu0
  %v3073 = vpop.f32.mrb[0].mxu0
  %v3074 = vadd.f32 0.0, %v3073
  %v3075 = vpop.f32.mrb[0].mxu0
  %3076 = vmatprep.mubr.bf16.mxu0 0
  %3077 = vmatmul.mubr.bf16.gmra.mrb[0].mxu0 %v2693
  %v3078 = vpop.f32.mrb[0].mxu0
  %v3079 = vadd.f32 0.0, %v3078
  %v3080 = vpop.f32.mrb[0].mxu0
  %v3081 = vpop.f32.mrb[0].mxu0
  %v3082 = vadd.f32 0.0, %v3081
  %v3083 = vpop.f32.mrb[0].mxu0
  %3084 = vmatprep.mubr.bf16.mxu0 0
  %3085 = vmatmul.mubr.bf16.gmra.mrb[0].mxu0 %v2694
  %v3086 = vpop.f32.mrb[0].mxu0
  %v3087 = vadd.f32 0.0, %v3086
  %v3088 = vpop.f32.mrb[0].mxu0
  %v3089 = vpop.f32.mrb[0].mxu0
  %v3090 = vadd.f32 0.0, %v3089
  %v3091 = vpop.f32.mrb[0].mxu0
  %3092 = vmatprep.mubr.bf16.mxu0 0
  %3093 = vmatmul.mubr.bf16.gmra.mrb[0].mxu0 %v2695
  %v3094 = vpop.f32.mrb[0].mxu0
  %v3095 = vadd.f32 0.0, %v3094
  %v3096 = vpop.f32.mrb[0].mxu0
  %v3097 = vpop.f32.mrb[0].mxu0
  %v3098 = vadd.f32 0.0, %v3097
  %v3099 = vpop.f32.mrb[0].mxu0
  %3100 = vmatprep.mubr.bf16.mxu0 0
  %3101 = vmatmul.mubr.bf16.gmra.mrb[0].mxu0 %v2696
  %v3102 = vpop.f32.mrb[0].mxu0
  %v3103 = vadd.f32 0.0, %v3102
  %v3104 = vpop.f32.mrb[0].mxu0
  %v3105 = vpop.f32.mrb[0].mxu0
  %v3106 = vadd.f32 0.0, %v3105
  %v3107 = vpop.f32.mrb[0].mxu0
  %3108 = vmatprep.mubr.bf16.mxu0 0
  %3109 = vmatmul.mubr.bf16.gmra.mrb[0].mxu0 %v2697
  %v3110 = vpop.f32.mrb[0].mxu0
  %v3111 = vadd.f32 0.0, %v3110
  %v3112 = vpop.f32.mrb[0].mxu0
  %v3113 = vpop.f32.mrb[0].mxu0
  %v3114 = vadd.f32 0.0, %v3113
  %v3115 = vpop.f32.mrb[0].mxu0
  %3116 = vmatprep.mubr.bf16.mxu0 0
  %3117 = vmatmul.mubr.bf16.gmra.mrb[0].mxu0 %v2698
  %v3118 = vpop.f32.mrb[0].mxu0
  %v3119 = vadd.f32 0.0, %v3118
  %v3120 = vpop.f32.mrb[0].mxu0
  %v3121 = vpop.f32.mrb[0].mxu0
  %v3122 = vadd.f32 0.0, %v3121
  %v3123 = vpop.f32.mrb[0].mxu0
  %3124 = vmatprep.mubr.bf16.mxu0 0
  %3125 = vmatmul.mubr.bf16.gmra.mrb[0].mxu0 %v2699
  %v3126 = vpop.f32.mrb[0].mxu0
  %v3127 = vadd.f32 0.0, %v3126
  %v3128 = vpop.f32.mrb[0].mxu0
  %v3129 = vpop.f32.mrb[0].mxu0
  %v3130 = vadd.f32 0.0, %v3129
  %v3131 = vpop.f32.mrb[0].mxu0
  %3132 = vmatprep.mubr.bf16.mxu0 0
  %3133 = vmatmul.mubr.bf16.gmra.mrb[0].mxu0 %v2700
  %v3134 = vpop.f32.mrb[0].mxu0
  %v3135 = vadd.f32 0.0, %v3134
  %v3136 = vpop.f32.mrb[0].mxu0
  %v3137 = vpop.f32.mrb[0].mxu0
  %v3138 = vadd.f32 0.0, %v3137
  %v3139 = vpop.f32.mrb[0].mxu0
  %3140 = vmatprep.mubr.bf16.mxu0 0
  %3141 = vmatmul.mubr.bf16.gmra.mrb[0].mxu0 %v2701
  %v3142 = vpop.f32.mrb[0].mxu0
  %v3143 = vadd.f32 0.0, %v3142
  %v3144 = vpop.f32.mrb[0].mxu0
  %v3145 = vpop.f32.mrb[0].mxu0
  %v3146 = vpop.f32.mrb[0].mxu0
  %3147 = vdwg.mxu0
  %v3148 = vmax.f32 %v488, %v1253
  %v3149 = vmax.f32 %v491, %v1256
  %v3150 = vmax.f32 %v496, %v1261
  %v3151 = vmax.f32 %v499, %v1264
  %v3152 = vmax.f32 %v504, %v1269
  %v3153 = vmax.f32 %v507, %v1272
  %v3154 = vmax.f32 %v512, %v1277
  %v3155 = vmax.f32 %v515, %v1280
  %v3156 = vmax.f32 %v520, %v1285
  %v3157 = vmax.f32 %v523, %v1288
  %v3158 = vmax.f32 %v528, %v1293
  %v3159 = vmax.f32 %v531, %v1296
  %v3160 = vmax.f32 %v536, %v1301
  %v3161 = vmax.f32 %v539, %v1304
  %v3162 = vmax.f32 %v544, %v1309
  %v3163 = vmax.f32 %v547, %v1312
  %v3164 = vmax.f32 %v552, %v1317
  %v3165 = vmax.f32 %v555, %v1320
  %v3166 = vmax.f32 %v560, %v1325
  %v3167 = vmax.f32 %v563, %v1328
  %v3168 = vmax.f32 %v568, %v1333
  %v3169 = vmax.f32 %v571, %v1336
  %v3170 = vmax.f32 %v576, %v1341
  %v3171 = vmax.f32 %v579, %v1344
  %v3172 = vmax.f32 %v584, %v1349
  %v3173 = vmax.f32 %v587, %v1352
  %v3174 = vmax.f32 %v592, %v1357
  %v3175 = vmax.f32 %v595, %v1360
  %v3176 = vmax.f32 %v600, %v1365
  %v3177 = vmax.f32 %v603, %v1368
  %v3178 = vmax.f32 %v608, %v1373
  %v3179 = vmax.f32 %v611, %v1376
  %v3180 = vmax.f32 %v616, %v1381
  %v3181 = vmax.f32 %v619, %v1384
  %v3182 = vmax.f32 %v624, %v1389
  %v3183 = vmax.f32 %v627, %v1392
  %v3184 = vmax.f32 %v632, %v1397
  %v3185 = vmax.f32 %v635, %v1400
  %v3186 = vmax.f32 %v640, %v1405
  %v3187 = vmax.f32 %v643, %v1408
  %v3188 = vmax.f32 %v648, %v1413
  %v3189 = vmax.f32 %v651, %v1416
  %v3190 = vmax.f32 %v656, %v1421
  %v3191 = vmax.f32 %v659, %v1424
  %v3192 = vmax.f32 %v664, %v1429
  %v3193 = vmax.f32 %v667, %v1432
  %v3194 = vmax.f32 %v672, %v1437
  %v3195 = vmax.f32 %v675, %v1440
  %v3196 = vmax.f32 %v680, %v1445
  %v3197 = vmax.f32 %v683, %v1448
  %v3198 = vmax.f32 %v688, %v1453
  %v3199 = vmax.f32 %v691, %v1456
  %v3200 = vmax.f32 %v696, %v1461
  %v3201 = vmax.f32 %v699, %v1464
  %v3202 = vmax.f32 %v704, %v1469
  %v3203 = vmax.f32 %v707, %v1472
  %v3204 = vmax.f32 %v712, %v1477
  %v3205 = vmax.f32 %v715, %v1480
  %v3206 = vmax.f32 %v720, %v1485
  %v3207 = vmax.f32 %v723, %v1488
  %v3208 = vmax.f32 %v728, %v1493
  %v3209 = vmax.f32 %v731, %v1496
  %v3210 = vmax.f32 %v736, %v1501
  %v3211 = vmax.f32 %v739, %v1504
  %v3212 = vmax.f32 %v744, %v1509
  %v3213 = vmax.f32 %v747, %v1512
  %v3214 = vmax.f32 %v752, %v1517
  %v3215 = vmax.f32 %v755, %v1520
  %v3216 = vmax.f32 %v760, %v1525
  %v3217 = vmax.f32 %v763, %v1528
  %v3218 = vmax.f32 %v768, %v1533
  %v3219 = vmax.f32 %v771, %v1536
  %v3220 = vmax.f32 %v776, %v1541
  %v3221 = vmax.f32 %v779, %v1544
  %v3222 = vmax.f32 %v784, %v1549
  %v3223 = vmax.f32 %v787, %v1552
  %v3224 = vmax.f32 %v792, %v1557
  %v3225 = vmax.f32 %v795, %v1560
  %v3226 = vmax.f32 %v800, %v1565
  %v3227 = vmax.f32 %v803, %v1568
  %v3228 = vmax.f32 %v808, %v1573
  %v3229 = vmax.f32 %v811, %v1576
  %v3230 = vmax.f32 %v816, %v1581
  %v3231 = vmax.f32 %v819, %v1584
  %v3232 = vmax.f32 %v824, %v1589
  %v3233 = vmax.f32 %v827, %v1592
  %v3234 = vmax.f32 %v832, %v1597
  %v3235 = vmax.f32 %v835, %v1600
  %v3236 = vmax.f32 %v840, %v1605
  %v3237 = vmax.f32 %v843, %v1608
  %v3238 = vmax.f32 %v848, %v1613
  %v3239 = vmax.f32 %v2018, %v2783
  %v3240 = vmax.f32 %v2021, %v2786
  %v3241 = vmax.f32 %v2026, %v2791
  %v3242 = vmax.f32 %v2029, %v2794
  %v3243 = vmax.f32 %v2034, %v2799
  %v3244 = vmax.f32 %v2037, %v2802
  %v3245 = vmax.f32 %v2042, %v2807
  %v3246 = vmax.f32 %v2045, %v2810
  %v3247 = vmax.f32 %v2050, %v2815
  %v3248 = vmax.f32 %v2053, %v2818
  %v3249 = vmax.f32 %v2058, %v2823
  %v3250 = vmax.f32 %v2061, %v2826
  %v3251 = vmax.f32 %v2066, %v2831
  %v3252 = vmax.f32 %v2069, %v2834
  %v3253 = vmax.f32 %v2074, %v2839
  %v3254 = vmax.f32 %v2077, %v2842
  %v3255 = vmax.f32 %v2082, %v2847
  %v3256 = vmax.f32 %v2085, %v2850
  %v3257 = vmax.f32 %v2090, %v2855
  %v3258 = vmax.f32 %v2093, %v2858
  %v3259 = vmax.f32 %v2098, %v2863
  %v3260 = vmax.f32 %v2101, %v2866
  %v3261 = vmax.f32 %v2106, %v2871
  %v3262 = vmax.f32 %v2109, %v2874
  %v3263 = vmax.f32 %v2114, %v2879
  %v3264 = vmax.f32 %v2117, %v2882
  %v3265 = vmax.f32 %v2122, %v2887
  %v3266 = vmax.f32 %v2125, %v2890
  %v3267 = vmax.f32 %v2130, %v2895
  %v3268 = vmax.f32 %v2133, %v2898
  %v3269 = vmax.f32 %v2138, %v2903
  %v3270 = vmax.f32 %v2141, %v2906
  %v3271 = vmax.f32 %v2146, %v2911
  %v3272 = vmax.f32 %v2149, %v2914
  %v3273 = vmax.f32 %v2154, %v2919
  %v3274 = vmax.f32 %v2157, %v2922
  %v3275 = vmax.f32 %v2162, %v2927
  %v3276 = vmax.f32 %v2165, %v2930
  %v3277 = vmax.f32 %v2170, %v2935
  %v3278 = vmax.f32 %v2173, %v2938
  %v3279 = vmax.f32 %v2178, %v2943
  %v3280 = vmax.f32 %v2181, %v2946
  %v3281 = vmax.f32 %v2186, %v2951
  %v3282 = vmax.f32 %v2189, %v2954
  %v3283 = vmax.f32 %v2194, %v2959
  %v3284 = vmax.f32 %v2197, %v2962
  %v3285 = vmax.f32 %v2202, %v2967
  %v3286 = vmax.f32 %v2205, %v2970
  %v3287 = vmax.f32 %v2210, %v2975
  %v3288 = vmax.f32 %v2213, %v2978
  %v3289 = vmax.f32 %v2218, %v2983
  %v3290 = vmax.f32 %v2221, %v2986
  %v3291 = vmax.f32 %v2226, %v2991
  %v3292 = vmax.f32 %v2229, %v2994
  %v3293 = vmax.f32 %v2234, %v2999
  %v3294 = vmax.f32 %v2237, %v3002
  %v3295 = vmax.f32 %v2242, %v3007
  %v3296 = vmax.f32 %v2245, %v3010
  %v3297 = vmax.f32 %v2250, %v3015
  %v3298 = vmax.f32 %v2253, %v3018
  %v3299 = vmax.f32 %v2258, %v3023
  %v3300 = vmax.f32 %v2261, %v3026
  %v3301 = vmax.f32 %v2266, %v3031
  %v3302 = vmax.f32 %v2269, %v3034
  %v3303 = vmax.f32 %v2274, %v3039
  %v3304 = vmax.f32 %v2277, %v3042
  %v3305 = vmax.f32 %v2282, %v3047
  %v3306 = vmax.f32 %v2285, %v3050
  %v3307 = vmax.f32 %v2290, %v3055
  %v3308 = vmax.f32 %v2293, %v3058
  %v3309 = vmax.f32 %v2298, %v3063
  %v3310 = vmax.f32 %v2301, %v3066
  %v3311 = vmax.f32 %v2306, %v3071
  %v3312 = vmax.f32 %v2309, %v3074
  %v3313 = vmax.f32 %v2314, %v3079
  %v3314 = vmax.f32 %v2317, %v3082
  %v3315 = vmax.f32 %v2322, %v3087
  %v3316 = vmax.f32 %v2325, %v3090
  %v3317 = vmax.f32 %v2330, %v3095
  %v3318 = vmax.f32 %v2333, %v3098
  %v3319 = vmax.f32 %v2338, %v3103
  %v3320 = vmax.f32 %v2341, %v3106
  %v3321 = vmax.f32 %v2346, %v3111
  %v3322 = vmax.f32 %v2349, %v3114
  %v3323 = vmax.f32 %v2354, %v3119
  %v3324 = vmax.f32 %v2357, %v3122
  %v3325 = vmax.f32 %v2362, %v3127
  %v3326 = vmax.f32 %v2365, %v3130
  %v3327 = vmax.f32 %v2370, %v3135
  %v3328 = vmax.f32 %v2373, %v3138
  %v3329 = vmax.f32 %v2378, %v3143
  %v3330 = vmax.f32 %v3148, %v3239
  %v3331 = vmax.f32 %v3149, %v3240
  %v3332 = vmax.f32 %v3150, %v3241
  %v3333 = vmax.f32 %v3151, %v3242
  %v3334 = vmax.f32 %v3152, %v3243
  %v3335 = vmax.f32 %v3153, %v3244
  %v3336 = vmax.f32 %v3154, %v3245
  %v3337 = vmax.f32 %v3155, %v3246
  %v3338 = vmax.f32 %v3156, %v3247
  %v3339 = vmax.f32 %v3157, %v3248
  %v3340 = vmax.f32 %v3158, %v3249
  %v3341 = vmax.f32 %v3159, %v3250
  %v3342 = vmax.f32 %v3160, %v3251
  %v3343 = vmax.f32 %v3161, %v3252
  %v3344 = vmax.f32 %v3162, %v3253
  %v3345 = vmax.f32 %v3163, %v3254
  %v3346 = vmax.f32 %v3164, %v3255
  %v3347 = vmax.f32 %v3165, %v3256
  %v3348 = vmax.f32 %v3166, %v3257
  %v3349 = vmax.f32 %v3167, %v3258
  %v3350 = vmax.f32 %v3168, %v3259
  %v3351 = vmax.f32 %v3169, %v3260
  %v3352 = vmax.f32 %v3170, %v3261
  %v3353 = vmax.f32 %v3171, %v3262
  %v3354 = vmax.f32 %v3172, %v3263
  %v3355 = vmax.f32 %v3173, %v3264
  %v3356 = vmax.f32 %v3174, %v3265
  %v3357 = vmax.f32 %v3175, %v3266
  %v3358 = vmax.f32 %v3176, %v3267
  %v3359 = vmax.f32 %v3177, %v3268
  %v3360 = vmax.f32 %v3178, %v3269
  %v3361 = vmax.f32 %v3179, %v3270
  %v3362 = vmax.f32 %v3180, %v3271
  %v3363 = vmax.f32 %v3181, %v3272
  %v3364 = vmax.f32 %v3182, %v3273
  %v3365 = vmax.f32 %v3183, %v3274
  %v3366 = vmax.f32 %v3184, %v3275
  %v3367 = vmax.f32 %v3185, %v3276
  %v3368 = vmax.f32 %v3186, %v3277
  %v3369 = vmax.f32 %v3187, %v3278
  %v3370 = vmax.f32 %v3188, %v3279
  %v3371 = vmax.f32 %v3189, %v3280
  %v3372 = vmax.f32 %v3190, %v3281
  %v3373 = vmax.f32 %v3191, %v3282
  %v3374 = vmax.f32 %v3192, %v3283
  %v3375 = vmax.f32 %v3193, %v3284
  %v3376 = vmax.f32 %v3194, %v3285
  %v3377 = vmax.f32 %v3195, %v3286
  %v3378 = vmax.f32 %v3196, %v3287
  %v3379 = vmax.f32 %v3197, %v3288
  %v3380 = vmax.f32 %v3198, %v3289
  %v3381 = vmax.f32 %v3199, %v3290
  %v3382 = vmax.f32 %v3200, %v3291
  %v3383 = vmax.f32 %v3201, %v3292
  %v3384 = vmax.f32 %v3202, %v3293
  %v3385 = vmax.f32 %v3203, %v3294
  %v3386 = vmax.f32 %v3204, %v3295
  %v3387 = vmax.f32 %v3205, %v3296
  %v3388 = vmax.f32 %v3206, %v3297
  %v3389 = vmax.f32 %v3207, %v3298
  %v3390 = vmax.f32 %v3208, %v3299
  %v3391 = vmax.f32 %v3209, %v3300
  %v3392 = vmax.f32 %v3210, %v3301
  %v3393 = vmax.f32 %v3211, %v3302
  %v3394 = vmax.f32 %v3212, %v3303
  %v3395 = vmax.f32 %v3213, %v3304
  %v3396 = vmax.f32 %v3214, %v3305
  %v3397 = vmax.f32 %v3215, %v3306
  %v3398 = vmax.f32 %v3216, %v3307
  %v3399 = vmax.f32 %v3217, %v3308
  %v3400 = vmax.f32 %v3218, %v3309
  %v3401 = vmax.f32 %v3219, %v3310
  %v3402 = vmax.f32 %v3220, %v3311
  %v3403 = vmax.f32 %v3221, %v3312
  %v3404 = vmax.f32 %v3222, %v3313
  %v3405 = vmax.f32 %v3223, %v3314
  %v3406 = vmax.f32 %v3224, %v3315
  %v3407 = vmax.f32 %v3225, %v3316
  %v3408 = vmax.f32 %v3226, %v3317
  %v3409 = vmax.f32 %v3227, %v3318
  %v3410 = vmax.f32 %v3228, %v3319
  %v3411 = vmax.f32 %v3229, %v3320
  %v3412 = vmax.f32 %v3230, %v3321
  %v3413 = vmax.f32 %v3231, %v3322
  %v3414 = vmax.f32 %v3232, %v3323
  %v3415 = vmax.f32 %v3233, %v3324
  %v3416 = vmax.f32 %v3234, %v3325
  %v3417 = vmax.f32 %v3235, %v3326
  %v3418 = vmax.f32 %v3236, %v3327
  %v3419 = vmax.f32 %v3237, %v3328
  %v3420 = vmax.f32 %v3238, %v3329
  %v3421 = vld [vmem:[%s5] sm:$0x1]
  %v3423 = vlaneseq
  %v3424 = vshrl.u32 %v3423, 7
  %v3425 = vsub.s32 0, %v3424
  %v3426 = vrot.slane %v3421, %v3425
  %v3428 = vadd.f32 %v3330, %v3426
  %v3429 = vadd.f32 %v3331, %v3426
  %v3430 = vadd.f32 %v3332, %v3426
  %v3431 = vadd.f32 %v3333, %v3426
  %v3432 = vadd.f32 %v3334, %v3426
  %v3433 = vadd.f32 %v3335, %v3426
  %v3434 = vadd.f32 %v3336, %v3426
  %v3435 = vadd.f32 %v3337, %v3426
  %v3436 = vadd.f32 %v3338, %v3426
  %v3437 = vadd.f32 %v3339, %v3426
  %v3438 = vadd.f32 %v3340, %v3426
  %v3439 = vadd.f32 %v3341, %v3426
  %v3440 = vadd.f32 %v3342, %v3426
  %v3441 = vadd.f32 %v3343, %v3426
  %v3442 = vadd.f32 %v3344, %v3426
  %v3443 = vadd.f32 %v3345, %v3426
  %v3444 = vadd.f32 %v3346, %v3426
  %v3445 = vadd.f32 %v3347, %v3426
  %v3446 = vadd.f32 %v3348, %v3426
  %v3447 = vadd.f32 %v3349, %v3426
  %v3448 = vadd.f32 %v3350, %v3426
  %v3449 = vadd.f32 %v3351, %v3426
  %v3450 = vadd.f32 %v3352, %v3426
  %v3451 = vadd.f32 %v3353, %v3426
  %v3452 = vadd.f32 %v3354, %v3426
  %v3453 = vadd.f32 %v3355, %v3426
  %v3454 = vadd.f32 %v3356, %v3426
  %v3455 = vadd.f32 %v3357, %v3426
  %v3456 = vadd.f32 %v3358, %v3426
  %v3457 = vadd.f32 %v3359, %v3426
  %v3458 = vadd.f32 %v3360, %v3426
  %v3459 = vadd.f32 %v3361, %v3426
  %v3460 = vadd.f32 %v3362, %v3426
  %v3461 = vadd.f32 %v3363, %v3426
  %v3462 = vadd.f32 %v3364, %v3426
  %v3463 = vadd.f32 %v3365, %v3426
  %v3464 = vadd.f32 %v3366, %v3426
  %v3465 = vadd.f32 %v3367, %v3426
  %v3466 = vadd.f32 %v3368, %v3426
  %v3467 = vadd.f32 %v3369, %v3426
  %v3468 = vadd.f32 %v3370, %v3426
  %v3469 = vadd.f32 %v3371, %v3426
  %v3470 = vadd.f32 %v3372, %v3426
  %v3471 = vadd.f32 %v3373, %v3426
  %v3472 = vadd.f32 %v3374, %v3426
  %v3473 = vadd.f32 %v3375, %v3426
  %v3474 = vadd.f32 %v3376, %v3426
  %v3475 = vadd.f32 %v3377, %v3426
  %v3476 = vadd.f32 %v3378, %v3426
  %v3477 = vadd.f32 %v3379, %v3426
  %v3478 = vadd.f32 %v3380, %v3426
  %v3479 = vadd.f32 %v3381, %v3426
  %v3480 = vadd.f32 %v3382, %v3426
  %v3481 = vadd.f32 %v3383, %v3426
  %v3482 = vadd.f32 %v3384, %v3426
  %v3483 = vadd.f32 %v3385, %v3426
  %v3484 = vadd.f32 %v3386, %v3426
  %v3485 = vadd.f32 %v3387, %v3426
  %v3486 = vadd.f32 %v3388, %v3426
  %v3487 = vadd.f32 %v3389, %v3426
  %v3488 = vadd.f32 %v3390, %v3426
  %v3489 = vadd.f32 %v3391, %v3426
  %v3490 = vadd.f32 %v3392, %v3426
  %v3491 = vadd.f32 %v3393, %v3426
  %v3492 = vadd.f32 %v3394, %v3426
  %v3493 = vadd.f32 %v3395, %v3426
  %v3494 = vadd.f32 %v3396, %v3426
  %v3495 = vadd.f32 %v3397, %v3426
  %v3496 = vadd.f32 %v3398, %v3426
  %v3497 = vadd.f32 %v3399, %v3426
  %v3498 = vadd.f32 %v3400, %v3426
  %v3499 = vadd.f32 %v3401, %v3426
  %v3500 = vadd.f32 %v3402, %v3426
  %v3501 = vadd.f32 %v3403, %v3426
  %v3502 = vadd.f32 %v3404, %v3426
  %v3503 = vadd.f32 %v3405, %v3426
  %v3504 = vadd.f32 %v3406, %v3426
  %v3505 = vadd.f32 %v3407, %v3426
  %v3506 = vadd.f32 %v3408, %v3426
  %v3507 = vadd.f32 %v3409, %v3426
  %v3508 = vadd.f32 %v3410, %v3426
  %v3509 = vadd.f32 %v3411, %v3426
  %v3510 = vadd.f32 %v3412, %v3426
  %v3511 = vadd.f32 %v3413, %v3426
  %v3512 = vadd.f32 %v3414, %v3426
  %v3513 = vadd.f32 %v3415, %v3426
  %v3514 = vadd.f32 %v3416, %v3426
  %v3515 = vadd.f32 %v3417, %v3426
  %v3516 = vadd.f32 %v3418, %v3426
  %v3517 = vadd.f32 %v3419, %v3426
  %v3518 = vadd.f32 %v3420, %v3426
  %v3519 = vmax.f32 %v3428, 0.0
  %v3520 = vmax.f32 %v3429, 0.0
  %v3521 = vmax.f32 %v3430, 0.0
  %v3522 = vmax.f32 %v3431, 0.0
  %v3523 = vmax.f32 %v3432, 0.0
  %v3524 = vmax.f32 %v3433, 0.0
  %v3525 = vmax.f32 %v3434, 0.0
  %v3526 = vmax.f32 %v3435, 0.0
  %v3527 = vmax.f32 %v3436, 0.0
  %v3528 = vmax.f32 %v3437, 0.0
  %v3529 = vmax.f32 %v3438, 0.0
  %v3530 = vmax.f32 %v3439, 0.0
  %v3531 = vmax.f32 %v3440, 0.0
  %v3532 = vmax.f32 %v3441, 0.0
  %v3533 = vmax.f32 %v3442, 0.0
  %v3534 = vmax.f32 %v3443, 0.0
  %v3535 = vmax.f32 %v3444, 0.0
  %v3536 = vmax.f32 %v3445, 0.0
  %v3537 = vmax.f32 %v3446, 0.0
  %v3538 = vmax.f32 %v3447, 0.0
  %v3539 = vmax.f32 %v3448, 0.0
  %v3540 = vmax.f32 %v3449, 0.0
  %v3541 = vmax.f32 %v3450, 0.0
  %v3542 = vmax.f32 %v3451, 0.0
  %v3543 = vmax.f32 %v3452, 0.0
  %v3544 = vmax.f32 %v3453, 0.0
  %v3545 = vmax.f32 %v3454, 0.0
  %v3546 = vmax.f32 %v3455, 0.0
  %v3547 = vmax.f32 %v3456, 0.0
  %v3548 = vmax.f32 %v3457, 0.0
  %v3549 = vmax.f32 %v3458, 0.0
  %v3550 = vmax.f32 %v3459, 0.0
  %v3551 = vmax.f32 %v3460, 0.0
  %v3552 = vmax.f32 %v3461, 0.0
  %v3553 = vmax.f32 %v3462, 0.0
  %v3554 = vmax.f32 %v3463, 0.0
  %v3555 = vmax.f32 %v3464, 0.0
  %v3556 = vmax.f32 %v3465, 0.0
  %v3557 = vmax.f32 %v3466, 0.0
  %v3558 = vmax.f32 %v3467, 0.0
  %v3559 = vmax.f32 %v3468, 0.0
  %v3560 = vmax.f32 %v3469, 0.0
  %v3561 = vmax.f32 %v3470, 0.0
  %v3562 = vmax.f32 %v3471, 0.0
  %v3563 = vmax.f32 %v3472, 0.0
  %v3564 = vmax.f32 %v3473, 0.0
  %v3565 = vmax.f32 %v3474, 0.0
  %v3566 = vmax.f32 %v3475, 0.0
  %v3567 = vmax.f32 %v3476, 0.0
  %v3568 = vmax.f32 %v3477, 0.0
  %v3569 = vmax.f32 %v3478, 0.0
  %v3570 = vmax.f32 %v3479, 0.0
  %v3571 = vmax.f32 %v3480, 0.0
  %v3572 = vmax.f32 %v3481, 0.0
  %v3573 = vmax.f32 %v3482, 0.0
  %v3574 = vmax.f32 %v3483, 0.0
  %v3575 = vmax.f32 %v3484, 0.0
  %v3576 = vmax.f32 %v3485, 0.0
  %v3577 = vmax.f32 %v3486, 0.0
  %v3578 = vmax.f32 %v3487, 0.0
  %v3579 = vmax.f32 %v3488, 0.0
  %v3580 = vmax.f32 %v3489, 0.0
  %v3581 = vmax.f32 %v3490, 0.0
  %v3582 = vmax.f32 %v3491, 0.0
  %v3583 = vmax.f32 %v3492, 0.0
  %v3584 = vmax.f32 %v3493, 0.0
  %v3585 = vmax.f32 %v3494, 0.0
  %v3586 = vmax.f32 %v3495, 0.0
  %v3587 = vmax.f32 %v3496, 0.0
  %v3588 = vmax.f32 %v3497, 0.0
  %v3589 = vmax.f32 %v3498, 0.0
  %v3590 = vmax.f32 %v3499, 0.0
  %v3591 = vmax.f32 %v3500, 0.0
  %v3592 = vmax.f32 %v3501, 0.0
  %v3593 = vmax.f32 %v3502, 0.0
  %v3594 = vmax.f32 %v3503, 0.0
  %v3595 = vmax.f32 %v3504, 0.0
  %v3596 = vmax.f32 %v3505, 0.0
  %v3597 = vmax.f32 %v3506, 0.0
  %v3598 = vmax.f32 %v3507, 0.0
  %v3599 = vmax.f32 %v3508, 0.0
  %v3600 = vmax.f32 %v3509, 0.0
  %v3601 = vmax.f32 %v3510, 0.0
  %v3602 = vmax.f32 %v3511, 0.0
  %v3603 = vmax.f32 %v3512, 0.0
  %v3604 = vmax.f32 %v3513, 0.0
  %v3605 = vmax.f32 %v3514, 0.0
  %v3606 = vmax.f32 %v3515, 0.0
  %v3607 = vmax.f32 %v3516, 0.0
  %v3608 = vmax.f32 %v3517, 0.0
  %v3609 = vmax.f32 %v3518, 0.0
  %v3610 = vpack.c.bf16 %v3520, %v3519
  %v3611 = vpack.c.bf16 %v3522, %v3521
  %v3612 = vpack.c.bf16 %v3524, %v3523
  %v3613 = vpack.c.bf16 %v3526, %v3525
  %v3614 = vpack.c.bf16 %v3528, %v3527
  %v3615 = vpack.c.bf16 %v3530, %v3529
  %v3616 = vpack.c.bf16 %v3532, %v3531
  %v3617 = vpack.c.bf16 %v3534, %v3533
  %v3618 = vpack.c.bf16 %v3536, %v3535
  %v3619 = vpack.c.bf16 %v3538, %v3537
  %v3620 = vpack.c.bf16 %v3540, %v3539
  %v3621 = vpack.c.bf16 %v3542, %v3541
  %v3622 = vpack.c.bf16 %v3544, %v3543
  %v3623 = vpack.c.bf16 %v3546, %v3545
  %v3624 = vpack.c.bf16 %v3548, %v3547
  %v3625 = vpack.c.bf16 %v3550, %v3549
  %v3626 = vpack.c.bf16 %v3552, %v3551
  %v3627 = vpack.c.bf16 %v3554, %v3553
  %v3628 = vpack.c.bf16 %v3556, %v3555
  %v3629 = vpack.c.bf16 %v3558, %v3557
  %v3630 = vpack.c.bf16 %v3560, %v3559
  %v3631 = vpack.c.bf16 %v3562, %v3561
  %v3632 = vpack.c.bf16 %v3564, %v3563
  %v3633 = vpack.c.bf16 %v3566, %v3565
  %v3634 = vpack.c.bf16 %v3568, %v3567
  %v3635 = vpack.c.bf16 %v3570, %v3569
  %v3636 = vpack.c.bf16 %v3572, %v3571
  %v3637 = vpack.c.bf16 %v3574, %v3573
  %v3638 = vpack.c.bf16 %v3576, %v3575
  %v3639 = vpack.c.bf16 %v3578, %v3577
  %v3640 = vpack.c.bf16 %v3580, %v3579
  %v3641 = vpack.c.bf16 %v3582, %v3581
  %v3642 = vpack.c.bf16 %v3584, %v3583
  %v3643 = vpack.c.bf16 %v3586, %v3585
  %v3644 = vpack.c.bf16 %v3588, %v3587
  %v3645 = vpack.c.bf16 %v3590, %v3589
  %v3646 = vpack.c.bf16 %v3592, %v3591
  %v3647 = vpack.c.bf16 %v3594, %v3593
  %v3648 = vpack.c.bf16 %v3596, %v3595
  %v3649 = vpack.c.bf16 %v3598, %v3597
  %v3650 = vpack.c.bf16 %v3600, %v3599
  %v3651 = vpack.c.bf16 %v3602, %v3601
  %v3652 = vpack.c.bf16 %v3604, %v3603
  %v3653 = vpack.c.bf16 %v3606, %v3605
  %v3654 = vpack.c.bf16 %v3608, %v3607
  %v3655 = vpack.c.bf16 %v3609, %v3609
  %v3702 = vunpack.c.l.b16 %v3610
  %v3703 = vunpack.c.h.b16 %v3610
  %v3704 = vunpack.c.l.b16 %v3611
  %v3705 = vunpack.c.h.b16 %v3611
  %v3706 = vunpack.c.l.b16 %v3612
  %v3707 = vunpack.c.h.b16 %v3612
  %v3708 = vunpack.c.l.b16 %v3613
  %v3709 = vunpack.c.h.b16 %v3613
  %v3710 = vunpack.c.l.b16 %v3614
  %v3711 = vunpack.c.h.b16 %v3614
  %v3712 = vunpack.c.l.b16 %v3615
  %v3713 = vunpack.c.h.b16 %v3615
  %v3714 = vunpack.c.l.b16 %v3616
  %v3715 = vunpack.c.h.b16 %v3616
  %v3716 = vunpack.c.l.b16 %v3617
  %v3717 = vunpack.c.h.b16 %v3617
  %v3718 = vunpack.c.l.b16 %v3618
  %v3719 = vunpack.c.h.b16 %v3618
  %v3720 = vunpack.c.l.b16 %v3619
  %v3721 = vunpack.c.h.b16 %v3619
  %v3722 = vunpack.c.l.b16 %v3620
  %v3723 = vunpack.c.h.b16 %v3620
  %v3724 = vunpack.c.l.b16 %v3621
  %v3725 = vunpack.c.h.b16 %v3621
  %v3726 = vunpack.c.l.b16 %v3622
  %v3727 = vunpack.c.h.b16 %v3622
  %v3728 = vunpack.c.l.b16 %v3623
  %v3729 = vunpack.c.h.b16 %v3623
  %v3730 = vunpack.c.l.b16 %v3624
  %v3731 = vunpack.c.h.b16 %v3624
  %v3732 = vunpack.c.l.b16 %v3625
  %v3733 = vunpack.c.h.b16 %v3625
  %v3734 = vunpack.c.l.b16 %v3626
  %v3735 = vunpack.c.h.b16 %v3626
  %v3736 = vunpack.c.l.b16 %v3627
  %v3737 = vunpack.c.h.b16 %v3627
  %v3738 = vunpack.c.l.b16 %v3628
  %v3739 = vunpack.c.h.b16 %v3628
  %v3740 = vunpack.c.l.b16 %v3629
  %v3741 = vunpack.c.h.b16 %v3629
  %v3742 = vunpack.c.l.b16 %v3630
  %v3743 = vunpack.c.h.b16 %v3630
  %v3744 = vunpack.c.l.b16 %v3631
  %v3745 = vunpack.c.h.b16 %v3631
  %v3746 = vunpack.c.l.b16 %v3632
  %v3747 = vunpack.c.h.b16 %v3632
  %v3748 = vunpack.c.l.b16 %v3633
  %v3749 = vunpack.c.h.b16 %v3633
  %v3750 = vunpack.c.l.b16 %v3634
  %v3751 = vunpack.c.h.b16 %v3634
  %v3752 = vunpack.c.l.b16 %v3635
  %v3753 = vunpack.c.h.b16 %v3635
  %v3754 = vunpack.c.l.b16 %v3636
  %v3755 = vunpack.c.h.b16 %v3636
  %v3756 = vunpack.c.l.b16 %v3637
  %v3757 = vunpack.c.h.b16 %v3637
  %v3758 = vunpack.c.l.b16 %v3638
  %v3759 = vunpack.c.h.b16 %v3638
  %v3760 = vunpack.c.l.b16 %v3639
  %v3761 = vunpack.c.h.b16 %v3639
  %v3762 = vunpack.c.l.b16 %v3640
  %v3763 = vunpack.c.h.b16 %v3640
  %v3764 = vunpack.c.l.b16 %v3641
  %v3765 = vunpack.c.h.b16 %v3641
  %v3766 = vunpack.c.l.b16 %v3642
  %v3767 = vunpack.c.h.b16 %v3642
  %v3768 = vunpack.c.l.b16 %v3643
  %v3769 = vunpack.c.h.b16 %v3643
  %v3770 = vunpack.c.l.b16 %v3644
  %v3771 = vunpack.c.h.b16 %v3644
  %v3772 = vunpack.c.l.b16 %v3645
  %v3773 = vunpack.c.h.b16 %v3645
  %v3774 = vunpack.c.l.b16 %v3646
  %v3775 = vunpack.c.h.b16 %v3646
  %v3776 = vunpack.c.l.b16 %v3647
  %v3777 = vunpack.c.h.b16 %v3647
  %v3778 = vunpack.c.l.b16 %v3648
  %v3779 = vunpack.c.h.b16 %v3648
  %v3780 = vunpack.c.l.b16 %v3649
  %v3781 = vunpack.c.h.b16 %v3649
  %v3782 = vunpack.c.l.b16 %v3650
  %v3783 = vunpack.c.h.b16 %v3650
  %v3784 = vunpack.c.l.b16 %v3651
  %v3785 = vunpack.c.h.b16 %v3651
  %v3786 = vunpack.c.l.b16 %v3652
  %v3787 = vunpack.c.h.b16 %v3652
  %v3788 = vunpack.c.l.b16 %v3653
  %v3789 = vunpack.c.h.b16 %v3653
  %v3790 = vunpack.c.l.b16 %v3654
  %v3791 = vunpack.c.h.b16 %v3654
  %v3792 = vunpack.c.l.b16 %v3655
  %v3793 = vpack.c.b16 %v3702, %v3702
  %v3794 = vpack.c.b16 %v3703, %v3703
  %v3795 = vpack.c.b16 %v3704, %v3704
  %v3796 = vpack.c.b16 %v3705, %v3705
  %v3797 = vpack.c.b16 %v3706, %v3706
  %v3798 = vpack.c.b16 %v3707, %v3707
  %v3799 = vpack.c.b16 %v3708, %v3708
  %v3800 = vpack.c.b16 %v3709, %v3709
  %v3801 = vpack.c.b16 %v3710, %v3710
  %v3802 = vpack.c.b16 %v3711, %v3711
  %v3803 = vpack.c.b16 %v3712, %v3712
  %v3804 = vpack.c.b16 %v3713, %v3713
  %v3805 = vpack.c.b16 %v3714, %v3714
  %v3806 = vpack.c.b16 %v3715, %v3715
  %v3807 = vpack.c.b16 %v3716, %v3716
  %v3808 = vpack.c.b16 %v3717, %v3717
  %v3809 = vpack.c.b16 %v3718, %v3718
  %v3810 = vpack.c.b16 %v3719, %v3719
  %v3811 = vpack.c.b16 %v3720, %v3720
  %v3812 = vpack.c.b16 %v3721, %v3721
  %v3813 = vpack.c.b16 %v3722, %v3722
  %v3814 = vpack.c.b16 %v3723, %v3723
  %v3815 = vpack.c.b16 %v3724, %v3724
  %v3816 = vpack.c.b16 %v3725, %v3725
  %v3817 = vpack.c.b16 %v3726, %v3726
  %v3818 = vpack.c.b16 %v3727, %v3727
  %v3819 = vpack.c.b16 %v3728, %v3728
  %v3820 = vpack.c.b16 %v3729, %v3729
  %v3821 = vpack.c.b16 %v3730, %v3730
  %v3822 = vpack.c.b16 %v3731, %v3731
  %v3823 = vpack.c.b16 %v3732, %v3732
  %v3824 = vpack.c.b16 %v3733, %v3733
  %v3825 = vpack.c.b16 %v3734, %v3734
  %v3826 = vpack.c.b16 %v3735, %v3735
  %v3827 = vpack.c.b16 %v3736, %v3736
  %v3828 = vpack.c.b16 %v3737, %v3737
  %v3829 = vpack.c.b16 %v3738, %v3738
  %v3830 = vpack.c.b16 %v3739, %v3739
  %v3831 = vpack.c.b16 %v3740, %v3740
  %v3832 = vpack.c.b16 %v3741, %v3741
  %v3833 = vpack.c.b16 %v3742, %v3742
  %v3834 = vpack.c.b16 %v3743, %v3743
  %v3835 = vpack.c.b16 %v3744, %v3744
  %v3836 = vpack.c.b16 %v3745, %v3745
  %v3837 = vpack.c.b16 %v3746, %v3746
  %v3838 = vpack.c.b16 %v3747, %v3747
  %v3839 = vpack.c.b16 %v3748, %v3748
  %v3840 = vpack.c.b16 %v3749, %v3749
  %v3841 = vpack.c.b16 %v3750, %v3750
  %v3842 = vpack.c.b16 %v3751, %v3751
  %v3843 = vpack.c.b16 %v3752, %v3752
  %v3844 = vpack.c.b16 %v3753, %v3753
  %v3845 = vpack.c.b16 %v3754, %v3754
  %v3846 = vpack.c.b16 %v3755, %v3755
  %v3847 = vpack.c.b16 %v3756, %v3756
  %v3848 = vpack.c.b16 %v3757, %v3757
  %v3849 = vpack.c.b16 %v3758, %v3758
  %v3850 = vpack.c.b16 %v3759, %v3759
  %v3851 = vpack.c.b16 %v3760, %v3760
  %v3852 = vpack.c.b16 %v3761, %v3761
  %v3853 = vpack.c.b16 %v3762, %v3762
  %v3854 = vpack.c.b16 %v3763, %v3763
  %v3855 = vpack.c.b16 %v3764, %v3764
  %v3856 = vpack.c.b16 %v3765, %v3765
  %v3857 = vpack.c.b16 %v3766, %v3766
  %v3858 = vpack.c.b16 %v3767, %v3767
  %v3859 = vpack.c.b16 %v3768, %v3768
  %v3860 = vpack.c.b16 %v3769, %v3769
  %v3861 = vpack.c.b16 %v3770, %v3770
  %v3862 = vpack.c.b16 %v3771, %v3771
  %v3863 = vpack.c.b16 %v3772, %v3772
  %v3864 = vpack.c.b16 %v3773, %v3773
  %v3865 = vpack.c.b16 %v3774, %v3774
  %v3866 = vpack.c.b16 %v3775, %v3775
  %v3867 = vpack.c.b16 %v3776, %v3776
  %v3868 = vpack.c.b16 %v3777, %v3777
  %v3869 = vpack.c.b16 %v3778, %v3778
  %v3870 = vpack.c.b16 %v3779, %v3779
  %v3871 = vpack.c.b16 %v3780, %v3780
  %v3872 = vpack.c.b16 %v3781, %v3781
  %v3873 = vpack.c.b16 %v3782, %v3782
  %v3874 = vpack.c.b16 %v3783, %v3783
  %v3875 = vpack.c.b16 %v3784, %v3784
  %v3876 = vpack.c.b16 %v3785, %v3785
  %v3877 = vpack.c.b16 %v3786, %v3786
  %v3878 = vpack.c.b16 %v3787, %v3787
  %v3879 = vpack.c.b16 %v3788, %v3788
  %v3880 = vpack.c.b16 %v3789, %v3789
  %v3881 = vpack.c.b16 %v3790, %v3790
  %v3882 = vpack.c.b16 %v3791, %v3791
  %v3883 = vpack.c.b16 %v3792, %v3792
  %3975 = vst [vmem:[%s6] sm:$0xf] %v3793
  %3976 = vst [vmem:[%s6 + $0x4] sm:$0xf] %v3794
  %3977 = vst [vmem:[%s6 + $0x8] sm:$0xf] %v3795
  %3978 = vst [vmem:[%s6 + $0xc] sm:$0xf] %v3796
  %3979 = vst [vmem:[%s6 + $0x10] sm:$0xf] %v3797
  %3980 = vst [vmem:[%s6 + $0x14] sm:$0xf] %v3798
  %3981 = vst [vmem:[%s6 + $0x18] sm:$0xf] %v3799
  %3982 = vst [vmem:[%s6 + $0x1c] sm:$0xf] %v3800
  %3983 = vst [vmem:[%s6 + $0x20] sm:$0xf] %v3801
  %3984 = vst [vmem:[%s6 + $0x24] sm:$0xf] %v3802
  %3985 = vst [vmem:[%s6 + $0x28] sm:$0xf] %v3803
  %3986 = vst [vmem:[%s6 + $0x2c] sm:$0xf] %v3804
  %3987 = vst [vmem:[%s6 + $0x30] sm:$0xf] %v3805
  %3988 = vst [vmem:[%s6 + $0x34] sm:$0xf] %v3806
  %3989 = vst [vmem:[%s6 + $0x38] sm:$0xf] %v3807
  %3990 = vst [vmem:[%s6 + $0x3c] sm:$0xf] %v3808
  %3991 = vst [vmem:[%s6 + $0x40] sm:$0xf] %v3809
  %3992 = vst [vmem:[%s6 + $0x44] sm:$0xf] %v3810
  %3993 = vst [vmem:[%s6 + $0x48] sm:$0xf] %v3811
  %3994 = vst [vmem:[%s6 + $0x4c] sm:$0xf] %v3812
  %3995 = vst [vmem:[%s6 + $0x50] sm:$0xf] %v3813
  %3996 = vst [vmem:[%s6 + $0x54] sm:$0xf] %v3814
  %3997 = vst [vmem:[%s6 + $0x58] sm:$0xf] %v3815
  %3998 = vst [vmem:[%s6 + $0x5c] sm:$0xf] %v3816
  %3999 = vst [vmem:[%s6 + $0x60] sm:$0xf] %v3817
  %4000 = vst [vmem:[%s6 + $0x64] sm:$0xf] %v3818
  %4001 = vst [vmem:[%s6 + $0x68] sm:$0xf] %v3819
  %4002 = vst [vmem:[%s6 + $0x6c] sm:$0xf] %v3820
  %4003 = vst [vmem:[%s6 + $0x70] sm:$0xf] %v3821
  %4004 = vst [vmem:[%s6 + $0x74] sm:$0xf] %v3822
  %4005 = vst [vmem:[%s6 + $0x78] sm:$0xf] %v3823
  %4006 = vst [vmem:[%s6 + $0x7c] sm:$0xf] %v3824
  %4007 = vst [vmem:[%s6 + $0x80] sm:$0xf] %v3825
  %4008 = vst [vmem:[%s6 + $0x84] sm:$0xf] %v3826
  %4009 = vst [vmem:[%s6 + $0x88] sm:$0xf] %v3827
  %4010 = vst [vmem:[%s6 + $0x8c] sm:$0xf] %v3828
  %4011 = vst [vmem:[%s6 + $0x90] sm:$0xf] %v3829
  %4012 = vst [vmem:[%s6 + $0x94] sm:$0xf] %v3830
  %4013 = vst [vmem:[%s6 + $0x98] sm:$0xf] %v3831
  %4014 = vst [vmem:[%s6 + $0x9c] sm:$0xf] %v3832
  %4015 = vst [vmem:[%s6 + $0xa0] sm:$0xf] %v3833
  %4016 = vst [vmem:[%s6 + $0xa4] sm:$0xf] %v3834
  %4017 = vst [vmem:[%s6 + $0xa8] sm:$0xf] %v3835
  %4018 = vst [vmem:[%s6 + $0xac] sm:$0xf] %v3836
  %4019 = vst [vmem:[%s6 + $0xb0] sm:$0xf] %v3837
  %4020 = vst [vmem:[%s6 + $0xb4] sm:$0xf] %v3838
  %4021 = vst [vmem:[%s6 + $0xb8] sm:$0xf] %v3839
  %4022 = vst [vmem:[%s6 + $0xbc] sm:$0xf] %v3840
  %4023 = vst [vmem:[%s6 + $0xc0] sm:$0xf] %v3841
  %4024 = vst [vmem:[%s6 + $0xc4] sm:$0xf] %v3842
  %4025 = vst [vmem:[%s6 + $0xc8] sm:$0xf] %v3843
  %4026 = vst [vmem:[%s6 + $0xcc] sm:$0xf] %v3844
  %4027 = vst [vmem:[%s6 + $0xd0] sm:$0xf] %v3845
  %4028 = vst [vmem:[%s6 + $0xd4] sm:$0xf] %v3846
  %4029 = vst [vmem:[%s6 + $0xd8] sm:$0xf] %v3847
  %4030 = vst [vmem:[%s6 + $0xdc] sm:$0xf] %v3848
  %4031 = vst [vmem:[%s6 + $0xe0] sm:$0xf] %v3849
  %4032 = vst [vmem:[%s6 + $0xe4] sm:$0xf] %v3850
  %4033 = vst [vmem:[%s6 + $0xe8] sm:$0xf] %v3851
  %4034 = vst [vmem:[%s6 + $0xec] sm:$0xf] %v3852
  %4035 = vst [vmem:[%s6 + $0xf0] sm:$0xf] %v3853
  %4036 = vst [vmem:[%s6 + $0xf4] sm:$0xf] %v3854
  %4037 = vst [vmem:[%s6 + $0xf8] sm:$0xf] %v3855
  %4038 = vst [vmem:[%s6 + $0xfc] sm:$0xf] %v3856
  %4039 = vst [vmem:[%s6 + $0x100] sm:$0xf] %v3857
  %4040 = vst [vmem:[%s6 + $0x104] sm:$0xf] %v3858
  %4041 = vst [vmem:[%s6 + $0x108] sm:$0xf] %v3859
  %4042 = vst [vmem:[%s6 + $0x10c] sm:$0xf] %v3860
  %4043 = vst [vmem:[%s6 + $0x110] sm:$0xf] %v3861
  %4044 = vst [vmem:[%s6 + $0x114] sm:$0xf] %v3862
  %4045 = vst [vmem:[%s6 + $0x118] sm:$0xf] %v3863
  %4046 = vst [vmem:[%s6 + $0x11c] sm:$0xf] %v3864
  %4047 = vst [vmem:[%s6 + $0x120] sm:$0xf] %v3865
  %4048 = vst [vmem:[%s6 + $0x124] sm:$0xf] %v3866
  %4049 = vst [vmem:[%s6 + $0x128] sm:$0xf] %v3867
  %4050 = vst [vmem:[%s6 + $0x12c] sm:$0xf] %v3868
  %4051 = vst [vmem:[%s6 + $0x130] sm:$0xf] %v3869
  %4052 = vst [vmem:[%s6 + $0x134] sm:$0xf] %v3870
  %4053 = vst [vmem:[%s6 + $0x138] sm:$0xf] %v3871
  %4054 = vst [vmem:[%s6 + $0x13c] sm:$0xf] %v3872
  %4055 = vst [vmem:[%s6 + $0x140] sm:$0xf] %v3873
  %4056 = vst [vmem:[%s6 + $0x144] sm:$0xf] %v3874
  %4057 = vst [vmem:[%s6 + $0x148] sm:$0xf] %v3875
  %4058 = vst [vmem:[%s6 + $0x14c] sm:$0xf] %v3876
  %4059 = vst [vmem:[%s6 + $0x150] sm:$0xf] %v3877
  %4060 = vst [vmem:[%s6 + $0x154] sm:$0xf] %v3878
  %4061 = vst [vmem:[%s6 + $0x158] sm:$0xf] %v3879
  %4062 = vst [vmem:[%s6 + $0x15c] sm:$0xf] %v3880
  %4063 = vst [vmem:[%s6 + $0x160] sm:$0xf] %v3881
  %4064 = vst [vmem:[%s6 + $0x164] sm:$0xf] %v3882
  %4065 = vst [vmem:[%s6 + $0x168] sm:$0xf] %v3883
  // Predicated region
  $region26: #{forward.4} parent=0 // pred_check
    _
  $region27: #{forward.4} parent=0 // pred_check_branch
    %4067 = sbr.rel (0) target = $region29
  $region28: #{forward.4} parent=0 // pred_region
    _
  $region29: #{forward.4} parent=0 // pred_fallthru
    _
  // Predicated region
  $region30: #{forward.4} parent=0 // pred_check
    _
  $region31: #{forward.4} parent=0 // pred_check_branch
    %4069 = sbr.rel (0) target = $region33
  $region32: #{forward.4} parent=0 // pred_region
    _
  $region33: #{forward.4} parent=0 // pred_fallthru
    _

// kernel: forward.5
$region0: #{forward.5}
  #allocation0 [shape = 'u32[]', space=smem, size = 0x4, offset = 0x4, fixed_abs, tag = 'smem constant byte address 0x4 - core index']
  #allocation1 [shape = 'u32[144,128]{1,0:T(1,128)}', space=vmem, size = 0x12000, scoped, tag = 'internal scratch']
  %s0 = inlined_call_operand.vmem [shape: bf16[32,512], index: 0, kind: input, shape index: {}]
  %s1 = inlined_call_operand.vmem [shape: bf16[32,512], index: 1, kind: input, shape index: {}]
  %s2 = inlined_call_operand.vmem [shape: bf16[32,512], index: 2, kind: input, shape index: {}]
  %s3 = inlined_call_operand.vmem [shape: bf16[32,512], index: 3, kind: input, shape index: {}]
  %s4 = inlined_call_operand.vmem [shape: bf16[512,128], index: 4, kind: input, shape index: {}]
  %s5 = inlined_call_operand.vmem [shape: f32[1,128], index: 5, kind: input, shape index: {}]
  %s6 = inlined_call_operand.vmem [shape: bf16[32,128], index: 6, kind: output, shape index: {}]
  %s7 = sld [smem:[#allocation0]]
  $region34: #{forward.5} parent=0
    _
  %s9 = ssub.s32 1, %s7
  %s10 = scalar_select 0, %s9, %s7
  // Predicated region
  $region2: #{forward.5} parent=0 // pred_check
    _
  $region3: #{forward.5} parent=0 // pred_check_branch
    %12 = sbr.rel (0) target = $region5
  $region4: #{forward.5} parent=0 // pred_region
    _
  $region5: #{forward.5} parent=0 // pred_fallthru
    _
  // Predicated region
  $region6: #{forward.5} parent=0 // pred_check
    _
  $region7: #{forward.5} parent=0 // pred_check_branch
    %14 = sbr.rel (0) target = $region9
  $region8: #{forward.5} parent=0 // pred_region
    _
  $region9: #{forward.5} parent=0 // pred_fallthru
    _
  // Predicated region
  $region10: #{forward.5} parent=0 // pred_check
    _
  $region11: #{forward.5} parent=0 // pred_check_branch
    %16 = sbr.rel (0) target = $region13
  $region12: #{forward.5} parent=0 // pred_region
    _
  $region13: #{forward.5} parent=0 // pred_fallthru
    _
  // Predicated region
  $region14: #{forward.5} parent=0 // pred_check
    _
  $region15: #{forward.5} parent=0 // pred_check_branch
    %18 = sbr.rel (0) target = $region17
  $region16: #{forward.5} parent=0 // pred_region
    _
  $region17: #{forward.5} parent=0 // pred_fallthru
    _
  // Predicated region
  $region18: #{forward.5} parent=0 // pred_check
    _
  $region19: #{forward.5} parent=0 // pred_check_branch
    %20 = sbr.rel (0) target = $region21
  $region20: #{forward.5} parent=0 // pred_region
    _
  $region21: #{forward.5} parent=0 // pred_fallthru
    _
  // Predicated region
  $region22: #{forward.5} parent=0 // pred_check
    _
  $region23: #{forward.5} parent=0 // pred_check_branch
    %22 = sbr.rel (0) target = $region25
  $region24: #{forward.5} parent=0 // pred_region
    _
  $region25: #{forward.5} parent=0 // pred_fallthru
    _
  %v24 = vld [vmem:[%s4] sm:$0xf]
  %v25 = vld [vmem:[%s4 + $0x4] sm:$0xf]
  %v26 = vld [vmem:[%s4 + $0x8] sm:$0xf]
  %v27 = vld [vmem:[%s4 + $0xc] sm:$0xf]
  %v28 = vld [vmem:[%s4 + $0x10] sm:$0xf]
  %v29 = vld [vmem:[%s4 + $0x14] sm:$0xf]
  %v30 = vld [vmem:[%s4 + $0x18] sm:$0xf]
  %v31 = vld [vmem:[%s4 + $0x1c] sm:$0xf]
  %v32 = vld [vmem:[%s4 + $0x20] sm:$0xf]
  %v33 = vld [vmem:[%s4 + $0x24] sm:$0xf]
  %v34 = vld [vmem:[%s4 + $0x28] sm:$0xf]
  %v35 = vld [vmem:[%s4 + $0x2c] sm:$0xf]
  %v36 = vld [vmem:[%s4 + $0x30] sm:$0xf]
  %v37 = vld [vmem:[%s4 + $0x34] sm:$0xf]
  %v38 = vld [vmem:[%s4 + $0x38] sm:$0xf]
  %v39 = vld [vmem:[%s4 + $0x3c] sm:$0xf]
  %v40 = vld [vmem:[%s4 + $0x40] sm:$0xf]
  %v41 = vld [vmem:[%s4 + $0x44] sm:$0xf]
  %v42 = vld [vmem:[%s4 + $0x48] sm:$0xf]
  %v43 = vld [vmem:[%s4 + $0x4c] sm:$0xf]
  %v44 = vld [vmem:[%s4 + $0x50] sm:$0xf]
  %v45 = vld [vmem:[%s4 + $0x54] sm:$0xf]
  %v46 = vld [vmem:[%s4 + $0x58] sm:$0xf]
  %v47 = vld [vmem:[%s4 + $0x5c] sm:$0xf]
  %v48 = vld [vmem:[%s4 + $0x60] sm:$0xf]
  %v49 = vld [vmem:[%s4 + $0x64] sm:$0xf]
  %v50 = vld [vmem:[%s4 + $0x68] sm:$0xf]
  %v51 = vld [vmem:[%s4 + $0x6c] sm:$0xf]
  %v52 = vld [vmem:[%s4 + $0x70] sm:$0xf]
  %v53 = vld [vmem:[%s4 + $0x74] sm:$0xf]
  %v54 = vld [vmem:[%s4 + $0x78] sm:$0xf]
  %v55 = vld [vmem:[%s4 + $0x7c] sm:$0xf]
  %v56 = vld [vmem:[%s4 + $0x80] sm:$0xf]
  %v57 = vld [vmem:[%s4 + $0x84] sm:$0xf]
  %v58 = vld [vmem:[%s4 + $0x88] sm:$0xf]
  %v59 = vld [vmem:[%s4 + $0x8c] sm:$0xf]
  %v60 = vld [vmem:[%s4 + $0x90] sm:$0xf]
  %v61 = vld [vmem:[%s4 + $0x94] sm:$0xf]
  %v62 = vld [vmem:[%s4 + $0x98] sm:$0xf]
  %v63 = vld [vmem:[%s4 + $0x9c] sm:$0xf]
  %v64 = vld [vmem:[%s4 + $0xa0] sm:$0xf]
  %v65 = vld [vmem:[%s4 + $0xa4] sm:$0xf]
  %v66 = vld [vmem:[%s4 + $0xa8] sm:$0xf]
  %v67 = vld [vmem:[%s4 + $0xac] sm:$0xf]
  %v68 = vld [vmem:[%s4 + $0xb0] sm:$0xf]
  %v69 = vld [vmem:[%s4 + $0xb4] sm:$0xf]
  %v70 = vld [vmem:[%s4 + $0xb8] sm:$0xf]
  %v71 = vld [vmem:[%s4 + $0xbc] sm:$0xf]
  %v72 = vld [vmem:[%s4 + $0xc0] sm:$0xf]
  %v73 = vld [vmem:[%s4 + $0xc4] sm:$0xf]
  %v74 = vld [vmem:[%s4 + $0xc8] sm:$0xf]
  %v75 = vld [vmem:[%s4 + $0xcc] sm:$0xf]
  %v76 = vld [vmem:[%s4 + $0xd0] sm:$0xf]
  %v77 = vld [vmem:[%s4 + $0xd4] sm:$0xf]
  %v78 = vld [vmem:[%s4 + $0xd8] sm:$0xf]
  %v79 = vld [vmem:[%s4 + $0xdc] sm:$0xf]
  %v80 = vld [vmem:[%s4 + $0xe0] sm:$0xf]
  %v81 = vld [vmem:[%s4 + $0xe4] sm:$0xf]
  %v82 = vld [vmem:[%s4 + $0xe8] sm:$0xf]
  %v83 = vld [vmem:[%s4 + $0xec] sm:$0xf]
  %v84 = vld [vmem:[%s4 + $0xf0] sm:$0xf]
  %v85 = vld [vmem:[%s4 + $0xf4] sm:$0xf]
  %v86 = vld [vmem:[%s4 + $0xf8] sm:$0xf]
  %v87 = vld [vmem:[%s4 + $0xfc] sm:$0xf]
  %v88 = vld [vmem:[%s0] sm:$0xff]
  %v89 = vld [vmem:[%s0 + $0x8] sm:$0xff]
  %v90 = vld [vmem:[%s0 + $0x10] sm:$0xff]
  %v91 = vld [vmem:[%s0 + $0x18] sm:$0xff]
  %v92 = vld [vmem:[%s0 + $0x20] sm:$0xff]
  %v93 = vld [vmem:[%s0 + $0x28] sm:$0xff]
  %v94 = vld [vmem:[%s0 + $0x30] sm:$0xff]
  %v95 = vld [vmem:[%s0 + $0x38] sm:$0xff]
  %v104 = vunpack.c.l.b16 %v88
  %v105 = vunpack.c.h.b16 %v88
  %v106 = vunpack.c.l.b16 %v89
  %v107 = vunpack.c.h.b16 %v89
  %v108 = vunpack.c.l.b16 %v90
  %v109 = vunpack.c.h.b16 %v90
  %v110 = vunpack.c.l.b16 %v91
  %v111 = vunpack.c.h.b16 %v91
  %v112 = vunpack.c.l.b16 %v92
  %v113 = vunpack.c.h.b16 %v92
  %v114 = vunpack.c.l.b16 %v93
  %v115 = vunpack.c.h.b16 %v93
  %v116 = vunpack.c.l.b16 %v94
  %v117 = vunpack.c.h.b16 %v94
  %v118 = vunpack.c.l.b16 %v95
  %v119 = vunpack.c.h.b16 %v95
  %v120 = vpack.c.b16 %v108, %v104
  %v121 = vpack.c.b16 %v109, %v105
  %v122 = vpack.c.b16 %v110, %v106
  %v123 = vpack.c.b16 %v111, %v107
  %v124 = vpack.c.b16 %v116, %v112
  %v125 = vpack.c.b16 %v117, %v113
  %v126 = vpack.c.b16 %v118, %v114
  %v127 = vpack.c.b16 %v119, %v115
  %v200 = vunpack.c.l.b16 %v24
  %v201 = vunpack.c.l.b16 %v25
  %v202 = vunpack.c.l.b16 %v26
  %v203 = vunpack.c.l.b16 %v27
  %v204 = vunpack.c.l.b16 %v28
  %v205 = vunpack.c.l.b16 %v29
  %v206 = vunpack.c.l.b16 %v30
  %v207 = vunpack.c.l.b16 %v31
  %v208 = vunpack.c.l.b16 %v32
  %v209 = vunpack.c.l.b16 %v33
  %v210 = vunpack.c.l.b16 %v34
  %v211 = vunpack.c.l.b16 %v35
  %v212 = vunpack.c.l.b16 %v36
  %v213 = vunpack.c.l.b16 %v37
  %v214 = vunpack.c.l.b16 %v38
  %v215 = vunpack.c.l.b16 %v39
  %v216 = vunpack.c.l.b16 %v40
  %v217 = vunpack.c.l.b16 %v41
  %v218 = vunpack.c.l.b16 %v42
  %v219 = vunpack.c.l.b16 %v43
  %v220 = vunpack.c.l.b16 %v44
  %v221 = vunpack.c.l.b16 %v45
  %v222 = vunpack.c.l.b16 %v46
  %v223 = vunpack.c.l.b16 %v47
  %v224 = vunpack.c.l.b16 %v48
  %v225 = vunpack.c.l.b16 %v49
  %v226 = vunpack.c.l.b16 %v50
  %v227 = vunpack.c.l.b16 %v51
  %v228 = vunpack.c.l.b16 %v52
  %v229 = vunpack.c.l.b16 %v53
  %v230 = vunpack.c.l.b16 %v54
  %v231 = vunpack.c.l.b16 %v55
  %v232 = vunpack.c.l.b16 %v56
  %v233 = vunpack.c.l.b16 %v57
  %v234 = vunpack.c.l.b16 %v58
  %v235 = vunpack.c.l.b16 %v59
  %v236 = vunpack.c.l.b16 %v60
  %v237 = vunpack.c.l.b16 %v61
  %v238 = vunpack.c.l.b16 %v62
  %v239 = vunpack.c.l.b16 %v63
  %v240 = vunpack.c.l.b16 %v64
  %v241 = vunpack.c.l.b16 %v65
  %v242 = vunpack.c.l.b16 %v66
  %v243 = vunpack.c.l.b16 %v67
  %v244 = vunpack.c.l.b16 %v68
  %v245 = vunpack.c.l.b16 %v69
  %v246 = vunpack.c.l.b16 %v70
  %v247 = vunpack.c.l.b16 %v71
  %v248 = vunpack.c.l.b16 %v72
  %v249 = vunpack.c.l.b16 %v73
  %v250 = vunpack.c.l.b16 %v74
  %v251 = vunpack.c.l.b16 %v75
  %v252 = vunpack.c.l.b16 %v76
  %v253 = vunpack.c.l.b16 %v77
  %v254 = vunpack.c.l.b16 %v78
  %v255 = vunpack.c.l.b16 %v79
  %v256 = vunpack.c.l.b16 %v80
  %v257 = vunpack.c.l.b16 %v81
  %v258 = vunpack.c.l.b16 %v82
  %v259 = vunpack.c.l.b16 %v83
  %v260 = vunpack.c.l.b16 %v84
  %v261 = vunpack.c.l.b16 %v85
  %v262 = vunpack.c.l.b16 %v86
  %v263 = vunpack.c.l.b16 %v87
  %v264 = vpack.c.b16 %v201, %v200
  %v265 = vpack.c.b16 %v203, %v202
  %v266 = vpack.c.b16 %v205, %v204
  %v267 = vpack.c.b16 %v207, %v206
  %v268 = vpack.c.b16 %v209, %v208
  %v269 = vpack.c.b16 %v211, %v210
  %v270 = vpack.c.b16 %v213, %v212
  %v271 = vpack.c.b16 %v215, %v214
  %v272 = vpack.c.b16 %v217, %v216
  %v273 = vpack.c.b16 %v219, %v218
  %v274 = vpack.c.b16 %v221, %v220
  %v275 = vpack.c.b16 %v223, %v222
  %v276 = vpack.c.b16 %v225, %v224
  %v277 = vpack.c.b16 %v227, %v226
  %v278 = vpack.c.b16 %v229, %v228
  %v279 = vpack.c.b16 %v231, %v230
  %v280 = vpack.c.b16 %v233, %v232
  %v281 = vpack.c.b16 %v235, %v234
  %v282 = vpack.c.b16 %v237, %v236
  %v283 = vpack.c.b16 %v239, %v238
  %v284 = vpack.c.b16 %v241, %v240
  %v285 = vpack.c.b16 %v243, %v242
  %v286 = vpack.c.b16 %v245, %v244
  %v287 = vpack.c.b16 %v247, %v246
  %v288 = vpack.c.b16 %v249, %v248
  %v289 = vpack.c.b16 %v251, %v250
  %v290 = vpack.c.b16 %v253, %v252
  %v291 = vpack.c.b16 %v255, %v254
  %v292 = vpack.c.b16 %v257, %v256
  %v293 = vpack.c.b16 %v259, %v258
  %v294 = vpack.c.b16 %v261, %v260
  %v295 = vpack.c.b16 %v263, %v262
  %328 = vmatprep.subr.bf16.mxu0 0
  %329 = vmatpush1.bf16.msra.mxu0 %v264
  %330 = vmatprep.subr.bf16.mxu0 0
  %331 = vmatpush1.bf16.msra.mxu0 %v265
  %332 = vmatprep.subr.bf16.mxu0 0
  %333 = vmatpush1.bf16.msra.mxu0 %v266
  %334 = vmatprep.subr.bf16.mxu0 0
  %335 = vmatpush1.bf16.msra.mxu0 %v267
  %336 = vmatprep.subr.bf16.mxu0 0
  %337 = vmatpush1.bf16.msra.mxu0 %v268
  %338 = vmatprep.subr.bf16.mxu0 0
  %339 = vmatpush1.bf16.msra.mxu0 %v269
  %340 = vmatprep.subr.bf16.mxu0 0
  %341 = vmatpush1.bf16.msra.mxu0 %v270
  %342 = vmatprep.subr.bf16.mxu0 0
  %343 = vmatpush1.bf16.msra.mxu0 %v271
  %344 = vmatprep.subr.bf16.mxu0 0
  %345 = vmatpush1.bf16.msra.mxu0 %v272
  %346 = vmatprep.subr.bf16.mxu0 0
  %347 = vmatpush1.bf16.msra.mxu0 %v273
  %348 = vmatprep.subr.bf16.mxu0 0
  %349 = vmatpush1.bf16.msra.mxu0 %v274
  %350 = vmatprep.subr.bf16.mxu0 0
  %351 = vmatpush1.bf16.msra.mxu0 %v275
  %352 = vmatprep.subr.bf16.mxu0 0
  %353 = vmatpush1.bf16.msra.mxu0 %v276
  %354 = vmatprep.subr.bf16.mxu0 0
  %355 = vmatpush1.bf16.msra.mxu0 %v277
  %356 = vmatprep.subr.bf16.mxu0 0
  %357 = vmatpush1.bf16.msra.mxu0 %v278
  %358 = vmatprep.subr.bf16.mxu0 0
  %359 = vmatpush1.bf16.msra.mxu0 %v279
  %360 = vmatprep.mubr.bf16.mxu0 %v121
  %361 = vmatmul.mubr.bf16.gmra.mrb[0].mxu0 %v120
  %v362 = vpop.f32.mrb[0].mxu0
  %v363 = vadd.f32 0.0, %v362
  %v364 = vpop.f32.mrb[0].mxu0
  %v365 = vpop.f32.mrb[0].mxu0
  %v366 = vadd.f32 0.0, %v365
  %v367 = vpop.f32.mrb[0].mxu0
  %368 = vmatprep.mubr.bf16.mxu0 %v125
  %369 = vmatmul.mubr.bf16.gmra.mrb[0].mxu0 %v124
  %v370 = vpop.f32.mrb[0].mxu0
  %v371 = vadd.f32 0.0, %v370
  %v372 = vpop.f32.mrb[0].mxu0
  %v373 = vpop.f32.mrb[0].mxu0
  %v374 = vadd.f32 0.0, %v373
  %v375 = vpop.f32.mrb[0].mxu0
  %376 = vdwg.mxu0
  %377 = vmatprep.subr.bf16.mxu0 0
  %378 = vmatpush1.bf16.msra.mxu0 %v280
  %379 = vmatprep.subr.bf16.mxu0 0
  %380 = vmatpush1.bf16.msra.mxu0 %v281
  %381 = vmatprep.subr.bf16.mxu0 0
  %382 = vmatpush1.bf16.msra.mxu0 %v282
  %383 = vmatprep.subr.bf16.mxu0 0
  %384 = vmatpush1.bf16.msra.mxu0 %v283
  %385 = vmatprep.subr.bf16.mxu0 0
  %386 = vmatpush1.bf16.msra.mxu0 %v284
  %387 = vmatprep.subr.bf16.mxu0 0
  %388 = vmatpush1.bf16.msra.mxu0 %v285
  %389 = vmatprep.subr.bf16.mxu0 0
  %390 = vmatpush1.bf16.msra.mxu0 %v286
  %391 = vmatprep.subr.bf16.mxu0 0
  %392 = vmatpush1.bf16.msra.mxu0 %v287
  %393 = vmatprep.subr.bf16.mxu0 0
  %394 = vmatpush1.bf16.msra.mxu0 %v288
  %395 = vmatprep.subr.bf16.mxu0 0
  %396 = vmatpush1.bf16.msra.mxu0 %v289
  %397 = vmatprep.subr.bf16.mxu0 0
  %398 = vmatpush1.bf16.msra.mxu0 %v290
  %399 = vmatprep.subr.bf16.mxu0 0
  %400 = vmatpush1.bf16.msra.mxu0 %v291
  %401 = vmatprep.subr.bf16.mxu0 0
  %402 = vmatpush1.bf16.msra.mxu0 %v292
  %403 = vmatprep.subr.bf16.mxu0 0
  %404 = vmatpush1.bf16.msra.mxu0 %v293
  %405 = vmatprep.subr.bf16.mxu0 0
  %406 = vmatpush1.bf16.msra.mxu0 %v294
  %407 = vmatprep.subr.bf16.mxu0 0
  %408 = vmatpush1.bf16.msra.mxu0 %v295
  %409 = vmatprep.mubr.bf16.mxu0 %v123
  %410 = vmatmul.mubr.bf16.gmra.mrb[0].mxu0 %v122
  %v411 = vpop.f32.mrb[0].mxu0
  %v412 = vadd.f32 %v363, %v411
  %v413 = vpop.f32.mrb[0].mxu0
  %v414 = vpop.f32.mrb[0].mxu0
  %v415 = vadd.f32 %v366, %v414
  %v416 = vpop.f32.mrb[0].mxu0
  %417 = vmatprep.mubr.bf16.mxu0 %v127
  %418 = vmatmul.mubr.bf16.gmra.mrb[0].mxu0 %v126
  %v419 = vpop.f32.mrb[0].mxu0
  %v420 = vadd.f32 %v371, %v419
  %v421 = vpop.f32.mrb[0].mxu0
  %v422 = vpop.f32.mrb[0].mxu0
  %v423 = vadd.f32 %v374, %v422
  %v424 = vpop.f32.mrb[0].mxu0
  %425 = vdwg.mxu0
  %v426 = vld [vmem:[%s1] sm:$0xff]
  %v427 = vld [vmem:[%s1 + $0x8] sm:$0xff]
  %v428 = vld [vmem:[%s1 + $0x10] sm:$0xff]
  %v429 = vld [vmem:[%s1 + $0x18] sm:$0xff]
  %v430 = vld [vmem:[%s1 + $0x20] sm:$0xff]
  %v431 = vld [vmem:[%s1 + $0x28] sm:$0xff]
  %v432 = vld [vmem:[%s1 + $0x30] sm:$0xff]
  %v433 = vld [vmem:[%s1 + $0x38] sm:$0xff]
  %v442 = vunpack.c.l.b16 %v426
  %v443 = vunpack.c.h.b16 %v426
  %v444 = vunpack.c.l.b16 %v427
  %v445 = vunpack.c.h.b16 %v427
  %v446 = vunpack.c.l.b16 %v428
  %v447 = vunpack.c.h.b16 %v428
  %v448 = vunpack.c.l.b16 %v429
  %v449 = vunpack.c.h.b16 %v429
  %v450 = vunpack.c.l.b16 %v430
  %v451 = vunpack.c.h.b16 %v430
  %v452 = vunpack.c.l.b16 %v431
  %v453 = vunpack.c.h.b16 %v431
  %v454 = vunpack.c.l.b16 %v432
  %v455 = vunpack.c.h.b16 %v432
  %v456 = vunpack.c.l.b16 %v433
  %v457 = vunpack.c.h.b16 %v433
  %v458 = vpack.c.b16 %v446, %v442
  %v459 = vpack.c.b16 %v447, %v443
  %v460 = vpack.c.b16 %v448, %v444
  %v461 = vpack.c.b16 %v449, %v445
  %v462 = vpack.c.b16 %v454, %v450
  %v463 = vpack.c.b16 %v455, %v451
  %v464 = vpack.c.b16 %v456, %v452
  %v465 = vpack.c.b16 %v457, %v453
  %474 = vmatprep.subr.bf16.mxu0 0
  %475 = vmatpush1.bf16.msra.mxu0 %v264
  %476 = vmatprep.subr.bf16.mxu0 0
  %477 = vmatpush1.bf16.msra.mxu0 %v265
  %478 = vmatprep.subr.bf16.mxu0 0
  %479 = vmatpush1.bf16.msra.mxu0 %v266
  %480 = vmatprep.subr.bf16.mxu0 0
  %481 = vmatpush1.bf16.msra.mxu0 %v267
  %482 = vmatprep.subr.bf16.mxu0 0
  %483 = vmatpush1.bf16.msra.mxu0 %v268
  %484 = vmatprep.subr.bf16.mxu0 0
  %485 = vmatpush1.bf16.msra.mxu0 %v269
  %486 = vmatprep.subr.bf16.mxu0 0
  %487 = vmatpush1.bf16.msra.mxu0 %v270
  %488 = vmatprep.subr.bf16.mxu0 0
  %489 = vmatpush1.bf16.msra.mxu0 %v271
  %490 = vmatprep.subr.bf16.mxu0 0
  %491 = vmatpush1.bf16.msra.mxu0 %v272
  %492 = vmatprep.subr.bf16.mxu0 0
  %493 = vmatpush1.bf16.msra.mxu0 %v273
  %494 = vmatprep.subr.bf16.mxu0 0
  %495 = vmatpush1.bf16.msra.mxu0 %v274
  %496 = vmatprep.subr.bf16.mxu0 0
  %497 = vmatpush1.bf16.msra.mxu0 %v275
  %498 = vmatprep.subr.bf16.mxu0 0
  %499 = vmatpush1.bf16.msra.mxu0 %v276
  %500 = vmatprep.subr.bf16.mxu0 0
  %501 = vmatpush1.bf16.msra.mxu0 %v277
  %502 = vmatprep.subr.bf16.mxu0 0
  %503 = vmatpush1.bf16.msra.mxu0 %v278
  %504 = vmatprep.subr.bf16.mxu0 0
  %505 = vmatpush1.bf16.msra.mxu0 %v279
  %506 = vmatprep.mubr.bf16.mxu0 %v459
  %507 = vmatmul.mubr.bf16.gmra.mrb[0].mxu0 %v458
  %v508 = vpop.f32.mrb[0].mxu0
  %v509 = vadd.f32 0.0, %v508
  %v510 = vpop.f32.mrb[0].mxu0
  %v511 = vpop.f32.mrb[0].mxu0
  %v512 = vadd.f32 0.0, %v511
  %v513 = vpop.f32.mrb[0].mxu0
  %514 = vmatprep.mubr.bf16.mxu0 %v463
  %515 = vmatmul.mubr.bf16.gmra.mrb[0].mxu0 %v462
  %v516 = vpop.f32.mrb[0].mxu0
  %v517 = vadd.f32 0.0, %v516
  %v518 = vpop.f32.mrb[0].mxu0
  %v519 = vpop.f32.mrb[0].mxu0
  %v520 = vadd.f32 0.0, %v519
  %v521 = vpop.f32.mrb[0].mxu0
  %522 = vdwg.mxu0
  %523 = vmatprep.subr.bf16.mxu0 0
  %524 = vmatpush1.bf16.msra.mxu0 %v280
  %525 = vmatprep.subr.bf16.mxu0 0
  %526 = vmatpush1.bf16.msra.mxu0 %v281
  %527 = vmatprep.subr.bf16.mxu0 0
  %528 = vmatpush1.bf16.msra.mxu0 %v282
  %529 = vmatprep.subr.bf16.mxu0 0
  %530 = vmatpush1.bf16.msra.mxu0 %v283
  %531 = vmatprep.subr.bf16.mxu0 0
  %532 = vmatpush1.bf16.msra.mxu0 %v284
  %533 = vmatprep.subr.bf16.mxu0 0
  %534 = vmatpush1.bf16.msra.mxu0 %v285
  %535 = vmatprep.subr.bf16.mxu0 0
  %536 = vmatpush1.bf16.msra.mxu0 %v286
  %537 = vmatprep.subr.bf16.mxu0 0
  %538 = vmatpush1.bf16.msra.mxu0 %v287
  %539 = vmatprep.subr.bf16.mxu0 0
  %540 = vmatpush1.bf16.msra.mxu0 %v288
  %541 = vmatprep.subr.bf16.mxu0 0
  %542 = vmatpush1.bf16.msra.mxu0 %v289
  %543 = vmatprep.subr.bf16.mxu0 0
  %544 = vmatpush1.bf16.msra.mxu0 %v290
  %545 = vmatprep.subr.bf16.mxu0 0
  %546 = vmatpush1.bf16.msra.mxu0 %v291
  %547 = vmatprep.subr.bf16.mxu0 0
  %548 = vmatpush1.bf16.msra.mxu0 %v292
  %549 = vmatprep.subr.bf16.mxu0 0
  %550 = vmatpush1.bf16.msra.mxu0 %v293
  %551 = vmatprep.subr.bf16.mxu0 0
  %552 = vmatpush1.bf16.msra.mxu0 %v294
  %553 = vmatprep.subr.bf16.mxu0 0
  %554 = vmatpush1.bf16.msra.mxu0 %v295
  %555 = vmatprep.mubr.bf16.mxu0 %v461
  %556 = vmatmul.mubr.bf16.gmra.mrb[0].mxu0 %v460
  %v557 = vpop.f32.mrb[0].mxu0
  %v558 = vadd.f32 %v509, %v557
  %v559 = vpop.f32.mrb[0].mxu0
  %v560 = vpop.f32.mrb[0].mxu0
  %v561 = vadd.f32 %v512, %v560
  %v562 = vpop.f32.mrb[0].mxu0
  %563 = vmatprep.mubr.bf16.mxu0 %v465
  %564 = vmatmul.mubr.bf16.gmra.mrb[0].mxu0 %v464
  %v565 = vpop.f32.mrb[0].mxu0
  %v566 = vadd.f32 %v517, %v565
  %v567 = vpop.f32.mrb[0].mxu0
  %v568 = vpop.f32.mrb[0].mxu0
  %v569 = vadd.f32 %v520, %v568
  %v570 = vpop.f32.mrb[0].mxu0
  %571 = vdwg.mxu0
  %v572 = vld [vmem:[%s2] sm:$0xff]
  %v573 = vld [vmem:[%s2 + $0x8] sm:$0xff]
  %v574 = vld [vmem:[%s2 + $0x10] sm:$0xff]
  %v575 = vld [vmem:[%s2 + $0x18] sm:$0xff]
  %v576 = vld [vmem:[%s2 + $0x20] sm:$0xff]
  %v577 = vld [vmem:[%s2 + $0x28] sm:$0xff]
  %v578 = vld [vmem:[%s2 + $0x30] sm:$0xff]
  %v579 = vld [vmem:[%s2 + $0x38] sm:$0xff]
  %v588 = vunpack.c.l.b16 %v572
  %v589 = vunpack.c.h.b16 %v572
  %v590 = vunpack.c.l.b16 %v573
  %v591 = vunpack.c.h.b16 %v573
  %v592 = vunpack.c.l.b16 %v574
  %v593 = vunpack.c.h.b16 %v574
  %v594 = vunpack.c.l.b16 %v575
  %v595 = vunpack.c.h.b16 %v575
  %v596 = vunpack.c.l.b16 %v576
  %v597 = vunpack.c.h.b16 %v576
  %v598 = vunpack.c.l.b16 %v577
  %v599 = vunpack.c.h.b16 %v577
  %v600 = vunpack.c.l.b16 %v578
  %v601 = vunpack.c.h.b16 %v578
  %v602 = vunpack.c.l.b16 %v579
  %v603 = vunpack.c.h.b16 %v579
  %v604 = vpack.c.b16 %v592, %v588
  %v605 = vpack.c.b16 %v593, %v589
  %v606 = vpack.c.b16 %v594, %v590
  %v607 = vpack.c.b16 %v595, %v591
  %v608 = vpack.c.b16 %v600, %v596
  %v609 = vpack.c.b16 %v601, %v597
  %v610 = vpack.c.b16 %v602, %v598
  %v611 = vpack.c.b16 %v603, %v599
  %620 = vmatprep.subr.bf16.mxu0 0
  %621 = vmatpush1.bf16.msra.mxu0 %v264
  %622 = vmatprep.subr.bf16.mxu0 0
  %623 = vmatpush1.bf16.msra.mxu0 %v265
  %624 = vmatprep.subr.bf16.mxu0 0
  %625 = vmatpush1.bf16.msra.mxu0 %v266
  %626 = vmatprep.subr.bf16.mxu0 0
  %627 = vmatpush1.bf16.msra.mxu0 %v267
  %628 = vmatprep.subr.bf16.mxu0 0
  %629 = vmatpush1.bf16.msra.mxu0 %v268
  %630 = vmatprep.subr.bf16.mxu0 0
  %631 = vmatpush1.bf16.msra.mxu0 %v269
  %632 = vmatprep.subr.bf16.mxu0 0
  %633 = vmatpush1.bf16.msra.mxu0 %v270
  %634 = vmatprep.subr.bf16.mxu0 0
  %635 = vmatpush1.bf16.msra.mxu0 %v271
  %636 = vmatprep.subr.bf16.mxu0 0
  %637 = vmatpush1.bf16.msra.mxu0 %v272
  %638 = vmatprep.subr.bf16.mxu0 0
  %639 = vmatpush1.bf16.msra.mxu0 %v273
  %640 = vmatprep.subr.bf16.mxu0 0
  %641 = vmatpush1.bf16.msra.mxu0 %v274
  %642 = vmatprep.subr.bf16.mxu0 0
  %643 = vmatpush1.bf16.msra.mxu0 %v275
  %644 = vmatprep.subr.bf16.mxu0 0
  %645 = vmatpush1.bf16.msra.mxu0 %v276
  %646 = vmatprep.subr.bf16.mxu0 0
  %647 = vmatpush1.bf16.msra.mxu0 %v277
  %648 = vmatprep.subr.bf16.mxu0 0
  %649 = vmatpush1.bf16.msra.mxu0 %v278
  %650 = vmatprep.subr.bf16.mxu0 0
  %651 = vmatpush1.bf16.msra.mxu0 %v279
  %652 = vmatprep.mubr.bf16.mxu0 %v605
  %653 = vmatmul.mubr.bf16.gmra.mrb[0].mxu0 %v604
  %v654 = vpop.f32.mrb[0].mxu0
  %v655 = vadd.f32 0.0, %v654
  %v656 = vpop.f32.mrb[0].mxu0
  %v657 = vpop.f32.mrb[0].mxu0
  %v658 = vadd.f32 0.0, %v657
  %v659 = vpop.f32.mrb[0].mxu0
  %660 = vmatprep.mubr.bf16.mxu0 %v609
  %661 = vmatmul.mubr.bf16.gmra.mrb[0].mxu0 %v608
  %v662 = vpop.f32.mrb[0].mxu0
  %v663 = vadd.f32 0.0, %v662
  %v664 = vpop.f32.mrb[0].mxu0
  %v665 = vpop.f32.mrb[0].mxu0
  %v666 = vadd.f32 0.0, %v665
  %v667 = vpop.f32.mrb[0].mxu0
  %668 = vdwg.mxu0
  %669 = vmatprep.subr.bf16.mxu0 0
  %670 = vmatpush1.bf16.msra.mxu0 %v280
  %671 = vmatprep.subr.bf16.mxu0 0
  %672 = vmatpush1.bf16.msra.mxu0 %v281
  %673 = vmatprep.subr.bf16.mxu0 0
  %674 = vmatpush1.bf16.msra.mxu0 %v282
  %675 = vmatprep.subr.bf16.mxu0 0
  %676 = vmatpush1.bf16.msra.mxu0 %v283
  %677 = vmatprep.subr.bf16.mxu0 0
  %678 = vmatpush1.bf16.msra.mxu0 %v284
  %679 = vmatprep.subr.bf16.mxu0 0
  %680 = vmatpush1.bf16.msra.mxu0 %v285
  %681 = vmatprep.subr.bf16.mxu0 0
  %682 = vmatpush1.bf16.msra.mxu0 %v286
  %683 = vmatprep.subr.bf16.mxu0 0
  %684 = vmatpush1.bf16.msra.mxu0 %v287
  %685 = vmatprep.subr.bf16.mxu0 0
  %686 = vmatpush1.bf16.msra.mxu0 %v288
  %687 = vmatprep.subr.bf16.mxu0 0
  %688 = vmatpush1.bf16.msra.mxu0 %v289
  %689 = vmatprep.subr.bf16.mxu0 0
  %690 = vmatpush1.bf16.msra.mxu0 %v290
  %691 = vmatprep.subr.bf16.mxu0 0
  %692 = vmatpush1.bf16.msra.mxu0 %v291
  %693 = vmatprep.subr.bf16.mxu0 0
  %694 = vmatpush1.bf16.msra.mxu0 %v292
  %695 = vmatprep.subr.bf16.mxu0 0
  %696 = vmatpush1.bf16.msra.mxu0 %v293
  %697 = vmatprep.subr.bf16.mxu0 0
  %698 = vmatpush1.bf16.msra.mxu0 %v294
  %699 = vmatprep.subr.bf16.mxu0 0
  %700 = vmatpush1.bf16.msra.mxu0 %v295
  %701 = vmatprep.mubr.bf16.mxu0 %v607
  %702 = vmatmul.mubr.bf16.gmra.mrb[0].mxu0 %v606
  %v703 = vpop.f32.mrb[0].mxu0
  %v704 = vadd.f32 %v655, %v703
  %v705 = vpop.f32.mrb[0].mxu0
  %v706 = vpop.f32.mrb[0].mxu0
  %v707 = vadd.f32 %v658, %v706
  %v708 = vpop.f32.mrb[0].mxu0
  %709 = vmatprep.mubr.bf16.mxu0 %v611
  %710 = vmatmul.mubr.bf16.gmra.mrb[0].mxu0 %v610
  %v711 = vpop.f32.mrb[0].mxu0
  %v712 = vadd.f32 %v663, %v711
  %v713 = vpop.f32.mrb[0].mxu0
  %v714 = vpop.f32.mrb[0].mxu0
  %v715 = vadd.f32 %v666, %v714
  %v716 = vpop.f32.mrb[0].mxu0
  %717 = vdwg.mxu0
  %v718 = vld [vmem:[%s3] sm:$0xff]
  %v719 = vld [vmem:[%s3 + $0x8] sm:$0xff]
  %v720 = vld [vmem:[%s3 + $0x10] sm:$0xff]
  %v721 = vld [vmem:[%s3 + $0x18] sm:$0xff]
  %v722 = vld [vmem:[%s3 + $0x20] sm:$0xff]
  %v723 = vld [vmem:[%s3 + $0x28] sm:$0xff]
  %v724 = vld [vmem:[%s3 + $0x30] sm:$0xff]
  %v725 = vld [vmem:[%s3 + $0x38] sm:$0xff]
  %v734 = vunpack.c.l.b16 %v718
  %v735 = vunpack.c.h.b16 %v718
  %v736 = vunpack.c.l.b16 %v719
  %v737 = vunpack.c.h.b16 %v719
  %v738 = vunpack.c.l.b16 %v720
  %v739 = vunpack.c.h.b16 %v720
  %v740 = vunpack.c.l.b16 %v721
  %v741 = vunpack.c.h.b16 %v721
  %v742 = vunpack.c.l.b16 %v722
  %v743 = vunpack.c.h.b16 %v722
  %v744 = vunpack.c.l.b16 %v723
  %v745 = vunpack.c.h.b16 %v723
  %v746 = vunpack.c.l.b16 %v724
  %v747 = vunpack.c.h.b16 %v724
  %v748 = vunpack.c.l.b16 %v725
  %v749 = vunpack.c.h.b16 %v725
  %v750 = vpack.c.b16 %v738, %v734
  %v751 = vpack.c.b16 %v739, %v735
  %v752 = vpack.c.b16 %v740, %v736
  %v753 = vpack.c.b16 %v741, %v737
  %v754 = vpack.c.b16 %v746, %v742
  %v755 = vpack.c.b16 %v747, %v743
  %v756 = vpack.c.b16 %v748, %v744
  %v757 = vpack.c.b16 %v749, %v745
  %766 = vmatprep.subr.bf16.mxu0 0
  %767 = vmatpush1.bf16.msra.mxu0 %v264
  %768 = vmatprep.subr.bf16.mxu0 0
  %769 = vmatpush1.bf16.msra.mxu0 %v265
  %770 = vmatprep.subr.bf16.mxu0 0
  %771 = vmatpush1.bf16.msra.mxu0 %v266
  %772 = vmatprep.subr.bf16.mxu0 0
  %773 = vmatpush1.bf16.msra.mxu0 %v267
  %774 = vmatprep.subr.bf16.mxu0 0
  %775 = vmatpush1.bf16.msra.mxu0 %v268
  %776 = vmatprep.subr.bf16.mxu0 0
  %777 = vmatpush1.bf16.msra.mxu0 %v269
  %778 = vmatprep.subr.bf16.mxu0 0
  %779 = vmatpush1.bf16.msra.mxu0 %v270
  %780 = vmatprep.subr.bf16.mxu0 0
  %781 = vmatpush1.bf16.msra.mxu0 %v271
  %782 = vmatprep.subr.bf16.mxu0 0
  %783 = vmatpush1.bf16.msra.mxu0 %v272
  %784 = vmatprep.subr.bf16.mxu0 0
  %785 = vmatpush1.bf16.msra.mxu0 %v273
  %786 = vmatprep.subr.bf16.mxu0 0
  %787 = vmatpush1.bf16.msra.mxu0 %v274
  %788 = vmatprep.subr.bf16.mxu0 0
  %789 = vmatpush1.bf16.msra.mxu0 %v275
  %790 = vmatprep.subr.bf16.mxu0 0
  %791 = vmatpush1.bf16.msra.mxu0 %v276
  %792 = vmatprep.subr.bf16.mxu0 0
  %793 = vmatpush1.bf16.msra.mxu0 %v277
  %794 = vmatprep.subr.bf16.mxu0 0
  %795 = vmatpush1.bf16.msra.mxu0 %v278
  %796 = vmatprep.subr.bf16.mxu0 0
  %797 = vmatpush1.bf16.msra.mxu0 %v279
  %798 = vmatprep.mubr.bf16.mxu0 %v751
  %799 = vmatmul.mubr.bf16.gmra.mrb[0].mxu0 %v750
  %v800 = vpop.f32.mrb[0].mxu0
  %v801 = vadd.f32 0.0, %v800
  %v802 = vpop.f32.mrb[0].mxu0
  %v803 = vpop.f32.mrb[0].mxu0
  %v804 = vadd.f32 0.0, %v803
  %v805 = vpop.f32.mrb[0].mxu0
  %806 = vmatprep.mubr.bf16.mxu0 %v755
  %807 = vmatmul.mubr.bf16.gmra.mrb[0].mxu0 %v754
  %v808 = vpop.f32.mrb[0].mxu0
  %v809 = vadd.f32 0.0, %v808
  %v810 = vpop.f32.mrb[0].mxu0
  %v811 = vpop.f32.mrb[0].mxu0
  %v812 = vadd.f32 0.0, %v811
  %v813 = vpop.f32.mrb[0].mxu0
  %814 = vdwg.mxu0
  %815 = vmatprep.subr.bf16.mxu0 0
  %816 = vmatpush1.bf16.msra.mxu0 %v280
  %817 = vmatprep.subr.bf16.mxu0 0
  %818 = vmatpush1.bf16.msra.mxu0 %v281
  %819 = vmatprep.subr.bf16.mxu0 0
  %820 = vmatpush1.bf16.msra.mxu0 %v282
  %821 = vmatprep.subr.bf16.mxu0 0
  %822 = vmatpush1.bf16.msra.mxu0 %v283
  %823 = vmatprep.subr.bf16.mxu0 0
  %824 = vmatpush1.bf16.msra.mxu0 %v284
  %825 = vmatprep.subr.bf16.mxu0 0
  %826 = vmatpush1.bf16.msra.mxu0 %v285
  %827 = vmatprep.subr.bf16.mxu0 0
  %828 = vmatpush1.bf16.msra.mxu0 %v286
  %829 = vmatprep.subr.bf16.mxu0 0
  %830 = vmatpush1.bf16.msra.mxu0 %v287
  %831 = vmatprep.subr.bf16.mxu0 0
  %832 = vmatpush1.bf16.msra.mxu0 %v288
  %833 = vmatprep.subr.bf16.mxu0 0
  %834 = vmatpush1.bf16.msra.mxu0 %v289
  %835 = vmatprep.subr.bf16.mxu0 0
  %836 = vmatpush1.bf16.msra.mxu0 %v290
  %837 = vmatprep.subr.bf16.mxu0 0
  %838 = vmatpush1.bf16.msra.mxu0 %v291
  %839 = vmatprep.subr.bf16.mxu0 0
  %840 = vmatpush1.bf16.msra.mxu0 %v292
  %841 = vmatprep.subr.bf16.mxu0 0
  %842 = vmatpush1.bf16.msra.mxu0 %v293
  %843 = vmatprep.subr.bf16.mxu0 0
  %844 = vmatpush1.bf16.msra.mxu0 %v294
  %845 = vmatprep.subr.bf16.mxu0 0
  %846 = vmatpush1.bf16.msra.mxu0 %v295
  %847 = vmatprep.mubr.bf16.mxu0 %v753
  %848 = vmatmul.mubr.bf16.gmra.mrb[0].mxu0 %v752
  %v849 = vpop.f32.mrb[0].mxu0
  %v850 = vadd.f32 %v801, %v849
  %v851 = vpop.f32.mrb[0].mxu0
  %v852 = vpop.f32.mrb[0].mxu0
  %v853 = vadd.f32 %v804, %v852
  %v854 = vpop.f32.mrb[0].mxu0
  %855 = vmatprep.mubr.bf16.mxu0 %v757
  %856 = vmatmul.mubr.bf16.gmra.mrb[0].mxu0 %v756
  %v857 = vpop.f32.mrb[0].mxu0
  %v858 = vadd.f32 %v809, %v857
  %v859 = vpop.f32.mrb[0].mxu0
  %v860 = vpop.f32.mrb[0].mxu0
  %v861 = vadd.f32 %v812, %v860
  %v862 = vpop.f32.mrb[0].mxu0
  %863 = vdwg.mxu0
  %v864 = vmax.f32 %v412, %v558
  %v865 = vmax.f32 %v415, %v561
  %v866 = vmax.f32 %v420, %v566
  %v867 = vmax.f32 %v423, %v569
  %v868 = vmax.f32 %v704, %v850
  %v869 = vmax.f32 %v707, %v853
  %v870 = vmax.f32 %v712, %v858
  %v871 = vmax.f32 %v715, %v861
  %v872 = vmax.f32 %v864, %v868
  %v873 = vmax.f32 %v865, %v869
  %v874 = vmax.f32 %v866, %v870
  %v875 = vmax.f32 %v867, %v871
  %v876 = vld [vmem:[%s5] sm:$0x1]
  %v878 = vlaneseq
  %v879 = vshrl.u32 %v878, 7
  %v880 = vsub.s32 0, %v879
  %v881 = vrot.slane %v876, %v880
  %v883 = vadd.f32 %v872, %v881
  %v884 = vadd.f32 %v873, %v881
  %v885 = vadd.f32 %v874, %v881
  %v886 = vadd.f32 %v875, %v881
  %v887 = vmax.f32 %v883, 0.0
  %v888 = vmax.f32 %v884, 0.0
  %v889 = vmax.f32 %v885, 0.0
  %v890 = vmax.f32 %v886, 0.0
  %v891 = vpack.c.bf16 %v888, %v887
  %v892 = vpack.c.bf16 %v890, %v889
  %v895 = vunpack.c.l.b16 %v891
  %v896 = vunpack.c.h.b16 %v891
  %v897 = vunpack.c.l.b16 %v892
  %v898 = vunpack.c.h.b16 %v892
  %v899 = vpack.c.b16 %v895, %v895
  %v900 = vpack.c.b16 %v896, %v896
  %v901 = vpack.c.b16 %v897, %v897
  %v902 = vpack.c.b16 %v898, %v898
  %907 = vst [vmem:[%s6] sm:$0xf] %v899
  %908 = vst [vmem:[%s6 + $0x4] sm:$0xf] %v900
  %909 = vst [vmem:[%s6 + $0x8] sm:$0xf] %v901
  %910 = vst [vmem:[%s6 + $0xc] sm:$0xf] %v902
  // Predicated region
  $region26: #{forward.5} parent=0 // pred_check
    _
  $region27: #{forward.5} parent=0 // pred_check_branch
    %912 = sbr.rel (0) target = $region29
  $region28: #{forward.5} parent=0 // pred_region
    _
  $region29: #{forward.5} parent=0 // pred_fallthru
    _
  // Predicated region
  $region30: #{forward.5} parent=0 // pred_check
    _
  $region31: #{forward.5} parent=0 // pred_check_branch
    %914 = sbr.rel (0) target = $region33
  $region32: #{forward.5} parent=0 // pred_region
    _
  $region33: #{forward.5} parent=0 // pred_fallthru
    _

// kernel: forward.6
$region0: #{forward.6}
  #allocation0 [shape = 'u32[]', space=smem, size = 0x4, offset = 0x4, fixed_abs, tag = 'smem constant byte address 0x4 - core index']
  #allocation1 [shape = 'u32[144,128]{1,0:T(1,128)}', space=vmem, size = 0x12000, scoped, tag = 'internal scratch']
  %s0 = inlined_call_operand.vmem [shape: bf16[8,384], index: 0, kind: input, shape index: {}]
  %s1 = inlined_call_operand.vmem [shape: bf16[8,384], index: 1, kind: input, shape index: {}]
  %s2 = inlined_call_operand.vmem [shape: bf16[8,384], index: 2, kind: input, shape index: {}]
  %s3 = inlined_call_operand.vmem [shape: bf16[8,384], index: 3, kind: input, shape index: {}]
  %s4 = inlined_call_operand.vmem [shape: bf16[384,128], index: 4, kind: input, shape index: {}]
  %s5 = inlined_call_operand.vmem [shape: f32[1,128], index: 5, kind: input, shape index: {}]
  %s6 = inlined_call_operand.vmem [shape: bf16[8,128], index: 6, kind: output, shape index: {}]
  %s7 = sld [smem:[#allocation0]]
  $region34: #{forward.6} parent=0
    _
  %s9 = ssub.s32 1, %s7
  %s10 = scalar_select 0, %s9, %s7
  // Predicated region
  $region2: #{forward.6} parent=0 // pred_check
    _
  $region3: #{forward.6} parent=0 // pred_check_branch
    %12 = sbr.rel (0) target = $region5
  $region4: #{forward.6} parent=0 // pred_region
    _
  $region5: #{forward.6} parent=0 // pred_fallthru
    _
  // Predicated region
  $region6: #{forward.6} parent=0 // pred_check
    _
  $region7: #{forward.6} parent=0 // pred_check_branch
    %14 = sbr.rel (0) target = $region9
  $region8: #{forward.6} parent=0 // pred_region
    _
  $region9: #{forward.6} parent=0 // pred_fallthru
    _
  // Predicated region
  $region10: #{forward.6} parent=0 // pred_check
    _
  $region11: #{forward.6} parent=0 // pred_check_branch
    %16 = sbr.rel (0) target = $region13
  $region12: #{forward.6} parent=0 // pred_region
    _
  $region13: #{forward.6} parent=0 // pred_fallthru
    _
  // Predicated region
  $region14: #{forward.6} parent=0 // pred_check
    _
  $region15: #{forward.6} parent=0 // pred_check_branch
    %18 = sbr.rel (0) target = $region17
  $region16: #{forward.6} parent=0 // pred_region
    _
  $region17: #{forward.6} parent=0 // pred_fallthru
    _
  // Predicated region
  $region18: #{forward.6} parent=0 // pred_check
    _
  $region19: #{forward.6} parent=0 // pred_check_branch
    %20 = sbr.rel (0) target = $region21
  $region20: #{forward.6} parent=0 // pred_region
    _
  $region21: #{forward.6} parent=0 // pred_fallthru
    _
  // Predicated region
  $region22: #{forward.6} parent=0 // pred_check
    _
  $region23: #{forward.6} parent=0 // pred_check_branch
    %22 = sbr.rel (0) target = $region25
  $region24: #{forward.6} parent=0 // pred_region
    _
  $region25: #{forward.6} parent=0 // pred_fallthru
    _
  %v24 = vld [vmem:[%s4] sm:$0xf]
  %v25 = vld [vmem:[%s4 + $0x4] sm:$0xf]
  %v26 = vld [vmem:[%s4 + $0x8] sm:$0xf]
  %v27 = vld [vmem:[%s4 + $0xc] sm:$0xf]
  %v28 = vld [vmem:[%s4 + $0x10] sm:$0xf]
  %v29 = vld [vmem:[%s4 + $0x14] sm:$0xf]
  %v30 = vld [vmem:[%s4 + $0x18] sm:$0xf]
  %v31 = vld [vmem:[%s4 + $0x1c] sm:$0xf]
  %v32 = vld [vmem:[%s4 + $0x20] sm:$0xf]
  %v33 = vld [vmem:[%s4 + $0x24] sm:$0xf]
  %v34 = vld [vmem:[%s4 + $0x28] sm:$0xf]
  %v35 = vld [vmem:[%s4 + $0x2c] sm:$0xf]
  %v36 = vld [vmem:[%s4 + $0x30] sm:$0xf]
  %v37 = vld [vmem:[%s4 + $0x34] sm:$0xf]
  %v38 = vld [vmem:[%s4 + $0x38] sm:$0xf]
  %v39 = vld [vmem:[%s4 + $0x3c] sm:$0xf]
  %v40 = vld [vmem:[%s4 + $0x40] sm:$0xf]
  %v41 = vld [vmem:[%s4 + $0x44] sm:$0xf]
  %v42 = vld [vmem:[%s4 + $0x48] sm:$0xf]
  %v43 = vld [vmem:[%s4 + $0x4c] sm:$0xf]
  %v44 = vld [vmem:[%s4 + $0x50] sm:$0xf]
  %v45 = vld [vmem:[%s4 + $0x54] sm:$0xf]
  %v46 = vld [vmem:[%s4 + $0x58] sm:$0xf]
  %v47 = vld [vmem:[%s4 + $0x5c] sm:$0xf]
  %v48 = vld [vmem:[%s4 + $0x60] sm:$0xf]
  %v49 = vld [vmem:[%s4 + $0x64] sm:$0xf]
  %v50 = vld [vmem:[%s4 + $0x68] sm:$0xf]
  %v51 = vld [vmem:[%s4 + $0x6c] sm:$0xf]
  %v52 = vld [vmem:[%s4 + $0x70] sm:$0xf]
  %v53 = vld [vmem:[%s4 + $0x74] sm:$0xf]
  %v54 = vld [vmem:[%s4 + $0x78] sm:$0xf]
  %v55 = vld [vmem:[%s4 + $0x7c] sm:$0xf]
  %v56 = vld [vmem:[%s4 + $0x80] sm:$0xf]
  %v57 = vld [vmem:[%s4 + $0x84] sm:$0xf]
  %v58 = vld [vmem:[%s4 + $0x88] sm:$0xf]
  %v59 = vld [vmem:[%s4 + $0x8c] sm:$0xf]
  %v60 = vld [vmem:[%s4 + $0x90] sm:$0xf]
  %v61 = vld [vmem:[%s4 + $0x94] sm:$0xf]
  %v62 = vld [vmem:[%s4 + $0x98] sm:$0xf]
  %v63 = vld [vmem:[%s4 + $0x9c] sm:$0xf]
  %v64 = vld [vmem:[%s4 + $0xa0] sm:$0xf]
  %v65 = vld [vmem:[%s4 + $0xa4] sm:$0xf]
  %v66 = vld [vmem:[%s4 + $0xa8] sm:$0xf]
  %v67 = vld [vmem:[%s4 + $0xac] sm:$0xf]
  %v68 = vld [vmem:[%s4 + $0xb0] sm:$0xf]
  %v69 = vld [vmem:[%s4 + $0xb4] sm:$0xf]
  %v70 = vld [vmem:[%s4 + $0xb8] sm:$0xf]
  %v71 = vld [vmem:[%s4 + $0xbc] sm:$0xf]
  %v72 = vld [vmem:[%s0] sm:$0xff]
  %v73 = vld [vmem:[%s0 + $0x8] sm:$0xf]
  %v76 = vunpack.c.l.b16 %v72
  %v77 = vunpack.c.h.b16 %v72
  %v78 = vunpack.c.l.b16 %v73
  %v79 = vpack.c.b16 %v76, %v76
  %v80 = vpack.c.b16 %v77, %v77
  %v81 = vpack.c.b16 %v78, %v78
  %v133 = vunpack.c.l.b16 %v24
  %v134 = vunpack.c.l.b16 %v25
  %v135 = vunpack.c.l.b16 %v26
  %v136 = vunpack.c.l.b16 %v27
  %v137 = vunpack.c.l.b16 %v28
  %v138 = vunpack.c.l.b16 %v29
  %v139 = vunpack.c.l.b16 %v30
  %v140 = vunpack.c.l.b16 %v31
  %v141 = vunpack.c.l.b16 %v32
  %v142 = vunpack.c.l.b16 %v33
  %v143 = vunpack.c.l.b16 %v34
  %v144 = vunpack.c.l.b16 %v35
  %v145 = vunpack.c.l.b16 %v36
  %v146 = vunpack.c.l.b16 %v37
  %v147 = vunpack.c.l.b16 %v38
  %v148 = vunpack.c.l.b16 %v39
  %v149 = vunpack.c.l.b16 %v40
  %v150 = vunpack.c.l.b16 %v41
  %v151 = vunpack.c.l.b16 %v42
  %v152 = vunpack.c.l.b16 %v43
  %v153 = vunpack.c.l.b16 %v44
  %v154 = vunpack.c.l.b16 %v45
  %v155 = vunpack.c.l.b16 %v46
  %v156 = vunpack.c.l.b16 %v47
  %v157 = vunpack.c.l.b16 %v48
  %v158 = vunpack.c.l.b16 %v49
  %v159 = vunpack.c.l.b16 %v50
  %v160 = vunpack.c.l.b16 %v51
  %v161 = vunpack.c.l.b16 %v52
  %v162 = vunpack.c.l.b16 %v53
  %v163 = vunpack.c.l.b16 %v54
  %v164 = vunpack.c.l.b16 %v55
  %v165 = vunpack.c.l.b16 %v56
  %v166 = vunpack.c.l.b16 %v57
  %v167 = vunpack.c.l.b16 %v58
  %v168 = vunpack.c.l.b16 %v59
  %v169 = vunpack.c.l.b16 %v60
  %v170 = vunpack.c.l.b16 %v61
  %v171 = vunpack.c.l.b16 %v62
  %v172 = vunpack.c.l.b16 %v63
  %v173 = vunpack.c.l.b16 %v64
  %v174 = vunpack.c.l.b16 %v65
  %v175 = vunpack.c.l.b16 %v66
  %v176 = vunpack.c.l.b16 %v67
  %v177 = vunpack.c.l.b16 %v68
  %v178 = vunpack.c.l.b16 %v69
  %v179 = vunpack.c.l.b16 %v70
  %v180 = vunpack.c.l.b16 %v71
  %v181 = vpack.c.b16 %v134, %v133
  %v182 = vpack.c.b16 %v136, %v135
  %v183 = vpack.c.b16 %v138, %v137
  %v184 = vpack.c.b16 %v140, %v139
  %v185 = vpack.c.b16 %v142, %v141
  %v186 = vpack.c.b16 %v144, %v143
  %v187 = vpack.c.b16 %v146, %v145
  %v188 = vpack.c.b16 %v148, %v147
  %v189 = vpack.c.b16 %v150, %v149
  %v190 = vpack.c.b16 %v152, %v151
  %v191 = vpack.c.b16 %v154, %v153
  %v192 = vpack.c.b16 %v156, %v155
  %v193 = vpack.c.b16 %v158, %v157
  %v194 = vpack.c.b16 %v160, %v159
  %v195 = vpack.c.b16 %v162, %v161
  %v196 = vpack.c.b16 %v164, %v163
  %v197 = vpack.c.b16 %v166, %v165
  %v198 = vpack.c.b16 %v168, %v167
  %v199 = vpack.c.b16 %v170, %v169
  %v200 = vpack.c.b16 %v172, %v171
  %v201 = vpack.c.b16 %v174, %v173
  %v202 = vpack.c.b16 %v176, %v175
  %v203 = vpack.c.b16 %v178, %v177
  %v204 = vpack.c.b16 %v180, %v179
  %229 = vmatprep.subr.bf16.mxu0 0
  %230 = vmatpush1.bf16.msra.mxu0 %v181
  %231 = vmatprep.subr.bf16.mxu0 0
  %232 = vmatpush1.bf16.msra.mxu0 %v182
  %233 = vmatprep.subr.bf16.mxu0 0
  %234 = vmatpush1.bf16.msra.mxu0 %v183
  %235 = vmatprep.subr.bf16.mxu0 0
  %236 = vmatpush1.bf16.msra.mxu0 %v184
  %237 = vmatprep.subr.bf16.mxu0 0
  %238 = vmatpush1.bf16.msra.mxu0 %v185
  %239 = vmatprep.subr.bf16.mxu0 0
  %240 = vmatpush1.bf16.msra.mxu0 %v186
  %241 = vmatprep.subr.bf16.mxu0 0
  %242 = vmatpush1.bf16.msra.mxu0 %v187
  %243 = vmatprep.subr.bf16.mxu0 0
  %244 = vmatpush1.bf16.msra.mxu0 %v188
  %245 = vmatprep.subr.bf16.mxu0 0
  %246 = vmatpush1.bf16.msra.mxu0 %v189
  %247 = vmatprep.subr.bf16.mxu0 0
  %248 = vmatpush1.bf16.msra.mxu0 %v190
  %249 = vmatprep.subr.bf16.mxu0 0
  %250 = vmatpush1.bf16.msra.mxu0 %v191
  %251 = vmatprep.subr.bf16.mxu0 0
  %252 = vmatpush1.bf16.msra.mxu0 %v192
  %253 = vmatprep.subr.bf16.mxu0 0
  %254 = vmatpush1.bf16.msra.mxu0 %v193
  %255 = vmatprep.subr.bf16.mxu0 0
  %256 = vmatpush1.bf16.msra.mxu0 %v194
  %257 = vmatprep.subr.bf16.mxu0 0
  %258 = vmatpush1.bf16.msra.mxu0 %v195
  %259 = vmatprep.subr.bf16.mxu0 0
  %260 = vmatpush1.bf16.msra.mxu0 %v196
  %261 = vmatprep.mubr.bf16.mxu0 %v80
  %262 = vmatmul.mubr.bf16.gmra.mrb[0].mxu0 %v79
  %v263 = vpop.f32.mrb[0].mxu0
  %v264 = vadd.f32 0.0, %v263
  %v265 = vpop.f32.mrb[0].mxu0
  %v266 = vpop.f32.mrb[0].mxu0
  %v267 = vpop.f32.mrb[0].mxu0
  %268 = vdwg.mxu0
  %269 = vmatprep.subr.bf16.mxu0 0
  %270 = vmatpush1.bf16.msra.mxu0 %v197
  %271 = vmatprep.subr.bf16.mxu0 0
  %272 = vmatpush1.bf16.msra.mxu0 %v198
  %273 = vmatprep.subr.bf16.mxu0 0
  %274 = vmatpush1.bf16.msra.mxu0 %v199
  %275 = vmatprep.subr.bf16.mxu0 0
  %276 = vmatpush1.bf16.msra.mxu0 %v200
  %277 = vmatprep.subr.bf16.mxu0 0
  %278 = vmatpush1.bf16.msra.mxu0 %v201
  %279 = vmatprep.subr.bf16.mxu0 0
  %280 = vmatpush1.bf16.msra.mxu0 %v202
  %281 = vmatprep.subr.bf16.mxu0 0
  %282 = vmatpush1.bf16.msra.mxu0 %v203
  %283 = vmatprep.subr.bf16.mxu0 0
  %284 = vmatpush1.bf16.msra.mxu0 %v204
  %285 = vmatprep.subr.bf16.mxu0 0
  %286 = vmatpush1.bf16.msra.mxu0 0
  %287 = vmatprep.subr.bf16.mxu0 0
  %288 = vmatpush1.bf16.msra.mxu0 0
  %289 = vmatprep.subr.bf16.mxu0 0
  %290 = vmatpush1.bf16.msra.mxu0 0
  %291 = vmatprep.subr.bf16.mxu0 0
  %292 = vmatpush1.bf16.msra.mxu0 0
  %293 = vmatprep.subr.bf16.mxu0 0
  %294 = vmatpush1.bf16.msra.mxu0 0
  %295 = vmatprep.subr.bf16.mxu0 0
  %296 = vmatpush1.bf16.msra.mxu0 0
  %297 = vmatprep.subr.bf16.mxu0 0
  %298 = vmatpush1.bf16.msra.mxu0 0
  %299 = vmatprep.subr.bf16.mxu0 0
  %300 = vmatpush1.bf16.msra.mxu0 0
  %301 = vmatprep.mubr.bf16.mxu0 0
  %302 = vmatmul.mubr.bf16.gmra.mrb[0].mxu0 %v81
  %v303 = vpop.f32.mrb[0].mxu0
  %v304 = vadd.f32 %v264, %v303
  %v305 = vpop.f32.mrb[0].mxu0
  %v306 = vpop.f32.mrb[0].mxu0
  %v307 = vpop.f32.mrb[0].mxu0
  %308 = vdwg.mxu0
  %v309 = vld [vmem:[%s1] sm:$0xff]
  %v310 = vld [vmem:[%s1 + $0x8] sm:$0xf]
  %v313 = vunpack.c.l.b16 %v309
  %v314 = vunpack.c.h.b16 %v309
  %v315 = vunpack.c.l.b16 %v310
  %v316 = vpack.c.b16 %v313, %v313
  %v317 = vpack.c.b16 %v314, %v314
  %v318 = vpack.c.b16 %v315, %v315
  %322 = vmatprep.subr.bf16.mxu0 0
  %323 = vmatpush1.bf16.msra.mxu0 %v181
  %324 = vmatprep.subr.bf16.mxu0 0
  %325 = vmatpush1.bf16.msra.mxu0 %v182
  %326 = vmatprep.subr.bf16.mxu0 0
  %327 = vmatpush1.bf16.msra.mxu0 %v183
  %328 = vmatprep.subr.bf16.mxu0 0
  %329 = vmatpush1.bf16.msra.mxu0 %v184
  %330 = vmatprep.subr.bf16.mxu0 0
  %331 = vmatpush1.bf16.msra.mxu0 %v185
  %332 = vmatprep.subr.bf16.mxu0 0
  %333 = vmatpush1.bf16.msra.mxu0 %v186
  %334 = vmatprep.subr.bf16.mxu0 0
  %335 = vmatpush1.bf16.msra.mxu0 %v187
  %336 = vmatprep.subr.bf16.mxu0 0
  %337 = vmatpush1.bf16.msra.mxu0 %v188
  %338 = vmatprep.subr.bf16.mxu0 0
  %339 = vmatpush1.bf16.msra.mxu0 %v189
  %340 = vmatprep.subr.bf16.mxu0 0
  %341 = vmatpush1.bf16.msra.mxu0 %v190
  %342 = vmatprep.subr.bf16.mxu0 0
  %343 = vmatpush1.bf16.msra.mxu0 %v191
  %344 = vmatprep.subr.bf16.mxu0 0
  %345 = vmatpush1.bf16.msra.mxu0 %v192
  %346 = vmatprep.subr.bf16.mxu0 0
  %347 = vmatpush1.bf16.msra.mxu0 %v193
  %348 = vmatprep.subr.bf16.mxu0 0
  %349 = vmatpush1.bf16.msra.mxu0 %v194
  %350 = vmatprep.subr.bf16.mxu0 0
  %351 = vmatpush1.bf16.msra.mxu0 %v195
  %352 = vmatprep.subr.bf16.mxu0 0
  %353 = vmatpush1.bf16.msra.mxu0 %v196
  %354 = vmatprep.mubr.bf16.mxu0 %v317
  %355 = vmatmul.mubr.bf16.gmra.mrb[0].mxu0 %v316
  %v356 = vpop.f32.mrb[0].mxu0
  %v357 = vadd.f32 0.0, %v356
  %v358 = vpop.f32.mrb[0].mxu0
  %v359 = vpop.f32.mrb[0].mxu0
  %v360 = vpop.f32.mrb[0].mxu0
  %361 = vdwg.mxu0
  %362 = vmatprep.subr.bf16.mxu0 0
  %363 = vmatpush1.bf16.msra.mxu0 %v197
  %364 = vmatprep.subr.bf16.mxu0 0
  %365 = vmatpush1.bf16.msra.mxu0 %v198
  %366 = vmatprep.subr.bf16.mxu0 0
  %367 = vmatpush1.bf16.msra.mxu0 %v199
  %368 = vmatprep.subr.bf16.mxu0 0
  %369 = vmatpush1.bf16.msra.mxu0 %v200
  %370 = vmatprep.subr.bf16.mxu0 0
  %371 = vmatpush1.bf16.msra.mxu0 %v201
  %372 = vmatprep.subr.bf16.mxu0 0
  %373 = vmatpush1.bf16.msra.mxu0 %v202
  %374 = vmatprep.subr.bf16.mxu0 0
  %375 = vmatpush1.bf16.msra.mxu0 %v203
  %376 = vmatprep.subr.bf16.mxu0 0
  %377 = vmatpush1.bf16.msra.mxu0 %v204
  %378 = vmatprep.subr.bf16.mxu0 0
  %379 = vmatpush1.bf16.msra.mxu0 0
  %380 = vmatprep.subr.bf16.mxu0 0
  %381 = vmatpush1.bf16.msra.mxu0 0
  %382 = vmatprep.subr.bf16.mxu0 0
  %383 = vmatpush1.bf16.msra.mxu0 0
  %384 = vmatprep.subr.bf16.mxu0 0
  %385 = vmatpush1.bf16.msra.mxu0 0
  %386 = vmatprep.subr.bf16.mxu0 0
  %387 = vmatpush1.bf16.msra.mxu0 0
  %388 = vmatprep.subr.bf16.mxu0 0
  %389 = vmatpush1.bf16.msra.mxu0 0
  %390 = vmatprep.subr.bf16.mxu0 0
  %391 = vmatpush1.bf16.msra.mxu0 0
  %392 = vmatprep.subr.bf16.mxu0 0
  %393 = vmatpush1.bf16.msra.mxu0 0
  %394 = vmatprep.mubr.bf16.mxu0 0
  %395 = vmatmul.mubr.bf16.gmra.mrb[0].mxu0 %v318
  %v396 = vpop.f32.mrb[0].mxu0
  %v397 = vadd.f32 %v357, %v396
  %v398 = vpop.f32.mrb[0].mxu0
  %v399 = vpop.f32.mrb[0].mxu0
  %v400 = vpop.f32.mrb[0].mxu0
  %401 = vdwg.mxu0
  %v402 = vld [vmem:[%s2] sm:$0xff]
  %v403 = vld [vmem:[%s2 + $0x8] sm:$0xf]
  %v406 = vunpack.c.l.b16 %v402
  %v407 = vunpack.c.h.b16 %v402
  %v408 = vunpack.c.l.b16 %v403
  %v409 = vpack.c.b16 %v406, %v406
  %v410 = vpack.c.b16 %v407, %v407
  %v411 = vpack.c.b16 %v408, %v408
  %415 = vmatprep.subr.bf16.mxu0 0
  %416 = vmatpush1.bf16.msra.mxu0 %v181
  %417 = vmatprep.subr.bf16.mxu0 0
  %418 = vmatpush1.bf16.msra.mxu0 %v182
  %419 = vmatprep.subr.bf16.mxu0 0
  %420 = vmatpush1.bf16.msra.mxu0 %v183
  %421 = vmatprep.subr.bf16.mxu0 0
  %422 = vmatpush1.bf16.msra.mxu0 %v184
  %423 = vmatprep.subr.bf16.mxu0 0
  %424 = vmatpush1.bf16.msra.mxu0 %v185
  %425 = vmatprep.subr.bf16.mxu0 0
  %426 = vmatpush1.bf16.msra.mxu0 %v186
  %427 = vmatprep.subr.bf16.mxu0 0
  %428 = vmatpush1.bf16.msra.mxu0 %v187
  %429 = vmatprep.subr.bf16.mxu0 0
  %430 = vmatpush1.bf16.msra.mxu0 %v188
  %431 = vmatprep.subr.bf16.mxu0 0
  %432 = vmatpush1.bf16.msra.mxu0 %v189
  %433 = vmatprep.subr.bf16.mxu0 0
  %434 = vmatpush1.bf16.msra.mxu0 %v190
  %435 = vmatprep.subr.bf16.mxu0 0
  %436 = vmatpush1.bf16.msra.mxu0 %v191
  %437 = vmatprep.subr.bf16.mxu0 0
  %438 = vmatpush1.bf16.msra.mxu0 %v192
  %439 = vmatprep.subr.bf16.mxu0 0
  %440 = vmatpush1.bf16.msra.mxu0 %v193
  %441 = vmatprep.subr.bf16.mxu0 0
  %442 = vmatpush1.bf16.msra.mxu0 %v194
  %443 = vmatprep.subr.bf16.mxu0 0
  %444 = vmatpush1.bf16.msra.mxu0 %v195
  %445 = vmatprep.subr.bf16.mxu0 0
  %446 = vmatpush1.bf16.msra.mxu0 %v196
  %447 = vmatprep.mubr.bf16.mxu0 %v410
  %448 = vmatmul.mubr.bf16.gmra.mrb[0].mxu0 %v409
  %v449 = vpop.f32.mrb[0].mxu0
  %v450 = vadd.f32 0.0, %v449
  %v451 = vpop.f32.mrb[0].mxu0
  %v452 = vpop.f32.mrb[0].mxu0
  %v453 = vpop.f32.mrb[0].mxu0
  %454 = vdwg.mxu0
  %455 = vmatprep.subr.bf16.mxu0 0
  %456 = vmatpush1.bf16.msra.mxu0 %v197
  %457 = vmatprep.subr.bf16.mxu0 0
  %458 = vmatpush1.bf16.msra.mxu0 %v198
  %459 = vmatprep.subr.bf16.mxu0 0
  %460 = vmatpush1.bf16.msra.mxu0 %v199
  %461 = vmatprep.subr.bf16.mxu0 0
  %462 = vmatpush1.bf16.msra.mxu0 %v200
  %463 = vmatprep.subr.bf16.mxu0 0
  %464 = vmatpush1.bf16.msra.mxu0 %v201
  %465 = vmatprep.subr.bf16.mxu0 0
  %466 = vmatpush1.bf16.msra.mxu0 %v202
  %467 = vmatprep.subr.bf16.mxu0 0
  %468 = vmatpush1.bf16.msra.mxu0 %v203
  %469 = vmatprep.subr.bf16.mxu0 0
  %470 = vmatpush1.bf16.msra.mxu0 %v204
  %471 = vmatprep.subr.bf16.mxu0 0
  %472 = vmatpush1.bf16.msra.mxu0 0
  %473 = vmatprep.subr.bf16.mxu0 0
  %474 = vmatpush1.bf16.msra.mxu0 0
  %475 = vmatprep.subr.bf16.mxu0 0
  %476 = vmatpush1.bf16.msra.mxu0 0
  %477 = vmatprep.subr.bf16.mxu0 0
  %478 = vmatpush1.bf16.msra.mxu0 0
  %479 = vmatprep.subr.bf16.mxu0 0
  %480 = vmatpush1.bf16.msra.mxu0 0
  %481 = vmatprep.subr.bf16.mxu0 0
  %482 = vmatpush1.bf16.msra.mxu0 0
  %483 = vmatprep.subr.bf16.mxu0 0
  %484 = vmatpush1.bf16.msra.mxu0 0
  %485 = vmatprep.subr.bf16.mxu0 0
  %486 = vmatpush1.bf16.msra.mxu0 0
  %487 = vmatprep.mubr.bf16.mxu0 0
  %488 = vmatmul.mubr.bf16.gmra.mrb[0].mxu0 %v411
  %v489 = vpop.f32.mrb[0].mxu0
  %v490 = vadd.f32 %v450, %v489
  %v491 = vpop.f32.mrb[0].mxu0
  %v492 = vpop.f32.mrb[0].mxu0
  %v493 = vpop.f32.mrb[0].mxu0
  %494 = vdwg.mxu0
  %v495 = vld [vmem:[%s3] sm:$0xff]
  %v496 = vld [vmem:[%s3 + $0x8] sm:$0xf]
  %v499 = vunpack.c.l.b16 %v495
  %v500 = vunpack.c.h.b16 %v495
  %v501 = vunpack.c.l.b16 %v496
  %v502 = vpack.c.b16 %v499, %v499
  %v503 = vpack.c.b16 %v500, %v500
  %v504 = vpack.c.b16 %v501, %v501
  %508 = vmatprep.subr.bf16.mxu0 0
  %509 = vmatpush1.bf16.msra.mxu0 %v181
  %510 = vmatprep.subr.bf16.mxu0 0
  %511 = vmatpush1.bf16.msra.mxu0 %v182
  %512 = vmatprep.subr.bf16.mxu0 0
  %513 = vmatpush1.bf16.msra.mxu0 %v183
  %514 = vmatprep.subr.bf16.mxu0 0
  %515 = vmatpush1.bf16.msra.mxu0 %v184
  %516 = vmatprep.subr.bf16.mxu0 0
  %517 = vmatpush1.bf16.msra.mxu0 %v185
  %518 = vmatprep.subr.bf16.mxu0 0
  %519 = vmatpush1.bf16.msra.mxu0 %v186
  %520 = vmatprep.subr.bf16.mxu0 0
  %521 = vmatpush1.bf16.msra.mxu0 %v187
  %522 = vmatprep.subr.bf16.mxu0 0
  %523 = vmatpush1.bf16.msra.mxu0 %v188
  %524 = vmatprep.subr.bf16.mxu0 0
  %525 = vmatpush1.bf16.msra.mxu0 %v189
  %526 = vmatprep.subr.bf16.mxu0 0
  %527 = vmatpush1.bf16.msra.mxu0 %v190
  %528 = vmatprep.subr.bf16.mxu0 0
  %529 = vmatpush1.bf16.msra.mxu0 %v191
  %530 = vmatprep.subr.bf16.mxu0 0
  %531 = vmatpush1.bf16.msra.mxu0 %v192
  %532 = vmatprep.subr.bf16.mxu0 0
  %533 = vmatpush1.bf16.msra.mxu0 %v193
  %534 = vmatprep.subr.bf16.mxu0 0
  %535 = vmatpush1.bf16.msra.mxu0 %v194
  %536 = vmatprep.subr.bf16.mxu0 0
  %537 = vmatpush1.bf16.msra.mxu0 %v195
  %538 = vmatprep.subr.bf16.mxu0 0
  %539 = vmatpush1.bf16.msra.mxu0 %v196
  %540 = vmatprep.mubr.bf16.mxu0 %v503
  %541 = vmatmul.mubr.bf16.gmra.mrb[0].mxu0 %v502
  %v542 = vpop.f32.mrb[0].mxu0
  %v543 = vadd.f32 0.0, %v542
  %v544 = vpop.f32.mrb[0].mxu0
  %v545 = vpop.f32.mrb[0].mxu0
  %v546 = vpop.f32.mrb[0].mxu0
  %547 = vdwg.mxu0
  %548 = vmatprep.subr.bf16.mxu0 0
  %549 = vmatpush1.bf16.msra.mxu0 %v197
  %550 = vmatprep.subr.bf16.mxu0 0
  %551 = vmatpush1.bf16.msra.mxu0 %v198
  %552 = vmatprep.subr.bf16.mxu0 0
  %553 = vmatpush1.bf16.msra.mxu0 %v199
  %554 = vmatprep.subr.bf16.mxu0 0
  %555 = vmatpush1.bf16.msra.mxu0 %v200
  %556 = vmatprep.subr.bf16.mxu0 0
  %557 = vmatpush1.bf16.msra.mxu0 %v201
  %558 = vmatprep.subr.bf16.mxu0 0
  %559 = vmatpush1.bf16.msra.mxu0 %v202
  %560 = vmatprep.subr.bf16.mxu0 0
  %561 = vmatpush1.bf16.msra.mxu0 %v203
  %562 = vmatprep.subr.bf16.mxu0 0
  %563 = vmatpush1.bf16.msra.mxu0 %v204
  %564 = vmatprep.subr.bf16.mxu0 0
  %565 = vmatpush1.bf16.msra.mxu0 0
  %566 = vmatprep.subr.bf16.mxu0 0
  %567 = vmatpush1.bf16.msra.mxu0 0
  %568 = vmatprep.subr.bf16.mxu0 0
  %569 = vmatpush1.bf16.msra.mxu0 0
  %570 = vmatprep.subr.bf16.mxu0 0
  %571 = vmatpush1.bf16.msra.mxu0 0
  %572 = vmatprep.subr.bf16.mxu0 0
  %573 = vmatpush1.bf16.msra.mxu0 0
  %574 = vmatprep.subr.bf16.mxu0 0
  %575 = vmatpush1.bf16.msra.mxu0 0
  %576 = vmatprep.subr.bf16.mxu0 0
  %577 = vmatpush1.bf16.msra.mxu0 0
  %578 = vmatprep.subr.bf16.mxu0 0
  %579 = vmatpush1.bf16.msra.mxu0 0
  %580 = vmatprep.mubr.bf16.mxu0 0
  %581 = vmatmul.mubr.bf16.gmra.mrb[0].mxu0 %v504
  %v582 = vpop.f32.mrb[0].mxu0
  %v583 = vadd.f32 %v543, %v582
  %v584 = vpop.f32.mrb[0].mxu0
  %v585 = vpop.f32.mrb[0].mxu0
  %v586 = vpop.f32.mrb[0].mxu0
  %587 = vdwg.mxu0
  %v588 = vmax.f32 %v304, %v397
  %v589 = vmax.f32 %v490, %v583
  %v590 = vmax.f32 %v588, %v589
  %v591 = vld [vmem:[%s5] sm:$0x1]
  %v593 = vlaneseq
  %v594 = vshrl.u32 %v593, 7
  %v595 = vsub.s32 0, %v594
  %v596 = vrot.slane %v591, %v595
  %v598 = vadd.f32 %v590, %v596
  %v599 = vmax.f32 %v598, 0.0
  %v600 = vpack.c.bf16 %v599, %v599
  %601 = vst [vmem:[%s6] sm:$0xf] %v600
  // Predicated region
  $region26: #{forward.6} parent=0 // pred_check
    _
  $region27: #{forward.6} parent=0 // pred_check_branch
    %603 = sbr.rel (0) target = $region29
  $region28: #{forward.6} parent=0 // pred_region
    _
  $region29: #{forward.6} parent=0 // pred_fallthru
    _
  // Predicated region
  $region30: #{forward.6} parent=0 // pred_check
    _
  $region31: #{forward.6} parent=0 // pred_check_branch
    %605 = sbr.rel (0) target = $region33
  $region32: #{forward.6} parent=0 // pred_region
    _
  $region33: #{forward.6} parent=0 // pred_fallthru
    _

// kernel: forward.7
$region0: #{forward.7}
  #allocation0 [shape = 'u32[]', space=smem, size = 0x4, offset = 0x4, fixed_abs, tag = 'smem constant byte address 0x4 - core index']
  #allocation1 [shape = 'u32[144,128]{1,0:T(1,128)}', space=vmem, size = 0x12000, scoped, tag = 'internal scratch']
  %s0 = inlined_call_operand.vmem [shape: bf16[8,512], index: 0, kind: input, shape index: {}]
  %s1 = inlined_call_operand.vmem [shape: bf16[512,256], index: 1, kind: input, shape index: {}]
  %s2 = inlined_call_operand.vmem [shape: f32[1,256], index: 2, kind: input, shape index: {}]
  %s3 = inlined_call_operand.vmem [shape: bf16[256,128], index: 3, kind: input, shape index: {}]
  %s4 = inlined_call_operand.vmem [shape: f32[1,128], index: 4, kind: input, shape index: {}]
  %s5 = inlined_call_operand.vmem [shape: bf16[128,128], index: 5, kind: input, shape index: {}]
  %s6 = inlined_call_operand.vmem [shape: f32[1,128], index: 6, kind: input, shape index: {}]
  %s7 = inlined_call_operand.vmem [shape: f32[8,128], index: 7, kind: output, shape index: {}]
  %s8 = sld [smem:[#allocation0]]
  $region38: #{forward.7} parent=0
    _
  %s10 = ssub.s32 1, %s8
  %s11 = scalar_select 0, %s10, %s8
  // Predicated region
  $region2: #{forward.7} parent=0 // pred_check
    _
  $region3: #{forward.7} parent=0 // pred_check_branch
    %13 = sbr.rel (0) target = $region5
  $region4: #{forward.7} parent=0 // pred_region
    _
  $region5: #{forward.7} parent=0 // pred_fallthru
    _
  // Predicated region
  $region6: #{forward.7} parent=0 // pred_check
    _
  $region7: #{forward.7} parent=0 // pred_check_branch
    %15 = sbr.rel (0) target = $region9
  $region8: #{forward.7} parent=0 // pred_region
    _
  $region9: #{forward.7} parent=0 // pred_fallthru
    _
  // Predicated region
  $region10: #{forward.7} parent=0 // pred_check
    _
  $region11: #{forward.7} parent=0 // pred_check_branch
    %17 = sbr.rel (0) target = $region13
  $region12: #{forward.7} parent=0 // pred_region
    _
  $region13: #{forward.7} parent=0 // pred_fallthru
    _
  // Predicated region
  $region14: #{forward.7} parent=0 // pred_check
    _
  $region15: #{forward.7} parent=0 // pred_check_branch
    %19 = sbr.rel (0) target = $region17
  $region16: #{forward.7} parent=0 // pred_region
    _
  $region17: #{forward.7} parent=0 // pred_fallthru
    _
  // Predicated region
  $region18: #{forward.7} parent=0 // pred_check
    _
  $region19: #{forward.7} parent=0 // pred_check_branch
    %21 = sbr.rel (0) target = $region21
  $region20: #{forward.7} parent=0 // pred_region
    _
  $region21: #{forward.7} parent=0 // pred_fallthru
    _
  // Predicated region
  $region22: #{forward.7} parent=0 // pred_check
    _
  $region23: #{forward.7} parent=0 // pred_check_branch
    %23 = sbr.rel (0) target = $region25
  $region24: #{forward.7} parent=0 // pred_region
    _
  $region25: #{forward.7} parent=0 // pred_fallthru
    _
  // Predicated region
  $region26: #{forward.7} parent=0 // pred_check
    _
  $region27: #{forward.7} parent=0 // pred_check_branch
    %25 = sbr.rel (0) target = $region29
  $region28: #{forward.7} parent=0 // pred_region
    _
  $region29: #{forward.7} parent=0 // pred_fallthru
    _
  %v27 = vld [vmem:[%s0] sm:$0xff]
  %v28 = vld [vmem:[%s0 + $0x8] sm:$0xff]
  %v29 = vld [vmem:[%s1] sm:$0xff]
  %v30 = vld [vmem:[%s1 + $0x8] sm:$0xff]
  %v31 = vld [vmem:[%s1 + $0x10] sm:$0xff]
  %v32 = vld [vmem:[%s1 + $0x18] sm:$0xff]
  %v33 = vld [vmem:[%s1 + $0x20] sm:$0xff]
  %v34 = vld [vmem:[%s1 + $0x28] sm:$0xff]
  %v35 = vld [vmem:[%s1 + $0x30] sm:$0xff]
  %v36 = vld [vmem:[%s1 + $0x38] sm:$0xff]
  %v37 = vld [vmem:[%s1 + $0x40] sm:$0xff]
  %v38 = vld [vmem:[%s1 + $0x48] sm:$0xff]
  %v39 = vld [vmem:[%s1 + $0x50] sm:$0xff]
  %v40 = vld [vmem:[%s1 + $0x58] sm:$0xff]
  %v41 = vld [vmem:[%s1 + $0x60] sm:$0xff]
  %v42 = vld [vmem:[%s1 + $0x68] sm:$0xff]
  %v43 = vld [vmem:[%s1 + $0x70] sm:$0xff]
  %v44 = vld [vmem:[%s1 + $0x78] sm:$0xff]
  %v45 = vld [vmem:[%s1 + $0x80] sm:$0xff]
  %v46 = vld [vmem:[%s1 + $0x88] sm:$0xff]
  %v47 = vld [vmem:[%s1 + $0x90] sm:$0xff]
  %v48 = vld [vmem:[%s1 + $0x98] sm:$0xff]
  %v49 = vld [vmem:[%s1 + $0xa0] sm:$0xff]
  %v50 = vld [vmem:[%s1 + $0xa8] sm:$0xff]
  %v51 = vld [vmem:[%s1 + $0xb0] sm:$0xff]
  %v52 = vld [vmem:[%s1 + $0xb8] sm:$0xff]
  %v53 = vld [vmem:[%s1 + $0xc0] sm:$0xff]
  %v54 = vld [vmem:[%s1 + $0xc8] sm:$0xff]
  %v55 = vld [vmem:[%s1 + $0xd0] sm:$0xff]
  %v56 = vld [vmem:[%s1 + $0xd8] sm:$0xff]
  %v57 = vld [vmem:[%s1 + $0xe0] sm:$0xff]
  %v58 = vld [vmem:[%s1 + $0xe8] sm:$0xff]
  %v59 = vld [vmem:[%s1 + $0xf0] sm:$0xff]
  %v60 = vld [vmem:[%s1 + $0xf8] sm:$0xff]
  %v61 = vld [vmem:[%s1 + $0x100] sm:$0xff]
  %v62 = vld [vmem:[%s1 + $0x108] sm:$0xff]
  %v63 = vld [vmem:[%s1 + $0x110] sm:$0xff]
  %v64 = vld [vmem:[%s1 + $0x118] sm:$0xff]
  %v65 = vld [vmem:[%s1 + $0x120] sm:$0xff]
  %v66 = vld [vmem:[%s1 + $0x128] sm:$0xff]
  %v67 = vld [vmem:[%s1 + $0x130] sm:$0xff]
  %v68 = vld [vmem:[%s1 + $0x138] sm:$0xff]
  %v69 = vld [vmem:[%s1 + $0x140] sm:$0xff]
  %v70 = vld [vmem:[%s1 + $0x148] sm:$0xff]
  %v71 = vld [vmem:[%s1 + $0x150] sm:$0xff]
  %v72 = vld [vmem:[%s1 + $0x158] sm:$0xff]
  %v73 = vld [vmem:[%s1 + $0x160] sm:$0xff]
  %v74 = vld [vmem:[%s1 + $0x168] sm:$0xff]
  %v75 = vld [vmem:[%s1 + $0x170] sm:$0xff]
  %v76 = vld [vmem:[%s1 + $0x178] sm:$0xff]
  %v77 = vld [vmem:[%s1 + $0x180] sm:$0xff]
  %v78 = vld [vmem:[%s1 + $0x188] sm:$0xff]
  %v79 = vld [vmem:[%s1 + $0x190] sm:$0xff]
  %v80 = vld [vmem:[%s1 + $0x198] sm:$0xff]
  %v81 = vld [vmem:[%s1 + $0x1a0] sm:$0xff]
  %v82 = vld [vmem:[%s1 + $0x1a8] sm:$0xff]
  %v83 = vld [vmem:[%s1 + $0x1b0] sm:$0xff]
  %v84 = vld [vmem:[%s1 + $0x1b8] sm:$0xff]
  %v85 = vld [vmem:[%s1 + $0x1c0] sm:$0xff]
  %v86 = vld [vmem:[%s1 + $0x1c8] sm:$0xff]
  %v87 = vld [vmem:[%s1 + $0x1d0] sm:$0xff]
  %v88 = vld [vmem:[%s1 + $0x1d8] sm:$0xff]
  %v89 = vld [vmem:[%s1 + $0x1e0] sm:$0xff]
  %v90 = vld [vmem:[%s1 + $0x1e8] sm:$0xff]
  %v91 = vld [vmem:[%s1 + $0x1f0] sm:$0xff]
  %v92 = vld [vmem:[%s1 + $0x1f8] sm:$0xff]
  %v93 = vld [vmem:[%s2] sm:$0x3]
  %v95 = vlaneseq
  %v96 = vshrl.u32 %v95, 7
  %v97 = vsub.s32 0, %v96
  %v98 = vrot.slane %v93, %v97
  %v99 = vlaneseq
  %v100 = vshrl.u32 %v99, 7
  %v101 = vsub.s32 1, %v100
  %v102 = vrot.slane %v93, %v101
  %v107 = vunpack.c.l.b16 %v27
  %v108 = vunpack.c.h.b16 %v27
  %v109 = vunpack.c.l.b16 %v28
  %v110 = vunpack.c.h.b16 %v28
  %v111 = vpack.c.b16 %v107, %v107
  %v112 = vpack.c.b16 %v108, %v108
  %v113 = vpack.c.b16 %v109, %v109
  %v114 = vpack.c.b16 %v110, %v110
  %v183 = vunpack.c.l.b16 %v29
  %v184 = vunpack.c.h.b16 %v29
  %v185 = vunpack.c.l.b16 %v30
  %v186 = vunpack.c.h.b16 %v30
  %v187 = vunpack.c.l.b16 %v31
  %v188 = vunpack.c.h.b16 %v31
  %v189 = vunpack.c.l.b16 %v32
  %v190 = vunpack.c.h.b16 %v32
  %v191 = vunpack.c.l.b16 %v33
  %v192 = vunpack.c.h.b16 %v33
  %v193 = vunpack.c.l.b16 %v34
  %v194 = vunpack.c.h.b16 %v34
  %v195 = vunpack.c.l.b16 %v35
  %v196 = vunpack.c.h.b16 %v35
  %v197 = vunpack.c.l.b16 %v36
  %v198 = vunpack.c.h.b16 %v36
  %v199 = vunpack.c.l.b16 %v37
  %v200 = vunpack.c.h.b16 %v37
  %v201 = vunpack.c.l.b16 %v38
  %v202 = vunpack.c.h.b16 %v38
  %v203 = vunpack.c.l.b16 %v39
  %v204 = vunpack.c.h.b16 %v39
  %v205 = vunpack.c.l.b16 %v40
  %v206 = vunpack.c.h.b16 %v40
  %v207 = vunpack.c.l.b16 %v41
  %v208 = vunpack.c.h.b16 %v41
  %v209 = vunpack.c.l.b16 %v42
  %v210 = vunpack.c.h.b16 %v42
  %v211 = vunpack.c.l.b16 %v43
  %v212 = vunpack.c.h.b16 %v43
  %v213 = vunpack.c.l.b16 %v44
  %v214 = vunpack.c.h.b16 %v44
  %v215 = vunpack.c.l.b16 %v45
  %v216 = vunpack.c.h.b16 %v45
  %v217 = vunpack.c.l.b16 %v46
  %v218 = vunpack.c.h.b16 %v46
  %v219 = vunpack.c.l.b16 %v47
  %v220 = vunpack.c.h.b16 %v47
  %v221 = vunpack.c.l.b16 %v48
  %v222 = vunpack.c.h.b16 %v48
  %v223 = vunpack.c.l.b16 %v49
  %v224 = vunpack.c.h.b16 %v49
  %v225 = vunpack.c.l.b16 %v50
  %v226 = vunpack.c.h.b16 %v50
  %v227 = vunpack.c.l.b16 %v51
  %v228 = vunpack.c.h.b16 %v51
  %v229 = vunpack.c.l.b16 %v52
  %v230 = vunpack.c.h.b16 %v52
  %v231 = vunpack.c.l.b16 %v53
  %v232 = vunpack.c.h.b16 %v53
  %v233 = vunpack.c.l.b16 %v54
  %v234 = vunpack.c.h.b16 %v54
  %v235 = vunpack.c.l.b16 %v55
  %v236 = vunpack.c.h.b16 %v55
  %v237 = vunpack.c.l.b16 %v56
  %v238 = vunpack.c.h.b16 %v56
  %v239 = vunpack.c.l.b16 %v57
  %v240 = vunpack.c.h.b16 %v57
  %v241 = vunpack.c.l.b16 %v58
  %v242 = vunpack.c.h.b16 %v58
  %v243 = vunpack.c.l.b16 %v59
  %v244 = vunpack.c.h.b16 %v59
  %v245 = vunpack.c.l.b16 %v60
  %v246 = vunpack.c.h.b16 %v60
  %v247 = vunpack.c.l.b16 %v61
  %v248 = vunpack.c.h.b16 %v61
  %v249 = vunpack.c.l.b16 %v62
  %v250 = vunpack.c.h.b16 %v62
  %v251 = vunpack.c.l.b16 %v63
  %v252 = vunpack.c.h.b16 %v63
  %v253 = vunpack.c.l.b16 %v64
  %v254 = vunpack.c.h.b16 %v64
  %v255 = vunpack.c.l.b16 %v65
  %v256 = vunpack.c.h.b16 %v65
  %v257 = vunpack.c.l.b16 %v66
  %v258 = vunpack.c.h.b16 %v66
  %v259 = vunpack.c.l.b16 %v67
  %v260 = vunpack.c.h.b16 %v67
  %v261 = vunpack.c.l.b16 %v68
  %v262 = vunpack.c.h.b16 %v68
  %v263 = vunpack.c.l.b16 %v69
  %v264 = vunpack.c.h.b16 %v69
  %v265 = vunpack.c.l.b16 %v70
  %v266 = vunpack.c.h.b16 %v70
  %v267 = vunpack.c.l.b16 %v71
  %v268 = vunpack.c.h.b16 %v71
  %v269 = vunpack.c.l.b16 %v72
  %v270 = vunpack.c.h.b16 %v72
  %v271 = vunpack.c.l.b16 %v73
  %v272 = vunpack.c.h.b16 %v73
  %v273 = vunpack.c.l.b16 %v74
  %v274 = vunpack.c.h.b16 %v74
  %v275 = vunpack.c.l.b16 %v75
  %v276 = vunpack.c.h.b16 %v75
  %v277 = vunpack.c.l.b16 %v76
  %v278 = vunpack.c.h.b16 %v76
  %v279 = vunpack.c.l.b16 %v77
  %v280 = vunpack.c.h.b16 %v77
  %v281 = vunpack.c.l.b16 %v78
  %v282 = vunpack.c.h.b16 %v78
  %v283 = vunpack.c.l.b16 %v79
  %v284 = vunpack.c.h.b16 %v79
  %v285 = vunpack.c.l.b16 %v80
  %v286 = vunpack.c.h.b16 %v80
  %v287 = vunpack.c.l.b16 %v81
  %v288 = vunpack.c.h.b16 %v81
  %v289 = vunpack.c.l.b16 %v82
  %v290 = vunpack.c.h.b16 %v82
  %v291 = vunpack.c.l.b16 %v83
  %v292 = vunpack.c.h.b16 %v83
  %v293 = vunpack.c.l.b16 %v84
  %v294 = vunpack.c.h.b16 %v84
  %v295 = vunpack.c.l.b16 %v85
  %v296 = vunpack.c.h.b16 %v85
  %v297 = vunpack.c.l.b16 %v86
  %v298 = vunpack.c.h.b16 %v86
  %v299 = vunpack.c.l.b16 %v87
  %v300 = vunpack.c.h.b16 %v87
  %v301 = vunpack.c.l.b16 %v88
  %v302 = vunpack.c.h.b16 %v88
  %v303 = vunpack.c.l.b16 %v89
  %v304 = vunpack.c.h.b16 %v89
  %v305 = vunpack.c.l.b16 %v90
  %v306 = vunpack.c.h.b16 %v90
  %v307 = vunpack.c.l.b16 %v91
  %v308 = vunpack.c.h.b16 %v91
  %v309 = vunpack.c.l.b16 %v92
  %v310 = vunpack.c.h.b16 %v92
  %v311 = vpack.c.b16 %v185, %v183
  %v312 = vpack.c.b16 %v186, %v184
  %v313 = vpack.c.b16 %v189, %v187
  %v314 = vpack.c.b16 %v190, %v188
  %v315 = vpack.c.b16 %v193, %v191
  %v316 = vpack.c.b16 %v194, %v192
  %v317 = vpack.c.b16 %v197, %v195
  %v318 = vpack.c.b16 %v198, %v196
  %v319 = vpack.c.b16 %v201, %v199
  %v320 = vpack.c.b16 %v202, %v200
  %v321 = vpack.c.b16 %v205, %v203
  %v322 = vpack.c.b16 %v206, %v204
  %v323 = vpack.c.b16 %v209, %v207
  %v324 = vpack.c.b16 %v210, %v208
  %v325 = vpack.c.b16 %v213, %v211
  %v326 = vpack.c.b16 %v214, %v212
  %v327 = vpack.c.b16 %v217, %v215
  %v328 = vpack.c.b16 %v218, %v216
  %v329 = vpack.c.b16 %v221, %v219
  %v330 = vpack.c.b16 %v222, %v220
  %v331 = vpack.c.b16 %v225, %v223
  %v332 = vpack.c.b16 %v226, %v224
  %v333 = vpack.c.b16 %v229, %v227
  %v334 = vpack.c.b16 %v230, %v228
  %v335 = vpack.c.b16 %v233, %v231
  %v336 = vpack.c.b16 %v234, %v232
  %v337 = vpack.c.b16 %v237, %v235
  %v338 = vpack.c.b16 %v238, %v236
  %v339 = vpack.c.b16 %v241, %v239
  %v340 = vpack.c.b16 %v242, %v240
  %v341 = vpack.c.b16 %v245, %v243
  %v342 = vpack.c.b16 %v246, %v244
  %v343 = vpack.c.b16 %v249, %v247
  %v344 = vpack.c.b16 %v250, %v248
  %v345 = vpack.c.b16 %v253, %v251
  %v346 = vpack.c.b16 %v254, %v252
  %v347 = vpack.c.b16 %v257, %v255
  %v348 = vpack.c.b16 %v258, %v256
  %v349 = vpack.c.b16 %v261, %v259
  %v350 = vpack.c.b16 %v262, %v260
  %v351 = vpack.c.b16 %v265, %v263
  %v352 = vpack.c.b16 %v266, %v264
  %v353 = vpack.c.b16 %v269, %v267
  %v354 = vpack.c.b16 %v270, %v268
  %v355 = vpack.c.b16 %v273, %v271
  %v356 = vpack.c.b16 %v274, %v272
  %v357 = vpack.c.b16 %v277, %v275
  %v358 = vpack.c.b16 %v278, %v276
  %v359 = vpack.c.b16 %v281, %v279
  %v360 = vpack.c.b16 %v282, %v280
  %v361 = vpack.c.b16 %v285, %v283
  %v362 = vpack.c.b16 %v286, %v284
  %v363 = vpack.c.b16 %v289, %v287
  %v364 = vpack.c.b16 %v290, %v288
  %v365 = vpack.c.b16 %v293, %v291
  %v366 = vpack.c.b16 %v294, %v292
  %v367 = vpack.c.b16 %v297, %v295
  %v368 = vpack.c.b16 %v298, %v296
  %v369 = vpack.c.b16 %v301, %v299
  %v370 = vpack.c.b16 %v302, %v300
  %v371 = vpack.c.b16 %v305, %v303
  %v372 = vpack.c.b16 %v306, %v304
  %v373 = vpack.c.b16 %v309, %v307
  %v374 = vpack.c.b16 %v310, %v308
  %439 = vmatprep.subr.bf16.mxu0 %v312
  %440 = vmatpush1.bf16.msra.mxu0 %v311
  %441 = vmatprep.subr.bf16.mxu0 %v314
  %442 = vmatpush1.bf16.msra.mxu0 %v313
  %443 = vmatprep.subr.bf16.mxu0 %v316
  %444 = vmatpush1.bf16.msra.mxu0 %v315
  %445 = vmatprep.subr.bf16.mxu0 %v318
  %446 = vmatpush1.bf16.msra.mxu0 %v317
  %447 = vmatprep.subr.bf16.mxu0 %v320
  %448 = vmatpush1.bf16.msra.mxu0 %v319
  %449 = vmatprep.subr.bf16.mxu0 %v322
  %450 = vmatpush1.bf16.msra.mxu0 %v321
  %451 = vmatprep.subr.bf16.mxu0 %v324
  %452 = vmatpush1.bf16.msra.mxu0 %v323
  %453 = vmatprep.subr.bf16.mxu0 %v326
  %454 = vmatpush1.bf16.msra.mxu0 %v325
  %455 = vmatprep.subr.bf16.mxu0 %v328
  %456 = vmatpush1.bf16.msra.mxu0 %v327
  %457 = vmatprep.subr.bf16.mxu0 %v330
  %458 = vmatpush1.bf16.msra.mxu0 %v329
  %459 = vmatprep.subr.bf16.mxu0 %v332
  %460 = vmatpush1.bf16.msra.mxu0 %v331
  %461 = vmatprep.subr.bf16.mxu0 %v334
  %462 = vmatpush1.bf16.msra.mxu0 %v333
  %463 = vmatprep.subr.bf16.mxu0 %v336
  %464 = vmatpush1.bf16.msra.mxu0 %v335
  %465 = vmatprep.subr.bf16.mxu0 %v338
  %466 = vmatpush1.bf16.msra.mxu0 %v337
  %467 = vmatprep.subr.bf16.mxu0 %v340
  %468 = vmatpush1.bf16.msra.mxu0 %v339
  %469 = vmatprep.subr.bf16.mxu0 %v342
  %470 = vmatpush1.bf16.msra.mxu0 %v341
  %471 = vmatprep.mubr.bf16.mxu0 %v112
  %472 = vmatmul.mubr.bf16.gmra.mrb[0].mxu0 %v111
  %v473 = vpop.f32.mrb[0].mxu0
  %v474 = vadd.f32 %v98, %v473
  %v475 = vpop.f32.mrb[0].mxu0
  %v476 = vadd.f32 %v102, %v475
  %v477 = vpop.f32.mrb[0].mxu0
  %v478 = vpop.f32.mrb[0].mxu0
  %479 = vdwg.mxu0
  %480 = vmatprep.subr.bf16.mxu0 %v344
  %481 = vmatpush1.bf16.msra.mxu0 %v343
  %482 = vmatprep.subr.bf16.mxu0 %v346
  %483 = vmatpush1.bf16.msra.mxu0 %v345
  %484 = vmatprep.subr.bf16.mxu0 %v348
  %485 = vmatpush1.bf16.msra.mxu0 %v347
  %486 = vmatprep.subr.bf16.mxu0 %v350
  %487 = vmatpush1.bf16.msra.mxu0 %v349
  %488 = vmatprep.subr.bf16.mxu0 %v352
  %489 = vmatpush1.bf16.msra.mxu0 %v351
  %490 = vmatprep.subr.bf16.mxu0 %v354
  %491 = vmatpush1.bf16.msra.mxu0 %v353
  %492 = vmatprep.subr.bf16.mxu0 %v356
  %493 = vmatpush1.bf16.msra.mxu0 %v355
  %494 = vmatprep.subr.bf16.mxu0 %v358
  %495 = vmatpush1.bf16.msra.mxu0 %v357
  %496 = vmatprep.subr.bf16.mxu0 %v360
  %497 = vmatpush1.bf16.msra.mxu0 %v359
  %498 = vmatprep.subr.bf16.mxu0 %v362
  %499 = vmatpush1.bf16.msra.mxu0 %v361
  %500 = vmatprep.subr.bf16.mxu0 %v364
  %501 = vmatpush1.bf16.msra.mxu0 %v363
  %502 = vmatprep.subr.bf16.mxu0 %v366
  %503 = vmatpush1.bf16.msra.mxu0 %v365
  %504 = vmatprep.subr.bf16.mxu0 %v368
  %505 = vmatpush1.bf16.msra.mxu0 %v367
  %506 = vmatprep.subr.bf16.mxu0 %v370
  %507 = vmatpush1.bf16.msra.mxu0 %v369
  %508 = vmatprep.subr.bf16.mxu0 %v372
  %509 = vmatpush1.bf16.msra.mxu0 %v371
  %510 = vmatprep.subr.bf16.mxu0 %v374
  %511 = vmatpush1.bf16.msra.mxu0 %v373
  %512 = vmatprep.mubr.bf16.mxu0 %v114
  %513 = vmatmul.mubr.bf16.gmra.mrb[0].mxu0 %v113
  %v514 = vpop.f32.mrb[0].mxu0
  %v515 = vadd.f32 %v474, %v514
  %v516 = vpop.f32.mrb[0].mxu0
  %v517 = vadd.f32 %v476, %v516
  %v518 = vpop.f32.mrb[0].mxu0
  %v519 = vpop.f32.mrb[0].mxu0
  %520 = vdwg.mxu0
  %v521 = vmax.f32 %v515, 0.0
  %v522 = vmax.f32 %v517, 0.0
  %v523 = vpack.c.bf16 %v521, %v521
  %v524 = vpack.c.bf16 %v522, %v522
  %v525 = vld [vmem:[%s3] sm:$0xf]
  %v526 = vld [vmem:[%s3 + $0x4] sm:$0xf]
  %v527 = vld [vmem:[%s3 + $0x8] sm:$0xf]
  %v528 = vld [vmem:[%s3 + $0xc] sm:$0xf]
  %v529 = vld [vmem:[%s3 + $0x10] sm:$0xf]
  %v530 = vld [vmem:[%s3 + $0x14] sm:$0xf]
  %v531 = vld [vmem:[%s3 + $0x18] sm:$0xf]
  %v532 = vld [vmem:[%s3 + $0x1c] sm:$0xf]
  %v533 = vld [vmem:[%s3 + $0x20] sm:$0xf]
  %v534 = vld [vmem:[%s3 + $0x24] sm:$0xf]
  %v535 = vld [vmem:[%s3 + $0x28] sm:$0xf]
  %v536 = vld [vmem:[%s3 + $0x2c] sm:$0xf]
  %v537 = vld [vmem:[%s3 + $0x30] sm:$0xf]
  %v538 = vld [vmem:[%s3 + $0x34] sm:$0xf]
  %v539 = vld [vmem:[%s3 + $0x38] sm:$0xf]
  %v540 = vld [vmem:[%s3 + $0x3c] sm:$0xf]
  %v541 = vld [vmem:[%s3 + $0x40] sm:$0xf]
  %v542 = vld [vmem:[%s3 + $0x44] sm:$0xf]
  %v543 = vld [vmem:[%s3 + $0x48] sm:$0xf]
  %v544 = vld [vmem:[%s3 + $0x4c] sm:$0xf]
  %v545 = vld [vmem:[%s3 + $0x50] sm:$0xf]
  %v546 = vld [vmem:[%s3 + $0x54] sm:$0xf]
  %v547 = vld [vmem:[%s3 + $0x58] sm:$0xf]
  %v548 = vld [vmem:[%s3 + $0x5c] sm:$0xf]
  %v549 = vld [vmem:[%s3 + $0x60] sm:$0xf]
  %v550 = vld [vmem:[%s3 + $0x64] sm:$0xf]
  %v551 = vld [vmem:[%s3 + $0x68] sm:$0xf]
  %v552 = vld [vmem:[%s3 + $0x6c] sm:$0xf]
  %v553 = vld [vmem:[%s3 + $0x70] sm:$0xf]
  %v554 = vld [vmem:[%s3 + $0x74] sm:$0xf]
  %v555 = vld [vmem:[%s3 + $0x78] sm:$0xf]
  %v556 = vld [vmem:[%s3 + $0x7c] sm:$0xf]
  %v557 = vld [vmem:[%s4] sm:$0x1]
  %v559 = vlaneseq
  %v560 = vshrl.u32 %v559, 7
  %v561 = vsub.s32 0, %v560
  %v562 = vrot.slane %v557, %v561
  %v596 = vunpack.c.l.b16 %v525
  %v597 = vunpack.c.l.b16 %v526
  %v598 = vunpack.c.l.b16 %v527
  %v599 = vunpack.c.l.b16 %v528
  %v600 = vunpack.c.l.b16 %v529
  %v601 = vunpack.c.l.b16 %v530
  %v602 = vunpack.c.l.b16 %v531
  %v603 = vunpack.c.l.b16 %v532
  %v604 = vunpack.c.l.b16 %v533
  %v605 = vunpack.c.l.b16 %v534
  %v606 = vunpack.c.l.b16 %v535
  %v607 = vunpack.c.l.b16 %v536
  %v608 = vunpack.c.l.b16 %v537
  %v609 = vunpack.c.l.b16 %v538
  %v610 = vunpack.c.l.b16 %v539
  %v611 = vunpack.c.l.b16 %v540
  %v612 = vunpack.c.l.b16 %v541
  %v613 = vunpack.c.l.b16 %v542
  %v614 = vunpack.c.l.b16 %v543
  %v615 = vunpack.c.l.b16 %v544
  %v616 = vunpack.c.l.b16 %v545
  %v617 = vunpack.c.l.b16 %v546
  %v618 = vunpack.c.l.b16 %v547
  %v619 = vunpack.c.l.b16 %v548
  %v620 = vunpack.c.l.b16 %v549
  %v621 = vunpack.c.l.b16 %v550
  %v622 = vunpack.c.l.b16 %v551
  %v623 = vunpack.c.l.b16 %v552
  %v624 = vunpack.c.l.b16 %v553
  %v625 = vunpack.c.l.b16 %v554
  %v626 = vunpack.c.l.b16 %v555
  %v627 = vunpack.c.l.b16 %v556
  %v628 = vpack.c.b16 %v597, %v596
  %v629 = vpack.c.b16 %v599, %v598
  %v630 = vpack.c.b16 %v601, %v600
  %v631 = vpack.c.b16 %v603, %v602
  %v632 = vpack.c.b16 %v605, %v604
  %v633 = vpack.c.b16 %v607, %v606
  %v634 = vpack.c.b16 %v609, %v608
  %v635 = vpack.c.b16 %v611, %v610
  %v636 = vpack.c.b16 %v613, %v612
  %v637 = vpack.c.b16 %v615, %v614
  %v638 = vpack.c.b16 %v617, %v616
  %v639 = vpack.c.b16 %v619, %v618
  %v640 = vpack.c.b16 %v621, %v620
  %v641 = vpack.c.b16 %v623, %v622
  %v642 = vpack.c.b16 %v625, %v624
  %v643 = vpack.c.b16 %v627, %v626
  %660 = vmatprep.subr.bf16.mxu0 0
  %661 = vmatpush1.bf16.msra.mxu0 %v628
  %662 = vmatprep.subr.bf16.mxu0 0
  %663 = vmatpush1.bf16.msra.mxu0 %v629
  %664 = vmatprep.subr.bf16.mxu0 0
  %665 = vmatpush1.bf16.msra.mxu0 %v630
  %666 = vmatprep.subr.bf16.mxu0 0
  %667 = vmatpush1.bf16.msra.mxu0 %v631
  %668 = vmatprep.subr.bf16.mxu0 0
  %669 = vmatpush1.bf16.msra.mxu0 %v632
  %670 = vmatprep.subr.bf16.mxu0 0
  %671 = vmatpush1.bf16.msra.mxu0 %v633
  %672 = vmatprep.subr.bf16.mxu0 0
  %673 = vmatpush1.bf16.msra.mxu0 %v634
  %674 = vmatprep.subr.bf16.mxu0 0
  %675 = vmatpush1.bf16.msra.mxu0 %v635
  %676 = vmatprep.subr.bf16.mxu0 0
  %677 = vmatpush1.bf16.msra.mxu0 %v636
  %678 = vmatprep.subr.bf16.mxu0 0
  %679 = vmatpush1.bf16.msra.mxu0 %v637
  %680 = vmatprep.subr.bf16.mxu0 0
  %681 = vmatpush1.bf16.msra.mxu0 %v638
  %682 = vmatprep.subr.bf16.mxu0 0
  %683 = vmatpush1.bf16.msra.mxu0 %v639
  %684 = vmatprep.subr.bf16.mxu0 0
  %685 = vmatpush1.bf16.msra.mxu0 %v640
  %686 = vmatprep.subr.bf16.mxu0 0
  %687 = vmatpush1.bf16.msra.mxu0 %v641
  %688 = vmatprep.subr.bf16.mxu0 0
  %689 = vmatpush1.bf16.msra.mxu0 %v642
  %690 = vmatprep.subr.bf16.mxu0 0
  %691 = vmatpush1.bf16.msra.mxu0 %v643
  %692 = vmatprep.mubr.bf16.mxu0 %v524
  %693 = vmatmul.mubr.bf16.gmra.mrb[0].mxu0 %v523
  %v694 = vpop.f32.mrb[0].mxu0
  %v695 = vadd.f32 %v562, %v694
  %v696 = vpop.f32.mrb[0].mxu0
  %v697 = vpop.f32.mrb[0].mxu0
  %v698 = vpop.f32.mrb[0].mxu0
  %699 = vdwg.mxu0
  %v700 = vmax.f32 %v695, 0.0
  %v701 = vpack.c.bf16 %v700, %v700
  %v702 = vld [vmem:[%s5] sm:$0xf]
  %v703 = vld [vmem:[%s5 + $0x4] sm:$0xf]
  %v704 = vld [vmem:[%s5 + $0x8] sm:$0xf]
  %v705 = vld [vmem:[%s5 + $0xc] sm:$0xf]
  %v706 = vld [vmem:[%s5 + $0x10] sm:$0xf]
  %v707 = vld [vmem:[%s5 + $0x14] sm:$0xf]
  %v708 = vld [vmem:[%s5 + $0x18] sm:$0xf]
  %v709 = vld [vmem:[%s5 + $0x1c] sm:$0xf]
  %v710 = vld [vmem:[%s5 + $0x20] sm:$0xf]
  %v711 = vld [vmem:[%s5 + $0x24] sm:$0xf]
  %v712 = vld [vmem:[%s5 + $0x28] sm:$0xf]
  %v713 = vld [vmem:[%s5 + $0x2c] sm:$0xf]
  %v714 = vld [vmem:[%s5 + $0x30] sm:$0xf]
  %v715 = vld [vmem:[%s5 + $0x34] sm:$0xf]
  %v716 = vld [vmem:[%s5 + $0x38] sm:$0xf]
  %v717 = vld [vmem:[%s5 + $0x3c] sm:$0xf]
  %v718 = vld [vmem:[%s6] sm:$0x1]
  %v720 = vlaneseq
  %v721 = vshrl.u32 %v720, 7
  %v722 = vsub.s32 0, %v721
  %v723 = vrot.slane %v718, %v722
  %v741 = vunpack.c.l.b16 %v702
  %v742 = vunpack.c.l.b16 %v703
  %v743 = vunpack.c.l.b16 %v704
  %v744 = vunpack.c.l.b16 %v705
  %v745 = vunpack.c.l.b16 %v706
  %v746 = vunpack.c.l.b16 %v707
  %v747 = vunpack.c.l.b16 %v708
  %v748 = vunpack.c.l.b16 %v709
  %v749 = vunpack.c.l.b16 %v710
  %v750 = vunpack.c.l.b16 %v711
  %v751 = vunpack.c.l.b16 %v712
  %v752 = vunpack.c.l.b16 %v713
  %v753 = vunpack.c.l.b16 %v714
  %v754 = vunpack.c.l.b16 %v715
  %v755 = vunpack.c.l.b16 %v716
  %v756 = vunpack.c.l.b16 %v717
  %v757 = vpack.c.b16 %v742, %v741
  %v758 = vpack.c.b16 %v744, %v743
  %v759 = vpack.c.b16 %v746, %v745
  %v760 = vpack.c.b16 %v748, %v747
  %v761 = vpack.c.b16 %v750, %v749
  %v762 = vpack.c.b16 %v752, %v751
  %v763 = vpack.c.b16 %v754, %v753
  %v764 = vpack.c.b16 %v756, %v755
  %773 = vmatprep.subr.bf16.mxu0 0
  %774 = vmatpush1.bf16.msra.mxu0 %v757
  %775 = vmatprep.subr.bf16.mxu0 0
  %776 = vmatpush1.bf16.msra.mxu0 %v758
  %777 = vmatprep.subr.bf16.mxu0 0
  %778 = vmatpush1.bf16.msra.mxu0 %v759
  %779 = vmatprep.subr.bf16.mxu0 0
  %780 = vmatpush1.bf16.msra.mxu0 %v760
  %781 = vmatprep.subr.bf16.mxu0 0
  %782 = vmatpush1.bf16.msra.mxu0 %v761
  %783 = vmatprep.subr.bf16.mxu0 0
  %784 = vmatpush1.bf16.msra.mxu0 %v762
  %785 = vmatprep.subr.bf16.mxu0 0
  %786 = vmatpush1.bf16.msra.mxu0 %v763
  %787 = vmatprep.subr.bf16.mxu0 0
  %788 = vmatpush1.bf16.msra.mxu0 %v764
  %789 = vmatprep.subr.bf16.mxu0 0
  %790 = vmatpush1.bf16.msra.mxu0 0
  %791 = vmatprep.subr.bf16.mxu0 0
  %792 = vmatpush1.bf16.msra.mxu0 0
  %793 = vmatprep.subr.bf16.mxu0 0
  %794 = vmatpush1.bf16.msra.mxu0 0
  %795 = vmatprep.subr.bf16.mxu0 0
  %796 = vmatpush1.bf16.msra.mxu0 0
  %797 = vmatprep.subr.bf16.mxu0 0
  %798 = vmatpush1.bf16.msra.mxu0 0
  %799 = vmatprep.subr.bf16.mxu0 0
  %800 = vmatpush1.bf16.msra.mxu0 0
  %801 = vmatprep.subr.bf16.mxu0 0
  %802 = vmatpush1.bf16.msra.mxu0 0
  %803 = vmatprep.subr.bf16.mxu0 0
  %804 = vmatpush1.bf16.msra.mxu0 0
  %805 = vmatprep.mubr.bf16.mxu0 0
  %806 = vmatmul.mubr.bf16.gmra.mrb[0].mxu0 %v701
  %v807 = vpop.f32.mrb[0].mxu0
  %v808 = vadd.f32 %v723, %v807
  %v809 = vpop.f32.mrb[0].mxu0
  %v810 = vpop.f32.mrb[0].mxu0
  %v811 = vpop.f32.mrb[0].mxu0
  %812 = vdwg.mxu0
  %813 = vst [vmem:[%s7] sm:$0xff] %v808
  // Predicated region
  $region30: #{forward.7} parent=0 // pred_check
    _
  $region31: #{forward.7} parent=0 // pred_check_branch
    %815 = sbr.rel (0) target = $region33
  $region32: #{forward.7} parent=0 // pred_region
    _
  $region33: #{forward.7} parent=0 // pred_fallthru
    _
  // Predicated region
  $region34: #{forward.7} parent=0 // pred_check
    _
  $region35: #{forward.7} parent=0 // pred_check_branch
    %817 = sbr.rel (0) target = $region37
  $region36: #{forward.7} parent=0 // pred_region
    _
  $region37: #{forward.7} parent=0 // pred_fallthru
    _

</llo_original>
